<compile_context>
chip_gen: v7x
topology: tpu7x:2x2x1
jax: 0.10.0
libtpu: 0.0.40
codegen_flags: <defaults>
</compile_context>

<pallas_src>
import jax
import jax.numpy as jnp
from jax.experimental import pallas as pl
from jax.experimental.pallas import tpu as pltpu

K = 3          # conv kernel size (both convs)
C1 = 16        # conv1 out channels
C2 = 32        # conv2 out channels


def _round_up(v, m):
    return ((v + m - 1) // m) * m


def _conv_dims(L):
    L1 = L - K + 1          # conv1 output length
    P1 = L1 // 2            # pool1 output length
    L2 = P1 - K + 1         # conv2 output length
    P2 = L2 // 2            # pool2 output length
    P2p = _round_up(P2, 8)  # pooled positions padded to a sublane multiple
    return L1, P1, L2, P2, P2p


def conv1d_fcnet_kernel(x_ref, w1_ref, b1_ref, w2_ref, b2_ref,
                        wf1_ref, bf1_ref, wf2_ref, bf2_ref, out_ref):
    x = x_ref[0]                                    # (L, TB) f32, batch on lanes
    L, TB = x.shape
    L1, P1, L2, P2, P2p = _conv_dims(L)

    # ---- conv1 (1->16, k=3) + ReLU: lane-dense VPU MACs on the merged
    #      (position*batch) lane axis; tap windows are lane slices of xm. ----
    xm = x.reshape(1, L * TB)                       # column index = l*TB + b
    w1 = w1_ref[...]                                # (16, 3) f32, read once
    h1 = jnp.broadcast_to(b1_ref[...], (C1, L1 * TB))
    for k in range(K):                              # static unroll, 3 taps
        h1 = h1 + w1[:, k:k + 1] * xm[:, k * TB:(k + L1) * TB]
    h1 = jnp.maximum(h1, 0.0)                       # (16, L1*TB) f32

    # ---- maxpool1 (k=2, s=2): a position pair spans one 2*TB lane chunk ----
    h1 = h1[:, :2 * P1 * TB].reshape(C1, P1, 2 * TB)
    h1 = jnp.maximum(h1[:, :, :TB], h1[:, :, TB:])  # (16, P1, TB) f32
    # dropout1: identity at inference

    # ---- conv2 (16->32, k=3) + ReLU: ONE 2-D MXU matmul on bf16 operands.
    #      Tap windows are TB-aligned lane slices of the merged layout, and the
    #      k-stack (axis 0) is sublane-tile aligned (16 rows per tap). ----
    h1m = h1.astype(jnp.bfloat16).reshape(C1, P1 * TB)
    taps = jnp.concatenate(
        [h1m[:, k * TB:(k + L2) * TB] for k in range(K)], axis=0)   # (48, L2*TB)
    h2 = jnp.dot(w2_ref[...], taps, preferred_element_type=jnp.float32)
    h2 = jnp.maximum(h2 + b2_ref[...], 0.0)                         # (32, L2*TB) f32

    # ---- maxpool2 (k=2, s=2), same lane-chunk trick ----
    h2 = h2[:, :2 * P2 * TB].reshape(C2, P2, 2 * TB)
    h2 = jnp.maximum(h2[:, :, :TB], h2[:, :, TB:])                  # (32, P2, TB)
    # dropout2: identity at inference

    # ---- flatten: channels lead, so this matches PyTorch's channel-major
    #      Flatten directly; pad positions to P2p so the merge is tile-aligned
    #      (fc1 weight has matching zero columns). ----
    if P2p > P2:
        h2 = jnp.concatenate(
            [h2, jnp.zeros((C2, P2p - P2, TB), h2.dtype)], axis=1)
    flat = h2.reshape(C2 * P2p, TB).astype(jnp.bfloat16)            # (FEATp, TB)

    # ---- FCNet (assumed): Linear -> ReLU -> Dropout(identity) -> Linear ----
    f1 = jnp.dot(wf1_ref[...], flat, preferred_element_type=jnp.float32)
    f1 = jnp.maximum(f1 + bf1_ref[...], 0.0)                        # (H, TB) f32
    out = jnp.dot(wf2_ref[...], f1.astype(jnp.bfloat16),
                  preferred_element_type=jnp.float32) + bf2_ref[...]
    out_ref[0] = out                                                # (NC, TB), lane-dense


def conv1d_fcnet_forward(x, params, tb_max=128):
    """x: (B, input_size) float32; params in PyTorch layouts.

    tb_max: batch-tile width (lane axis). 128 is safe on all generations
    (v5e 16 MiB default scoped VMEM, v7x 64 MiB physical); on v6e with large
    batches tb_max=256 fills the 256x256 MXU better.
    """
    w1, b1, w2, b2, wf1, bf1, wf2, bf2 = params
    B, L = x.shape
    L1, P1, L2, P2, P2p = _conv_dims(L)
    H = wf1.shape[0]
    NC = wf2.shape[0]

    # --- weights in kernel layouts (plain-JAX glue, done once).  Matmul weights
    #     are pre-cast to bf16; biases stay f32. ---
    w1_k = w1.reshape(C1, K)                                          # [c, k]
    b1_k = b1.reshape(C1, 1)
    # conv2 matmul weight: column index = k*C1 + c1 (matches the in-kernel k-stack)
    w2_k = jnp.transpose(w2, (0, 2, 1)).reshape(C2, K * C1).astype(jnp.bfloat16)
    b2_k = b2.reshape(C2, 1)
    # fc1: PyTorch flatten index is c*P2 + p; kernel flat row is c*P2p + p with
    # zero-padded positions -> pad wf1's position axis with zero columns.
    wf1_r = wf1.reshape(H, C2, P2)
    if P2p > P2:
        wf1_r = jnp.concatenate(
            [wf1_r, jnp.zeros((H, C2, P2p - P2), wf1.dtype)], axis=2)
    wf1_k = wf1_r.reshape(H, C2 * P2p).astype(jnp.bfloat16)
    bf1_k = bf1.reshape(H, 1)
    wf2_k = wf2.astype(jnp.bfloat16)                                  # (NC, H)
    bf2_k = bf2.reshape(NC, 1)
    weights = (w1_k, b1_k, w2_k, b2_k, wf1_k, bf1_k, wf2_k, bf2_k)

    # --- adaptive batch tiling: TB multiple of 8 sized to the batch, >= 2 tiles
    #     once the batch is big enough so both v7x TensorCores get work. ---
    n_tiles = pl.cdiv(B, tb_max)
    if B > 16:
        n_tiles = max(n_tiles, 2)
    TB = _round_up(pl.cdiv(B, n_tiles), 8)
    Bp = n_tiles * TB

    # batch-on-lanes input layout: (n_tiles, L, TB); last two block dims equal
    # the full array dims, so any 8-multiple TB is legal.
    xp = jnp.pad(x, ((0, Bp - B), (0, 0))) if Bp != B else x
    x_t = xp.reshape(n_tiles, TB, L).transpose(0, 2, 1)               # (n_tiles, L, TB)

    def const_spec(a):
        nd = a.ndim
        return pl.BlockSpec(a.shape, lambda i, _nd=nd: (0,) * _nd)    # VMEM-resident

    in_specs = [pl.BlockSpec((1, L, TB), lambda i: (i, 0, 0))] + \
               [const_spec(a) for a in weights]
    out_spec = pl.BlockSpec((1, NC, TB), lambda i: (i, 0, 0))

    out = pl.pallas_call(
        conv1d_fcnet_kernel,
        out_shape=jax.ShapeDtypeStruct((n_tiles, NC, TB), jnp.float32),
        grid=(n_tiles,),
        in_specs=in_specs,
        out_specs=out_spec,
        compiler_params=pltpu.CompilerParams(
            dimension_semantics=("parallel",),       # batch tiles across TCs on v7x
            vmem_limit_bytes=48 * 1024 * 1024,       # explicit headroom (tile uses a few MB)
        ),
    )(x_t, *weights)

    return out.transpose(0, 2, 1).reshape(Bp, NC)[:B]


# ------------------------- pure-JAX reference (PyTorch layout) -------------------------
def reference_forward(x, params):
    w1, b1, w2, b2, wf1, bf1, wf2, bf2 = params
    dn = ("NCH", "OIH", "NCH")
    h = x[:, None, :]
    h = jax.lax.conv_general_dilated(h, w1, (1,), "VALID", dimension_numbers=dn,
                                     precision=jax.lax.Precision.HIGHEST)
    h = jax.nn.relu(h + b1[None, :, None])
    P = h.shape[-1] // 2
    h = h[:, :, :2 * P].reshape(h.shape[0], h.shape[1], P, 2).max(-1)
    h = jax.lax.conv_general_dilated(h, w2, (1,), "VALID", dimension_numbers=dn,
                                     precision=jax.lax.Precision.HIGHEST)
    h = jax.nn.relu(h + b2[None, :, None])
    P = h.shape[-1] // 2
    h = h[:, :, :2 * P].reshape(h.shape[0], h.shape[1], P, 2).max(-1)
    flat = h.reshape(h.shape[0], -1)
    f1 = jax.nn.relu(jnp.dot(flat, wf1.T, precision=jax.lax.Precision.HIGHEST) + bf1)
    return jnp.dot(f1, wf2.T, precision=jax.lax.Precision.HIGHEST) + bf2


if __name__ == "__main__":
    B = 4
    INPUT_SIZE = 64          # sequence length fed to Conv1DFCNet
    NUM_CLASSES = 10
    HIDDEN = 64              # assumed FCNet hidden width

    # conv output size (same arithmetic as _get_conv_output_size)
    _, _, _, P2, _ = _conv_dims(INPUT_SIZE)
    FEAT = C2 * P2

    key = jax.random.PRNGKey(0)
    ks = jax.random.split(key, 10)
    scale = 0.1
    w1 = scale * jax.random.normal(ks[0], (C1, 1, K), jnp.float32)
    b1 = scale * jax.random.normal(ks[1], (C1,), jnp.float32)
    w2 = scale * jax.random.normal(ks[2], (C2, C1, K), jnp.float32)
    b2 = scale * jax.random.normal(ks[3], (C2,), jnp.float32)
    wf1 = scale * jax.random.normal(ks[4], (HIDDEN, FEAT), jnp.float32)
    bf1 = scale * jax.random.normal(ks[5], (HIDDEN,), jnp.float32)
    wf2 = scale * jax.random.normal(ks[6], (NUM_CLASSES, HIDDEN), jnp.float32)
    bf2 = scale * jax.random.normal(ks[7], (NUM_CLASSES,), jnp.float32)
    params = (w1, b1, w2, b2, wf1, bf1, wf2, bf2)

    # --- primary small-shape test (B=4): single grid step, TB rounded to 8 ---
    x = jax.random.normal(ks[8], (B, INPUT_SIZE), jnp.float32)
    out = jax.block_until_ready(conv1d_fcnet_forward(x, params))
    ref = jax.block_until_ready(reference_forward(x, params))
    assert out.shape == (B, NUM_CLASSES)
    if not jnp.allclose(out, ref, rtol=2e-2, atol=2e-2):
        raise AssertionError(f"mismatch vs reference (B={B}): max abs err "
                             f"{float(jnp.max(jnp.abs(out - ref)))}")

    # --- secondary test: multi-tile grid + adaptive TB + batch padding path ---
    B2 = 132
    x2 = jax.random.normal(ks[9], (B2, INPUT_SIZE), jnp.float32)
    out2 = jax.block_until_ready(conv1d_fcnet_forward(x2, params))
    ref2 = jax.block_until_ready(reference_forward(x2, params))
    assert out2.shape == (B2, NUM_CLASSES)
    if not jnp.allclose(out2, ref2, rtol=2e-2, atol=2e-2):
        raise AssertionError(f"mismatch vs reference (B={B2}): max abs err "
                             f"{float(jnp.max(jnp.abs(out2 - ref2)))}")

    print("KERNEL_OK")
</pallas_src>

<mosaic_0001>
module attributes {stable_mosaic.version = 11 : i64} {
  func.func @conv1d_fcnet_kernel(%arg0: i32, %arg1: memref<1x64x8xf32, #tpu.memory_space<vmem>>, %arg2: memref<16x3xf32, #tpu.memory_space<vmem>>, %arg3: memref<16x1xf32, #tpu.memory_space<vmem>>, %arg4: memref<32x48xbf16, #tpu.memory_space<vmem>>, %arg5: memref<32x1xf32, #tpu.memory_space<vmem>>, %arg6: memref<64x512xbf16, #tpu.memory_space<vmem>>, %arg7: memref<64x1xf32, #tpu.memory_space<vmem>>, %arg8: memref<10x64xbf16, #tpu.memory_space<vmem>>, %arg9: memref<10x1xf32, #tpu.memory_space<vmem>>, %arg10: memref<1x10x8xf32, #tpu.memory_space<vmem>>) attributes {dimension_semantics = [#tpu.dimension_semantics<parallel>], iteration_bounds = array<i64: 1>, scalar_prefetch = 0 : i64, scratch_operands = 0 : i64, tpu.core_type = #tpu.core_type<tc>, window_params = [{transform_indices = @transform_0, window_bounds = array<i64: 1, 64, 8>}, {pipeline_mode = #tpu.pipeline_mode<synchronous>, transform_indices = @transform_1, window_bounds = array<i64: 16, 3>}, {pipeline_mode = #tpu.pipeline_mode<synchronous>, transform_indices = @transform_2, window_bounds = array<i64: 16, 1>}, {pipeline_mode = #tpu.pipeline_mode<synchronous>, transform_indices = @transform_3, window_bounds = array<i64: 32, 48>}, {pipeline_mode = #tpu.pipeline_mode<synchronous>, transform_indices = @transform_4, window_bounds = array<i64: 32, 1>}, {pipeline_mode = #tpu.pipeline_mode<synchronous>, transform_indices = @transform_5, window_bounds = array<i64: 64, 512>}, {pipeline_mode = #tpu.pipeline_mode<synchronous>, transform_indices = @transform_6, window_bounds = array<i64: 64, 1>}, {pipeline_mode = #tpu.pipeline_mode<synchronous>, transform_indices = @transform_7, window_bounds = array<i64: 10, 64>}, {pipeline_mode = #tpu.pipeline_mode<synchronous>, transform_indices = @transform_8, window_bounds = array<i64: 10, 1>}, {transform_indices = @transform_9, window_bounds = array<i64: 1, 10, 8>}]} {
    %c0 = arith.constant 0 : index
    %c0_0 = arith.constant 0 : index
    %c0_1 = arith.constant 0 : index
    %0 = vector.load %arg1[%c0, %c0_0, %c0_1] : memref<1x64x8xf32, #tpu.memory_space<vmem>>, vector<1x64x8xf32>
    %1 = vector.shape_cast %0 : vector<1x64x8xf32> to vector<64x8xf32>
    %2 = vector.shape_cast %1 : vector<64x8xf32> to vector<1x512xf32>
    %c0_2 = arith.constant 0 : index
    %c0_3 = arith.constant 0 : index
    %3 = vector.load %arg2[%c0_2, %c0_3] : memref<16x3xf32, #tpu.memory_space<vmem>>, vector<16x3xf32>
    %c0_4 = arith.constant 0 : index
    %c0_5 = arith.constant 0 : index
    %4 = vector.load %arg3[%c0_4, %c0_5] : memref<16x1xf32, #tpu.memory_space<vmem>>, vector<16x1xf32>
    %5 = vector.shape_cast %4 : vector<16x1xf32> to vector<16x1xf32>
    %6 = vector.broadcast %5 : vector<16x1xf32> to vector<16x496xf32>
    %7 = vector.extract_strided_slice %3 {offsets = [0, 0], sizes = [16, 1], strides = [1, 1]} : vector<16x3xf32> to vector<16x1xf32>
    %8 = vector.extract_strided_slice %2 {offsets = [0, 0], sizes = [1, 496], strides = [1, 1]} : vector<1x512xf32> to vector<1x496xf32>
    %9 = vector.broadcast %7 : vector<16x1xf32> to vector<16x496xf32>
    %10 = vector.broadcast %8 : vector<1x496xf32> to vector<16x496xf32>
    %11 = arith.mulf %9, %10 : vector<16x496xf32>
    %12 = arith.addf %6, %11 : vector<16x496xf32>
    %13 = vector.extract_strided_slice %3 {offsets = [0, 1], sizes = [16, 1], strides = [1, 1]} : vector<16x3xf32> to vector<16x1xf32>
    %14 = vector.extract_strided_slice %2 {offsets = [0, 8], sizes = [1, 496], strides = [1, 1]} : vector<1x512xf32> to vector<1x496xf32>
    %15 = vector.broadcast %13 : vector<16x1xf32> to vector<16x496xf32>
    %16 = vector.broadcast %14 : vector<1x496xf32> to vector<16x496xf32>
    %17 = arith.mulf %15, %16 : vector<16x496xf32>
    %18 = arith.addf %12, %17 : vector<16x496xf32>
    %19 = vector.extract_strided_slice %3 {offsets = [0, 2], sizes = [16, 1], strides = [1, 1]} : vector<16x3xf32> to vector<16x1xf32>
    %20 = vector.extract_strided_slice %2 {offsets = [0, 16], sizes = [1, 496], strides = [1, 1]} : vector<1x512xf32> to vector<1x496xf32>
    %21 = vector.broadcast %19 : vector<16x1xf32> to vector<16x496xf32>
    %22 = vector.broadcast %20 : vector<1x496xf32> to vector<16x496xf32>
    %23 = arith.mulf %21, %22 : vector<16x496xf32>
    %24 = arith.addf %18, %23 : vector<16x496xf32>
    %cst = arith.constant 0.000000e+00 : f32
    %25 = vector.broadcast %cst : f32 to vector<16x496xf32>
    %26 = arith.maximumf %24, %25 : vector<16x496xf32>
    %27 = vector.shape_cast %26 : vector<16x496xf32> to vector<16x31x16xf32>
    %28 = vector.extract_strided_slice %27 {offsets = [0, 0, 0], sizes = [16, 31, 8], strides = [1, 1, 1]} : vector<16x31x16xf32> to vector<16x31x8xf32>
    %29 = vector.extract_strided_slice %27 {offsets = [0, 0, 8], sizes = [16, 31, 8], strides = [1, 1, 1]} : vector<16x31x16xf32> to vector<16x31x8xf32>
    %30 = arith.maximumf %28, %29 : vector<16x31x8xf32>
    %31 = arith.truncf %30 : vector<16x31x8xf32> to vector<16x31x8xbf16>
    %32 = vector.shape_cast %31 : vector<16x31x8xbf16> to vector<16x248xbf16>
    %33 = vector.extract_strided_slice %32 {offsets = [0, 0], sizes = [16, 232], strides = [1, 1]} : vector<16x248xbf16> to vector<16x232xbf16>
    %34 = vector.extract_strided_slice %32 {offsets = [0, 8], sizes = [16, 232], strides = [1, 1]} : vector<16x248xbf16> to vector<16x232xbf16>
    %35 = vector.extract_strided_slice %32 {offsets = [0, 16], sizes = [16, 232], strides = [1, 1]} : vector<16x248xbf16> to vector<16x232xbf16>
    %36 = tpu.concatenate %33, %34, %35 in 0 : vector<16x232xbf16>, vector<16x232xbf16>, vector<16x232xbf16> -> vector<48x232xbf16>
    %c0_6 = arith.constant 0 : index
    %c0_7 = arith.constant 0 : index
    %37 = vector.load %arg4[%c0_6, %c0_7] : memref<32x48xbf16, #tpu.memory_space<vmem>>, vector<32x48xbf16>
    %cst_8 = arith.constant dense<0.000000e+00> : vector<32x232xf32>
    %38 = tpu.matmul %37, %36, %cst_8 {dimension_numbers = #tpu.dot_dimension_numbers<[1], [0], [0], [1], [0, 0, 1, 1], [], []>} : vector<32x48xbf16>, vector<48x232xbf16>, vector<32x232xf32> -> vector<32x232xf32>
    %c0_9 = arith.constant 0 : index
    %c0_10 = arith.constant 0 : index
    %39 = vector.load %arg5[%c0_9, %c0_10] : memref<32x1xf32, #tpu.memory_space<vmem>>, vector<32x1xf32>
    %40 = vector.broadcast %39 : vector<32x1xf32> to vector<32x232xf32>
    %41 = arith.addf %38, %40 : vector<32x232xf32>
    %cst_11 = arith.constant 0.000000e+00 : f32
    %42 = vector.broadcast %cst_11 : f32 to vector<32x232xf32>
    %43 = arith.maximumf %41, %42 : vector<32x232xf32>
    %44 = vector.extract_strided_slice %43 {offsets = [0, 0], sizes = [32, 224], strides = [1, 1]} : vector<32x232xf32> to vector<32x224xf32>
    %45 = vector.shape_cast %44 : vector<32x224xf32> to vector<32x14x16xf32>
    %46 = vector.extract_strided_slice %45 {offsets = [0, 0, 0], sizes = [32, 14, 8], strides = [1, 1, 1]} : vector<32x14x16xf32> to vector<32x14x8xf32>
    %47 = vector.extract_strided_slice %45 {offsets = [0, 0, 8], sizes = [32, 14, 8], strides = [1, 1, 1]} : vector<32x14x16xf32> to vector<32x14x8xf32>
    %48 = arith.maximumf %46, %47 : vector<32x14x8xf32>
    %cst_12 = arith.constant 0.000000e+00 : f32
    %49 = vector.broadcast %cst_12 : f32 to vector<32x2x8xf32>
    %50 = tpu.concatenate %48, %49 in 1 : vector<32x14x8xf32>, vector<32x2x8xf32> -> vector<32x16x8xf32>
    %51 = vector.shape_cast %50 : vector<32x16x8xf32> to vector<512x8xf32>
    %52 = arith.truncf %51 : vector<512x8xf32> to vector<512x8xbf16>
    %c0_13 = arith.constant 0 : index
    %c0_14 = arith.constant 0 : index
    %53 = vector.load %arg6[%c0_13, %c0_14] : memref<64x512xbf16, #tpu.memory_space<vmem>>, vector<64x512xbf16>
    %cst_15 = arith.constant dense<0.000000e+00> : vector<64x8xf32>
    %54 = tpu.matmul %53, %52, %cst_15 {dimension_numbers = #tpu.dot_dimension_numbers<[1], [0], [0], [1], [0, 0, 1, 1], [], []>} : vector<64x512xbf16>, vector<512x8xbf16>, vector<64x8xf32> -> vector<64x8xf32>
    %c0_16 = arith.constant 0 : index
    %c0_17 = arith.constant 0 : index
    %55 = vector.load %arg7[%c0_16, %c0_17] : memref<64x1xf32, #tpu.memory_space<vmem>>, vector<64x1xf32>
    %56 = vector.broadcast %55 : vector<64x1xf32> to vector<64x8xf32>
    %57 = arith.addf %54, %56 : vector<64x8xf32>
    %cst_18 = arith.constant 0.000000e+00 : f32
    %58 = vector.broadcast %cst_18 : f32 to vector<64x8xf32>
    %59 = arith.maximumf %57, %58 : vector<64x8xf32>
    %c0_19 = arith.constant 0 : index
    %c0_20 = arith.constant 0 : index
    %60 = vector.load %arg8[%c0_19, %c0_20] : memref<10x64xbf16, #tpu.memory_space<vmem>>, vector<10x64xbf16>
    %61 = arith.truncf %59 : vector<64x8xf32> to vector<64x8xbf16>
    %cst_21 = arith.constant dense<0.000000e+00> : vector<10x8xf32>
    %62 = tpu.matmul %60, %61, %cst_21 {dimension_numbers = #tpu.dot_dimension_numbers<[1], [0], [0], [1], [0, 0, 1, 1], [], []>} : vector<10x64xbf16>, vector<64x8xbf16>, vector<10x8xf32> -> vector<10x8xf32>
    %c0_22 = arith.constant 0 : index
    %c0_23 = arith.constant 0 : index
    %63 = vector.load %arg9[%c0_22, %c0_23] : memref<10x1xf32, #tpu.memory_space<vmem>>, vector<10x1xf32>
    %64 = vector.broadcast %63 : vector<10x1xf32> to vector<10x8xf32>
    %65 = arith.addf %62, %64 : vector<10x8xf32>
    %c0_24 = arith.constant 0 : index
    %c0_25 = arith.constant 0 : index
    %c0_26 = arith.constant 0 : index
    %66 = vector.load %arg10[%c0_24, %c0_25, %c0_26] : memref<1x10x8xf32, #tpu.memory_space<vmem>>, vector<1x10x8xf32>
    %67 = vector.shape_cast %66 : vector<1x10x8xf32> to vector<10x8xf32>
    %68 = vector.shape_cast %65 : vector<10x8xf32> to vector<1x10x8xf32>
    tpu.vector_store %arg10[%c0_24, %c0_25, %c0_26], %68 {strides = array<i32>} : memref<1x10x8xf32, #tpu.memory_space<vmem>>, vector<1x10x8xf32>,
    return
  }
  func.func @transform_0(%arg0: i32) -> (i32, i32, i32) {
    %c0_i32 = arith.constant 0 : i32
    %c0_i32_0 = arith.constant 0 : i32
    %c0_i32_1 = arith.constant 0 : i32
    return %arg0, %c0_i32, %c0_i32_0 : i32, i32, i32
  }
  func.func @transform_1(%arg0: i32) -> (i32, i32) {
    %c0_i32 = arith.constant 0 : i32
    %c0_i32_0 = arith.constant 0 : i32
    %c0_i32_1 = arith.constant 0 : i32
    return %c0_i32, %c0_i32_0 : i32, i32
  }
  func.func @transform_2(%arg0: i32) -> (i32, i32) {
    %c0_i32 = arith.constant 0 : i32
    %c0_i32_0 = arith.constant 0 : i32
    %c0_i32_1 = arith.constant 0 : i32
    return %c0_i32, %c0_i32_0 : i32, i32
  }
  func.func @transform_3(%arg0: i32) -> (i32, i32) {
    %c0_i32 = arith.constant 0 : i32
    %c0_i32_0 = arith.constant 0 : i32
    %c0_i32_1 = arith.constant 0 : i32
    return %c0_i32, %c0_i32_0 : i32, i32
  }
  func.func @transform_4(%arg0: i32) -> (i32, i32) {
    %c0_i32 = arith.constant 0 : i32
    %c0_i32_0 = arith.constant 0 : i32
    %c0_i32_1 = arith.constant 0 : i32
    return %c0_i32, %c0_i32_0 : i32, i32
  }
  func.func @transform_5(%arg0: i32) -> (i32, i32) {
    %c0_i32 = arith.constant 0 : i32
    %c0_i32_0 = arith.constant 0 : i32
    %c0_i32_1 = arith.constant 0 : i32
    return %c0_i32, %c0_i32_0 : i32, i32
  }
  func.func @transform_6(%arg0: i32) -> (i32, i32) {
    %c0_i32 = arith.constant 0 : i32
    %c0_i32_0 = arith.constant 0 : i32
    %c0_i32_1 = arith.constant 0 : i32
    return %c0_i32, %c0_i32_0 : i32, i32
  }
  func.func @transform_7(%arg0: i32) -> (i32, i32) {
    %c0_i32 = arith.constant 0 : i32
    %c0_i32_0 = arith.constant 0 : i32
    %c0_i32_1 = arith.constant 0 : i32
    return %c0_i32, %c0_i32_0 : i32, i32
  }
  func.func @transform_8(%arg0: i32) -> (i32, i32) {
    %c0_i32 = arith.constant 0 : i32
    %c0_i32_0 = arith.constant 0 : i32
    %c0_i32_1 = arith.constant 0 : i32
    return %c0_i32, %c0_i32_0 : i32, i32
  }
  func.func @transform_9(%arg0: i32) -> (i32, i32, i32) {
    %c0_i32 = arith.constant 0 : i32
    %c0_i32_0 = arith.constant 0 : i32
    %c0_i32_1 = arith.constant 0 : i32
    return %arg0, %c0_i32, %c0_i32_0 : i32, i32, i32
  }
}

</mosaic_0001>

<llo_original>
// kernel: tpu_custom_call.1
$region0: #{tpu_custom_call.1}
  #allocation0 [shape = 'u32[]', space=smem, size = 0x4, offset = 0x4, fixed_abs, tag = 'smem constant byte address 0x4 - core index']
  #allocation1 [shape = 'u32[144,128]{1,0:T(1,128)}', space=vmem, size = 0x12000, scoped, tag = 'internal scratch']
  %s0 = inlined_call_operand.vmem [shape: f32[1,64,8], index: 0, kind: input, shape index: {}]
  %s1 = inlined_call_operand.vmem [shape: f32[16,3], index: 1, kind: input, shape index: {}]
  %s2 = inlined_call_operand.vmem [shape: f32[16,1], index: 2, kind: input, shape index: {}]
  %s3 = inlined_call_operand.vmem [shape: bf16[32,48], index: 3, kind: input, shape index: {}]
  %s4 = inlined_call_operand.vmem [shape: f32[32,1], index: 4, kind: input, shape index: {}]
  %s5 = inlined_call_operand.vmem [shape: bf16[64,512], index: 5, kind: input, shape index: {}]
  %s6 = inlined_call_operand.vmem [shape: f32[64,1], index: 6, kind: input, shape index: {}]
  %s7 = inlined_call_operand.vmem [shape: bf16[10,64], index: 7, kind: input, shape index: {}]
  %s8 = inlined_call_operand.vmem [shape: f32[10,1], index: 8, kind: input, shape index: {}]
  %s9 = inlined_call_operand.vmem [shape: f32[1,10,8], index: 9, kind: output, shape index: {}]
  %s10 = sld [smem:[#allocation0]]
  $region46: #{tpu_custom_call.1} parent=0
    _
  %s12 = ssub.s32 1, %s10
  %s13 = scalar_select 0, %s12, %s10
  // Predicated region
  $region2: #{tpu_custom_call.1} parent=0 // pred_check
    _
  $region3: #{tpu_custom_call.1} parent=0 // pred_check_branch
    %15 = sbr.rel (0) target = $region5
  $region4: #{tpu_custom_call.1} parent=0 // pred_region
    _
  $region5: #{tpu_custom_call.1} parent=0 // pred_fallthru
    _
  // Predicated region
  $region6: #{tpu_custom_call.1} parent=0 // pred_check
    _
  $region7: #{tpu_custom_call.1} parent=0 // pred_check_branch
    %17 = sbr.rel (0) target = $region9
  $region8: #{tpu_custom_call.1} parent=0 // pred_region
    _
  $region9: #{tpu_custom_call.1} parent=0 // pred_fallthru
    _
  // Predicated region
  $region10: #{tpu_custom_call.1} parent=0 // pred_check
    _
  $region11: #{tpu_custom_call.1} parent=0 // pred_check_branch
    %19 = sbr.rel (0) target = $region13
  $region12: #{tpu_custom_call.1} parent=0 // pred_region
    _
  $region13: #{tpu_custom_call.1} parent=0 // pred_fallthru
    _
  // Predicated region
  $region14: #{tpu_custom_call.1} parent=0 // pred_check
    _
  $region15: #{tpu_custom_call.1} parent=0 // pred_check_branch
    %21 = sbr.rel (0) target = $region17
  $region16: #{tpu_custom_call.1} parent=0 // pred_region
    _
  $region17: #{tpu_custom_call.1} parent=0 // pred_fallthru
    _
  // Predicated region
  $region18: #{tpu_custom_call.1} parent=0 // pred_check
    _
  $region19: #{tpu_custom_call.1} parent=0 // pred_check_branch
    %23 = sbr.rel (0) target = $region21
  $region20: #{tpu_custom_call.1} parent=0 // pred_region
    _
  $region21: #{tpu_custom_call.1} parent=0 // pred_fallthru
    _
  // Predicated region
  $region22: #{tpu_custom_call.1} parent=0 // pred_check
    _
  $region23: #{tpu_custom_call.1} parent=0 // pred_check_branch
    %25 = sbr.rel (0) target = $region25
  $region24: #{tpu_custom_call.1} parent=0 // pred_region
    _
  $region25: #{tpu_custom_call.1} parent=0 // pred_fallthru
    _
  // Predicated region
  $region26: #{tpu_custom_call.1} parent=0 // pred_check
    _
  $region27: #{tpu_custom_call.1} parent=0 // pred_check_branch
    %27 = sbr.rel (0) target = $region29
  $region28: #{tpu_custom_call.1} parent=0 // pred_region
    _
  $region29: #{tpu_custom_call.1} parent=0 // pred_fallthru
    _
  // Predicated region
  $region30: #{tpu_custom_call.1} parent=0 // pred_check
    _
  $region31: #{tpu_custom_call.1} parent=0 // pred_check_branch
    %29 = sbr.rel (0) target = $region33
  $region32: #{tpu_custom_call.1} parent=0 // pred_region
    _
  $region33: #{tpu_custom_call.1} parent=0 // pred_fallthru
    _
  // Predicated region
  $region34: #{tpu_custom_call.1} parent=0 // pred_check
    _
  $region35: #{tpu_custom_call.1} parent=0 // pred_check_branch
    %31 = sbr.rel (0) target = $region37
  $region36: #{tpu_custom_call.1} parent=0 // pred_region
    _
  $region37: #{tpu_custom_call.1} parent=0 // pred_fallthru
    _
  %v33 = vld [vmem:[%s0] sm:$0xff]
  %v34 = vld [vmem:[%s0 + $0x8] sm:$0xff]
  %v35 = vld [vmem:[%s0 + $0x10] sm:$0xff]
  %v36 = vld [vmem:[%s0 + $0x18] sm:$0xff]
  %v37 = vld [vmem:[%s0 + $0x20] sm:$0xff]
  %v38 = vld [vmem:[%s0 + $0x28] sm:$0xff]
  %v39 = vld [vmem:[%s0 + $0x30] sm:$0xff]
  %v40 = vld [vmem:[%s0 + $0x38] sm:$0xff]
  %v41 = vcombine.high %v33, 0.0
  %v43 = vunpack.c.l.s4 1983009808
  %v44 = vunpack.c.0.s8 %v43
  %v45 = vlaneseq
  %v46 = vshrl.u32 %v45, 7
  %v47 = vsub.s32 %v44, %v46
  %v48 = vrot.slane %v33, %v47
  %v50 = vunpack.c.l.s4 1983009808
  %v51 = vunpack.c.0.s8 %v50
  %v52 = vlaneseq
  %v53 = vshrl.u32 %v52, 7
  %v54 = vsub.s32 %v51, %v53
  %v55 = vrot.slane %v41, %v54
  %v56 = vcombine.high %v48, 0.0
  %v58 = vunpack.c.l.s4 1934713408
  %v59 = vunpack.c.0.s8 %v58
  %v60 = vlaneseq
  %v61 = vshrl.u32 %v60, 7
  %v62 = vsub.s32 %v59, %v61
  %v63 = vrot.slane %v48, %v62
  %v65 = vunpack.c.l.s4 1934713408
  %v66 = vunpack.c.0.s8 %v65
  %v67 = vlaneseq
  %v68 = vshrl.u32 %v67, 7
  %v69 = vsub.s32 %v66, %v68
  %v70 = vrot.slane %v56, %v69
  %v71 = vcombine.high %v55, 0.0
  %v73 = vunpack.c.l.s4 1934713408
  %v74 = vunpack.c.0.s8 %v73
  %v75 = vlaneseq
  %v76 = vshrl.u32 %v75, 7
  %v77 = vsub.s32 %v74, %v76
  %v78 = vrot.slane %v55, %v77
  %v80 = vunpack.c.l.s4 1934713408
  %v81 = vunpack.c.0.s8 %v80
  %v82 = vlaneseq
  %v83 = vshrl.u32 %v82, 7
  %v84 = vsub.s32 %v81, %v83
  %v85 = vrot.slane %v71, %v84
  %v86 = vcombine.high %v63, 0.0
  %v87 = vcombine.high %v70, 0.0
  %v88 = vcombine.high %v78, 0.0
  %v89 = vcombine.high %v85, 0.0
  %v90 = vcombine.high %v34, 0.0
  %v92 = vunpack.c.l.s4 1983009808
  %v93 = vunpack.c.0.s8 %v92
  %v94 = vlaneseq
  %v95 = vshrl.u32 %v94, 7
  %v96 = vsub.s32 %v93, %v95
  %v97 = vrot.slane %v34, %v96
  %v99 = vunpack.c.l.s4 1983009808
  %v100 = vunpack.c.0.s8 %v99
  %v101 = vlaneseq
  %v102 = vshrl.u32 %v101, 7
  %v103 = vsub.s32 %v100, %v102
  %v104 = vrot.slane %v90, %v103
  %v105 = vcombine.high %v97, 0.0
  %v107 = vunpack.c.l.s4 1934713408
  %v108 = vunpack.c.0.s8 %v107
  %v109 = vlaneseq
  %v110 = vshrl.u32 %v109, 7
  %v111 = vsub.s32 %v108, %v110
  %v112 = vrot.slane %v97, %v111
  %v114 = vunpack.c.l.s4 1934713408
  %v115 = vunpack.c.0.s8 %v114
  %v116 = vlaneseq
  %v117 = vshrl.u32 %v116, 7
  %v118 = vsub.s32 %v115, %v117
  %v119 = vrot.slane %v105, %v118
  %v120 = vcombine.high %v104, 0.0
  %v122 = vunpack.c.l.s4 1934713408
  %v123 = vunpack.c.0.s8 %v122
  %v124 = vlaneseq
  %v125 = vshrl.u32 %v124, 7
  %v126 = vsub.s32 %v123, %v125
  %v127 = vrot.slane %v104, %v126
  %v129 = vunpack.c.l.s4 1934713408
  %v130 = vunpack.c.0.s8 %v129
  %v131 = vlaneseq
  %v132 = vshrl.u32 %v131, 7
  %v133 = vsub.s32 %v130, %v132
  %v134 = vrot.slane %v120, %v133
  %v135 = vcombine.high %v112, 0.0
  %v136 = vcombine.high %v119, 0.0
  %v137 = vcombine.high %v127, 0.0
  %v138 = vcombine.high %v134, 0.0
  %v139 = vcombine.high %v35, 0.0
  %v141 = vunpack.c.l.s4 1983009808
  %v142 = vunpack.c.0.s8 %v141
  %v143 = vlaneseq
  %v144 = vshrl.u32 %v143, 7
  %v145 = vsub.s32 %v142, %v144
  %v146 = vrot.slane %v35, %v145
  %v148 = vunpack.c.l.s4 1983009808
  %v149 = vunpack.c.0.s8 %v148
  %v150 = vlaneseq
  %v151 = vshrl.u32 %v150, 7
  %v152 = vsub.s32 %v149, %v151
  %v153 = vrot.slane %v139, %v152
  %v154 = vcombine.high %v146, 0.0
  %v156 = vunpack.c.l.s4 1934713408
  %v157 = vunpack.c.0.s8 %v156
  %v158 = vlaneseq
  %v159 = vshrl.u32 %v158, 7
  %v160 = vsub.s32 %v157, %v159
  %v161 = vrot.slane %v146, %v160
  %v163 = vunpack.c.l.s4 1934713408
  %v164 = vunpack.c.0.s8 %v163
  %v165 = vlaneseq
  %v166 = vshrl.u32 %v165, 7
  %v167 = vsub.s32 %v164, %v166
  %v168 = vrot.slane %v154, %v167
  %v169 = vcombine.high %v153, 0.0
  %v171 = vunpack.c.l.s4 1934713408
  %v172 = vunpack.c.0.s8 %v171
  %v173 = vlaneseq
  %v174 = vshrl.u32 %v173, 7
  %v175 = vsub.s32 %v172, %v174
  %v176 = vrot.slane %v153, %v175
  %v178 = vunpack.c.l.s4 1934713408
  %v179 = vunpack.c.0.s8 %v178
  %v180 = vlaneseq
  %v181 = vshrl.u32 %v180, 7
  %v182 = vsub.s32 %v179, %v181
  %v183 = vrot.slane %v169, %v182
  %v184 = vcombine.high %v161, 0.0
  %v185 = vcombine.high %v168, 0.0
  %v186 = vcombine.high %v176, 0.0
  %v187 = vcombine.high %v183, 0.0
  %v188 = vcombine.high %v36, 0.0
  %v190 = vunpack.c.l.s4 1983009808
  %v191 = vunpack.c.0.s8 %v190
  %v192 = vlaneseq
  %v193 = vshrl.u32 %v192, 7
  %v194 = vsub.s32 %v191, %v193
  %v195 = vrot.slane %v36, %v194
  %v197 = vunpack.c.l.s4 1983009808
  %v198 = vunpack.c.0.s8 %v197
  %v199 = vlaneseq
  %v200 = vshrl.u32 %v199, 7
  %v201 = vsub.s32 %v198, %v200
  %v202 = vrot.slane %v188, %v201
  %v203 = vcombine.high %v195, 0.0
  %v205 = vunpack.c.l.s4 1934713408
  %v206 = vunpack.c.0.s8 %v205
  %v207 = vlaneseq
  %v208 = vshrl.u32 %v207, 7
  %v209 = vsub.s32 %v206, %v208
  %v210 = vrot.slane %v195, %v209
  %v212 = vunpack.c.l.s4 1934713408
  %v213 = vunpack.c.0.s8 %v212
  %v214 = vlaneseq
  %v215 = vshrl.u32 %v214, 7
  %v216 = vsub.s32 %v213, %v215
  %v217 = vrot.slane %v203, %v216
  %v218 = vcombine.high %v202, 0.0
  %v220 = vunpack.c.l.s4 1934713408
  %v221 = vunpack.c.0.s8 %v220
  %v222 = vlaneseq
  %v223 = vshrl.u32 %v222, 7
  %v224 = vsub.s32 %v221, %v223
  %v225 = vrot.slane %v202, %v224
  %v227 = vunpack.c.l.s4 1934713408
  %v228 = vunpack.c.0.s8 %v227
  %v229 = vlaneseq
  %v230 = vshrl.u32 %v229, 7
  %v231 = vsub.s32 %v228, %v230
  %v232 = vrot.slane %v218, %v231
  %v233 = vcombine.high %v210, 0.0
  %v234 = vcombine.high %v217, 0.0
  %v235 = vcombine.high %v225, 0.0
  %v236 = vcombine.high %v232, 0.0
  %v237 = vcombine.high %v37, 0.0
  %v239 = vunpack.c.l.s4 1983009808
  %v240 = vunpack.c.0.s8 %v239
  %v241 = vlaneseq
  %v242 = vshrl.u32 %v241, 7
  %v243 = vsub.s32 %v240, %v242
  %v244 = vrot.slane %v37, %v243
  %v246 = vunpack.c.l.s4 1983009808
  %v247 = vunpack.c.0.s8 %v246
  %v248 = vlaneseq
  %v249 = vshrl.u32 %v248, 7
  %v250 = vsub.s32 %v247, %v249
  %v251 = vrot.slane %v237, %v250
  %v252 = vcombine.high %v244, 0.0
  %v254 = vunpack.c.l.s4 1934713408
  %v255 = vunpack.c.0.s8 %v254
  %v256 = vlaneseq
  %v257 = vshrl.u32 %v256, 7
  %v258 = vsub.s32 %v255, %v257
  %v259 = vrot.slane %v244, %v258
  %v261 = vunpack.c.l.s4 1934713408
  %v262 = vunpack.c.0.s8 %v261
  %v263 = vlaneseq
  %v264 = vshrl.u32 %v263, 7
  %v265 = vsub.s32 %v262, %v264
  %v266 = vrot.slane %v252, %v265
  %v267 = vcombine.high %v251, 0.0
  %v269 = vunpack.c.l.s4 1934713408
  %v270 = vunpack.c.0.s8 %v269
  %v271 = vlaneseq
  %v272 = vshrl.u32 %v271, 7
  %v273 = vsub.s32 %v270, %v272
  %v274 = vrot.slane %v251, %v273
  %v276 = vunpack.c.l.s4 1934713408
  %v277 = vunpack.c.0.s8 %v276
  %v278 = vlaneseq
  %v279 = vshrl.u32 %v278, 7
  %v280 = vsub.s32 %v277, %v279
  %v281 = vrot.slane %v267, %v280
  %v282 = vcombine.high %v259, 0.0
  %v283 = vcombine.high %v266, 0.0
  %v284 = vcombine.high %v274, 0.0
  %v285 = vcombine.high %v281, 0.0
  %v286 = vcombine.high %v38, 0.0
  %v288 = vunpack.c.l.s4 1983009808
  %v289 = vunpack.c.0.s8 %v288
  %v290 = vlaneseq
  %v291 = vshrl.u32 %v290, 7
  %v292 = vsub.s32 %v289, %v291
  %v293 = vrot.slane %v38, %v292
  %v295 = vunpack.c.l.s4 1983009808
  %v296 = vunpack.c.0.s8 %v295
  %v297 = vlaneseq
  %v298 = vshrl.u32 %v297, 7
  %v299 = vsub.s32 %v296, %v298
  %v300 = vrot.slane %v286, %v299
  %v301 = vcombine.high %v293, 0.0
  %v303 = vunpack.c.l.s4 1934713408
  %v304 = vunpack.c.0.s8 %v303
  %v305 = vlaneseq
  %v306 = vshrl.u32 %v305, 7
  %v307 = vsub.s32 %v304, %v306
  %v308 = vrot.slane %v293, %v307
  %v310 = vunpack.c.l.s4 1934713408
  %v311 = vunpack.c.0.s8 %v310
  %v312 = vlaneseq
  %v313 = vshrl.u32 %v312, 7
  %v314 = vsub.s32 %v311, %v313
  %v315 = vrot.slane %v301, %v314
  %v316 = vcombine.high %v300, 0.0
  %v318 = vunpack.c.l.s4 1934713408
  %v319 = vunpack.c.0.s8 %v318
  %v320 = vlaneseq
  %v321 = vshrl.u32 %v320, 7
  %v322 = vsub.s32 %v319, %v321
  %v323 = vrot.slane %v300, %v322
  %v325 = vunpack.c.l.s4 1934713408
  %v326 = vunpack.c.0.s8 %v325
  %v327 = vlaneseq
  %v328 = vshrl.u32 %v327, 7
  %v329 = vsub.s32 %v326, %v328
  %v330 = vrot.slane %v316, %v329
  %v331 = vcombine.high %v308, 0.0
  %v332 = vcombine.high %v315, 0.0
  %v333 = vcombine.high %v323, 0.0
  %v334 = vcombine.high %v330, 0.0
  %v335 = vcombine.high %v39, 0.0
  %v337 = vunpack.c.l.s4 1983009808
  %v338 = vunpack.c.0.s8 %v337
  %v339 = vlaneseq
  %v340 = vshrl.u32 %v339, 7
  %v341 = vsub.s32 %v338, %v340
  %v342 = vrot.slane %v39, %v341
  %v344 = vunpack.c.l.s4 1983009808
  %v345 = vunpack.c.0.s8 %v344
  %v346 = vlaneseq
  %v347 = vshrl.u32 %v346, 7
  %v348 = vsub.s32 %v345, %v347
  %v349 = vrot.slane %v335, %v348
  %v350 = vcombine.high %v342, 0.0
  %v352 = vunpack.c.l.s4 1934713408
  %v353 = vunpack.c.0.s8 %v352
  %v354 = vlaneseq
  %v355 = vshrl.u32 %v354, 7
  %v356 = vsub.s32 %v353, %v355
  %v357 = vrot.slane %v342, %v356
  %v359 = vunpack.c.l.s4 1934713408
  %v360 = vunpack.c.0.s8 %v359
  %v361 = vlaneseq
  %v362 = vshrl.u32 %v361, 7
  %v363 = vsub.s32 %v360, %v362
  %v364 = vrot.slane %v350, %v363
  %v365 = vcombine.high %v349, 0.0
  %v367 = vunpack.c.l.s4 1934713408
  %v368 = vunpack.c.0.s8 %v367
  %v369 = vlaneseq
  %v370 = vshrl.u32 %v369, 7
  %v371 = vsub.s32 %v368, %v370
  %v372 = vrot.slane %v349, %v371
  %v374 = vunpack.c.l.s4 1934713408
  %v375 = vunpack.c.0.s8 %v374
  %v376 = vlaneseq
  %v377 = vshrl.u32 %v376, 7
  %v378 = vsub.s32 %v375, %v377
  %v379 = vrot.slane %v365, %v378
  %v380 = vcombine.high %v357, 0.0
  %v381 = vcombine.high %v364, 0.0
  %v382 = vcombine.high %v372, 0.0
  %v383 = vcombine.high %v379, 0.0
  %v384 = vcombine.high %v40, 0.0
  %v386 = vunpack.c.l.s4 1983009808
  %v387 = vunpack.c.0.s8 %v386
  %v388 = vlaneseq
  %v389 = vshrl.u32 %v388, 7
  %v390 = vsub.s32 %v387, %v389
  %v391 = vrot.slane %v40, %v390
  %v393 = vunpack.c.l.s4 1983009808
  %v394 = vunpack.c.0.s8 %v393
  %v395 = vlaneseq
  %v396 = vshrl.u32 %v395, 7
  %v397 = vsub.s32 %v394, %v396
  %v398 = vrot.slane %v384, %v397
  %v399 = vcombine.high %v391, 0.0
  %v401 = vunpack.c.l.s4 1934713408
  %v402 = vunpack.c.0.s8 %v401
  %v403 = vlaneseq
  %v404 = vshrl.u32 %v403, 7
  %v405 = vsub.s32 %v402, %v404
  %v406 = vrot.slane %v391, %v405
  %v408 = vunpack.c.l.s4 1934713408
  %v409 = vunpack.c.0.s8 %v408
  %v410 = vlaneseq
  %v411 = vshrl.u32 %v410, 7
  %v412 = vsub.s32 %v409, %v411
  %v413 = vrot.slane %v399, %v412
  %v414 = vcombine.high %v398, 0.0
  %v416 = vunpack.c.l.s4 1934713408
  %v417 = vunpack.c.0.s8 %v416
  %v418 = vlaneseq
  %v419 = vshrl.u32 %v418, 7
  %v420 = vsub.s32 %v417, %v419
  %v421 = vrot.slane %v398, %v420
  %v423 = vunpack.c.l.s4 1934713408
  %v424 = vunpack.c.0.s8 %v423
  %v425 = vlaneseq
  %v426 = vshrl.u32 %v425, 7
  %v427 = vsub.s32 %v424, %v426
  %v428 = vrot.slane %v414, %v427
  %v429 = vcombine.high %v406, 0.0
  %v430 = vcombine.high %v413, 0.0
  %v431 = vcombine.high %v421, 0.0
  %v432 = vcombine.high %v428, 0.0
  %434 = vrot.lane.b32.xlu0 %v86, 8
  %v435 = vpop.permute.xlu0 %434
  %438 = vrot.lane.b32.xlu0 %v70, 16
  %v439 = vpop.permute.xlu0 %438
  %442 = vrot.lane.b32.xlu0 %v87, 24
  %v443 = vpop.permute.xlu0 %442
  %446 = vrot.lane.b32.xlu0 %v78, 32
  %v447 = vpop.permute.xlu0 %446
  %450 = vrot.lane.b32.xlu0 %v88, 40
  %v451 = vpop.permute.xlu0 %450
  %454 = vrot.lane.b32.xlu0 %v85, 48
  %v455 = vpop.permute.xlu0 %454
  %458 = vrot.lane.b32.xlu0 %v89, 56
  %v459 = vpop.permute.xlu0 %458
  %462 = vrot.lane.b32.xlu0 %v112, 64
  %v463 = vpop.permute.xlu0 %462
  %466 = vrot.lane.b32.xlu0 %v135, 72
  %v467 = vpop.permute.xlu0 %466
  %470 = vrot.lane.b32.xlu0 %v119, 80
  %v471 = vpop.permute.xlu0 %470
  %474 = vrot.lane.b32.xlu0 %v136, 88
  %v475 = vpop.permute.xlu0 %474
  %478 = vrot.lane.b32.xlu0 %v127, 96
  %v479 = vpop.permute.xlu0 %478
  %482 = vrot.lane.b32.xlu0 %v137, 104
  %v483 = vpop.permute.xlu0 %482
  %486 = vrot.lane.b32.xlu0 %v134, 112
  %v487 = vpop.permute.xlu0 %486
  %490 = vrot.lane.b32.xlu0 %v138, 120
  %v491 = vpop.permute.xlu0 %490
  %494 = vrot.lane.b32.xlu0 %v184, 8
  %v495 = vpop.permute.xlu0 %494
  %498 = vrot.lane.b32.xlu0 %v168, 16
  %v499 = vpop.permute.xlu0 %498
  %502 = vrot.lane.b32.xlu0 %v185, 24
  %v503 = vpop.permute.xlu0 %502
  %506 = vrot.lane.b32.xlu0 %v176, 32
  %v507 = vpop.permute.xlu0 %506
  %510 = vrot.lane.b32.xlu0 %v186, 40
  %v511 = vpop.permute.xlu0 %510
  %514 = vrot.lane.b32.xlu0 %v183, 48
  %v515 = vpop.permute.xlu0 %514
  %518 = vrot.lane.b32.xlu0 %v187, 56
  %v519 = vpop.permute.xlu0 %518
  %522 = vrot.lane.b32.xlu0 %v210, 64
  %v523 = vpop.permute.xlu0 %522
  %526 = vrot.lane.b32.xlu0 %v233, 72
  %v527 = vpop.permute.xlu0 %526
  %530 = vrot.lane.b32.xlu0 %v217, 80
  %v531 = vpop.permute.xlu0 %530
  %534 = vrot.lane.b32.xlu0 %v234, 88
  %v535 = vpop.permute.xlu0 %534
  %538 = vrot.lane.b32.xlu0 %v225, 96
  %v539 = vpop.permute.xlu0 %538
  %542 = vrot.lane.b32.xlu0 %v235, 104
  %v543 = vpop.permute.xlu0 %542
  %546 = vrot.lane.b32.xlu0 %v232, 112
  %v547 = vpop.permute.xlu0 %546
  %550 = vrot.lane.b32.xlu0 %v236, 120
  %v551 = vpop.permute.xlu0 %550
  %554 = vrot.lane.b32.xlu0 %v282, 8
  %v555 = vpop.permute.xlu0 %554
  %558 = vrot.lane.b32.xlu0 %v266, 16
  %v559 = vpop.permute.xlu0 %558
  %562 = vrot.lane.b32.xlu0 %v283, 24
  %v563 = vpop.permute.xlu0 %562
  %566 = vrot.lane.b32.xlu0 %v274, 32
  %v567 = vpop.permute.xlu0 %566
  %570 = vrot.lane.b32.xlu0 %v284, 40
  %v571 = vpop.permute.xlu0 %570
  %574 = vrot.lane.b32.xlu0 %v281, 48
  %v575 = vpop.permute.xlu0 %574
  %578 = vrot.lane.b32.xlu0 %v285, 56
  %v579 = vpop.permute.xlu0 %578
  %582 = vrot.lane.b32.xlu0 %v308, 64
  %v583 = vpop.permute.xlu0 %582
  %586 = vrot.lane.b32.xlu0 %v331, 72
  %v587 = vpop.permute.xlu0 %586
  %590 = vrot.lane.b32.xlu0 %v315, 80
  %v591 = vpop.permute.xlu0 %590
  %594 = vrot.lane.b32.xlu0 %v332, 88
  %v595 = vpop.permute.xlu0 %594
  %598 = vrot.lane.b32.xlu0 %v323, 96
  %v599 = vpop.permute.xlu0 %598
  %602 = vrot.lane.b32.xlu0 %v333, 104
  %v603 = vpop.permute.xlu0 %602
  %606 = vrot.lane.b32.xlu0 %v330, 112
  %v607 = vpop.permute.xlu0 %606
  %610 = vrot.lane.b32.xlu0 %v334, 120
  %v611 = vpop.permute.xlu0 %610
  %614 = vrot.lane.b32.xlu0 %v380, 8
  %v615 = vpop.permute.xlu0 %614
  %618 = vrot.lane.b32.xlu0 %v364, 16
  %v619 = vpop.permute.xlu0 %618
  %622 = vrot.lane.b32.xlu0 %v381, 24
  %v623 = vpop.permute.xlu0 %622
  %626 = vrot.lane.b32.xlu0 %v372, 32
  %v627 = vpop.permute.xlu0 %626
  %630 = vrot.lane.b32.xlu0 %v382, 40
  %v631 = vpop.permute.xlu0 %630
  %634 = vrot.lane.b32.xlu0 %v379, 48
  %v635 = vpop.permute.xlu0 %634
  %638 = vrot.lane.b32.xlu0 %v383, 56
  %v639 = vpop.permute.xlu0 %638
  %642 = vrot.lane.b32.xlu0 %v406, 64
  %v643 = vpop.permute.xlu0 %642
  %646 = vrot.lane.b32.xlu0 %v429, 72
  %v647 = vpop.permute.xlu0 %646
  %650 = vrot.lane.b32.xlu0 %v413, 80
  %v651 = vpop.permute.xlu0 %650
  %654 = vrot.lane.b32.xlu0 %v430, 88
  %v655 = vpop.permute.xlu0 %654
  %658 = vrot.lane.b32.xlu0 %v421, 96
  %v659 = vpop.permute.xlu0 %658
  %662 = vrot.lane.b32.xlu0 %v431, 104
  %v663 = vpop.permute.xlu0 %662
  %666 = vrot.lane.b32.xlu0 %v428, 112
  %v667 = vpop.permute.xlu0 %666
  %670 = vrot.lane.b32.xlu0 %v432, 120
  %v671 = vpop.permute.xlu0 %670
  %vm673 = vcmask 64512
  %v674 = vsel %vm673, %v63, %v435
  %vm675 = vcmask 130048
  %v676 = vsel %vm675, %v674, %v439
  %vm677 = vcmask 195584
  %v678 = vsel %vm677, %v676, %v443
  %vm679 = vcmask 261120
  %v680 = vsel %vm679, %v678, %v447
  %vm681 = vcmask 326656
  %v682 = vsel %vm681, %v680, %v451
  %vm683 = vcmask 392192
  %v684 = vsel %vm683, %v682, %v455
  %vm685 = vcmask 457728
  %v686 = vsel %vm685, %v684, %v459
  %vm687 = vcmask 523264
  %v688 = vsel %vm687, %v686, %v463
  %vm689 = vcmask 588800
  %v690 = vsel %vm689, %v688, %v467
  %vm691 = vcmask 654336
  %v692 = vsel %vm691, %v690, %v471
  %vm693 = vcmask 719872
  %v694 = vsel %vm693, %v692, %v475
  %vm695 = vcmask 785408
  %v696 = vsel %vm695, %v694, %v479
  %vm697 = vcmask 850944
  %v698 = vsel %vm697, %v696, %v483
  %vm699 = vcmask 916480
  %v700 = vsel %vm699, %v698, %v487
  %vm701 = vcmask 982016
  %v702 = vsel %vm701, %v700, %v491
  %v703 = vsel %vm673, %v161, %v495
  %v704 = vsel %vm675, %v703, %v499
  %v705 = vsel %vm677, %v704, %v503
  %v706 = vsel %vm679, %v705, %v507
  %v707 = vsel %vm681, %v706, %v511
  %v708 = vsel %vm683, %v707, %v515
  %v709 = vsel %vm685, %v708, %v519
  %v710 = vsel %vm687, %v709, %v523
  %v711 = vsel %vm689, %v710, %v527
  %v712 = vsel %vm691, %v711, %v531
  %v713 = vsel %vm693, %v712, %v535
  %v714 = vsel %vm695, %v713, %v539
  %v715 = vsel %vm697, %v714, %v543
  %v716 = vsel %vm699, %v715, %v547
  %v717 = vsel %vm701, %v716, %v551
  %v718 = vsel %vm673, %v259, %v555
  %v719 = vsel %vm675, %v718, %v559
  %v720 = vsel %vm677, %v719, %v563
  %v721 = vsel %vm679, %v720, %v567
  %v722 = vsel %vm681, %v721, %v571
  %v723 = vsel %vm683, %v722, %v575
  %v724 = vsel %vm685, %v723, %v579
  %v725 = vsel %vm687, %v724, %v583
  %v726 = vsel %vm689, %v725, %v587
  %v727 = vsel %vm691, %v726, %v591
  %v728 = vsel %vm693, %v727, %v595
  %v729 = vsel %vm695, %v728, %v599
  %v730 = vsel %vm697, %v729, %v603
  %v731 = vsel %vm699, %v730, %v607
  %v732 = vsel %vm701, %v731, %v611
  %v733 = vsel %vm673, %v357, %v615
  %v734 = vsel %vm675, %v733, %v619
  %v735 = vsel %vm677, %v734, %v623
  %v736 = vsel %vm679, %v735, %v627
  %v737 = vsel %vm681, %v736, %v631
  %v738 = vsel %vm683, %v737, %v635
  %v739 = vsel %vm685, %v738, %v639
  %v740 = vsel %vm687, %v739, %v643
  %v741 = vsel %vm689, %v740, %v647
  %v742 = vsel %vm691, %v741, %v651
  %v743 = vsel %vm693, %v742, %v655
  %v744 = vsel %vm695, %v743, %v659
  %v745 = vsel %vm697, %v744, %v663
  %v746 = vsel %vm699, %v745, %v667
  %v747 = vsel %vm701, %v746, %v671
  %v748 = vld [vmem:[%s1] sm:$0xff]
  %v749 = vld [vmem:[%s1 + $0x8] sm:$0xff]
  %v750 = vld [vmem:[%s2] sm:$0xff]
  %v751 = vld [vmem:[%s2 + $0x8] sm:$0xff]
  %753 = vset.pattern.permute.xlu0 0
  %754 = vperm.xlu0 %753, %v750
  %v755 = vpop.permute.xlu0 %754
  %758 = vset.pattern.permute.xlu0 0
  %759 = vperm.xlu0 %758, %v751
  %v760 = vpop.permute.xlu0 %759
  %763 = vset.pattern.permute.xlu0 0
  %764 = vperm.xlu0 %763, %v748
  %v765 = vpop.permute.xlu0 %764
  %768 = vset.pattern.permute.xlu0 0
  %769 = vperm.xlu0 %768, %v749
  %v770 = vpop.permute.xlu0 %769
  %v772 = vlaneseq
  %v773 = vshrl.u32 %v772, 7
  %v774 = vsub.s32 0, %v773
  %v775 = vrot.slane %v702, %v774
  %v776 = vlaneseq
  %v777 = vshrl.u32 %v776, 7
  %v778 = vsub.s32 0, %v777
  %v779 = vrot.slane %v717, %v778
  %v780 = vlaneseq
  %v781 = vshrl.u32 %v780, 7
  %v782 = vsub.s32 0, %v781
  %v783 = vrot.slane %v732, %v782
  %v784 = vlaneseq
  %v785 = vshrl.u32 %v784, 7
  %v786 = vsub.s32 0, %v785
  %v787 = vrot.slane %v747, %v786
  %v788 = vmul.f32 %v765, %v775
  %v789 = vmul.f32 %v765, %v779
  %v790 = vmul.f32 %v765, %v783
  %v791 = vmul.f32 %v765, %v787
  %v792 = vmul.f32 %v770, %v775
  %v793 = vmul.f32 %v770, %v779
  %v794 = vmul.f32 %v770, %v783
  %v795 = vmul.f32 %v770, %v787
  %v796 = vadd.f32 %v755, %v788
  %v797 = vadd.f32 %v755, %v789
  %v798 = vadd.f32 %v755, %v790
  %v799 = vadd.f32 %v755, %v791
  %v800 = vadd.f32 %v760, %v792
  %v801 = vadd.f32 %v760, %v793
  %v802 = vadd.f32 %v760, %v794
  %v803 = vadd.f32 %v760, %v795
  %804 = vset.pattern.permute.xlu0 1
  %805 = vperm.xlu0 %804, %v748
  %v806 = vpop.permute.xlu0 %805
  %808 = vset.pattern.permute.xlu0 1
  %809 = vperm.xlu0 %808, %v749
  %v810 = vpop.permute.xlu0 %809
  %v812 = vmul.f32 %v806, %v775
  %v813 = vmul.f32 %v806, %v779
  %v814 = vmul.f32 %v806, %v783
  %v815 = vmul.f32 %v806, %v787
  %v816 = vmul.f32 %v810, %v775
  %v817 = vmul.f32 %v810, %v779
  %v818 = vmul.f32 %v810, %v783
  %v819 = vmul.f32 %v810, %v787
  %828 = vrot.lane.b32.xlu0 %v812, 120
  %v829 = vpop.permute.xlu0 %828
  %830 = vrot.lane.b32.xlu0 %v813, 120
  %v831 = vpop.permute.xlu0 %830
  %832 = vrot.lane.b32.xlu0 %v814, 120
  %v833 = vpop.permute.xlu0 %832
  %834 = vrot.lane.b32.xlu0 %v815, 120
  %v835 = vpop.permute.xlu0 %834
  %836 = vrot.lane.b32.xlu0 %v816, 120
  %v837 = vpop.permute.xlu0 %836
  %838 = vrot.lane.b32.xlu0 %v817, 120
  %v839 = vpop.permute.xlu0 %838
  %840 = vrot.lane.b32.xlu0 %v818, 120
  %v841 = vpop.permute.xlu0 %840
  %842 = vrot.lane.b32.xlu0 %v819, 120
  %v843 = vpop.permute.xlu0 %842
  %v844 = vsel %vm701, %v829, %v831
  %v845 = vsel %vm701, %v831, %v833
  %v846 = vsel %vm701, %v833, %v835
  %v847 = vsel %vm701, %v837, %v839
  %v848 = vsel %vm701, %v839, %v841
  %v849 = vsel %vm701, %v841, %v843
  %v858 = vadd.f32 %v796, %v844
  %v859 = vadd.f32 %v797, %v845
  %v860 = vadd.f32 %v798, %v846
  %v861 = vadd.f32 %v799, %v835
  %v862 = vadd.f32 %v800, %v847
  %v863 = vadd.f32 %v801, %v848
  %v864 = vadd.f32 %v802, %v849
  %v865 = vadd.f32 %v803, %v843
  %866 = vset.pattern.permute.xlu0 2
  %867 = vperm.xlu0 %866, %v748
  %v868 = vpop.permute.xlu0 %867
  %870 = vset.pattern.permute.xlu0 2
  %871 = vperm.xlu0 %870, %v749
  %v872 = vpop.permute.xlu0 %871
  %v874 = vmul.f32 %v868, %v775
  %v875 = vmul.f32 %v868, %v779
  %v876 = vmul.f32 %v868, %v783
  %v877 = vmul.f32 %v868, %v787
  %v878 = vmul.f32 %v872, %v775
  %v879 = vmul.f32 %v872, %v779
  %v880 = vmul.f32 %v872, %v783
  %v881 = vmul.f32 %v872, %v787
  %890 = vrot.lane.b32.xlu0 %v874, 112
  %v891 = vpop.permute.xlu0 %890
  %892 = vrot.lane.b32.xlu0 %v875, 112
  %v893 = vpop.permute.xlu0 %892
  %894 = vrot.lane.b32.xlu0 %v876, 112
  %v895 = vpop.permute.xlu0 %894
  %896 = vrot.lane.b32.xlu0 %v877, 112
  %v897 = vpop.permute.xlu0 %896
  %898 = vrot.lane.b32.xlu0 %v878, 112
  %v899 = vpop.permute.xlu0 %898
  %900 = vrot.lane.b32.xlu0 %v879, 112
  %v901 = vpop.permute.xlu0 %900
  %902 = vrot.lane.b32.xlu0 %v880, 112
  %v903 = vpop.permute.xlu0 %902
  %904 = vrot.lane.b32.xlu0 %v881, 112
  %v905 = vpop.permute.xlu0 %904
  %v906 = vsel %vm699, %v891, %v893
  %v907 = vsel %vm699, %v893, %v895
  %v908 = vsel %vm699, %v895, %v897
  %v909 = vsel %vm699, %v899, %v901
  %v910 = vsel %vm699, %v901, %v903
  %v911 = vsel %vm699, %v903, %v905
  %v920 = vadd.f32 %v858, %v906
  %v921 = vadd.f32 %v859, %v907
  %v922 = vadd.f32 %v860, %v908
  %v923 = vadd.f32 %v861, %v897
  %v924 = vadd.f32 %v862, %v909
  %v925 = vadd.f32 %v863, %v910
  %v926 = vadd.f32 %v864, %v911
  %v927 = vadd.f32 %v865, %v905
  %v928 = vmax.f32 %v920, 0.0
  %v929 = vmax.f32 %v921, 0.0
  %v930 = vmax.f32 %v922, 0.0
  %v931 = vmax.f32 %v923, 0.0
  %v932 = vmax.f32 %v924, 0.0
  %v933 = vmax.f32 %v925, 0.0
  %v934 = vmax.f32 %v926, 0.0
  %v935 = vmax.f32 %v927, 0.0
  %938 = vrot.lane.b32.xlu0 %v928, 112
  %v939 = vpop.permute.xlu0 %938
  %940 = vrot.lane.b32.xlu0 %v932, 112
  %v941 = vpop.permute.xlu0 %940
  %944 = vrot.lane.b32.xlu0 %v928, 96
  %v945 = vpop.permute.xlu0 %944
  %946 = vrot.lane.b32.xlu0 %v932, 96
  %v947 = vpop.permute.xlu0 %946
  %950 = vrot.lane.b32.xlu0 %v928, 80
  %v951 = vpop.permute.xlu0 %950
  %952 = vrot.lane.b32.xlu0 %v932, 80
  %v953 = vpop.permute.xlu0 %952
  %956 = vrot.lane.b32.xlu0 %v928, 64
  %v957 = vpop.permute.xlu0 %956
  %958 = vrot.lane.b32.xlu0 %v932, 64
  %v959 = vpop.permute.xlu0 %958
  %962 = vrot.lane.b32.xlu0 %v928, 48
  %v963 = vpop.permute.xlu0 %962
  %964 = vrot.lane.b32.xlu0 %v932, 48
  %v965 = vpop.permute.xlu0 %964
  %968 = vrot.lane.b32.xlu0 %v928, 32
  %v969 = vpop.permute.xlu0 %968
  %970 = vrot.lane.b32.xlu0 %v932, 32
  %v971 = vpop.permute.xlu0 %970
  %974 = vrot.lane.b32.xlu0 %v928, 16
  %v975 = vpop.permute.xlu0 %974
  %976 = vrot.lane.b32.xlu0 %v932, 16
  %v977 = vpop.permute.xlu0 %976
  %982 = vrot.lane.b32.xlu0 %v929, 112
  %v983 = vpop.permute.xlu0 %982
  %984 = vrot.lane.b32.xlu0 %v933, 112
  %v985 = vpop.permute.xlu0 %984
  %988 = vrot.lane.b32.xlu0 %v929, 96
  %v989 = vpop.permute.xlu0 %988
  %990 = vrot.lane.b32.xlu0 %v933, 96
  %v991 = vpop.permute.xlu0 %990
  %994 = vrot.lane.b32.xlu0 %v929, 80
  %v995 = vpop.permute.xlu0 %994
  %996 = vrot.lane.b32.xlu0 %v933, 80
  %v997 = vpop.permute.xlu0 %996
  %1000 = vrot.lane.b32.xlu0 %v929, 64
  %v1001 = vpop.permute.xlu0 %1000
  %1002 = vrot.lane.b32.xlu0 %v933, 64
  %v1003 = vpop.permute.xlu0 %1002
  %1006 = vrot.lane.b32.xlu0 %v929, 48
  %v1007 = vpop.permute.xlu0 %1006
  %1008 = vrot.lane.b32.xlu0 %v933, 48
  %v1009 = vpop.permute.xlu0 %1008
  %1012 = vrot.lane.b32.xlu0 %v929, 32
  %v1013 = vpop.permute.xlu0 %1012
  %1014 = vrot.lane.b32.xlu0 %v933, 32
  %v1015 = vpop.permute.xlu0 %1014
  %1018 = vrot.lane.b32.xlu0 %v929, 16
  %v1019 = vpop.permute.xlu0 %1018
  %1020 = vrot.lane.b32.xlu0 %v933, 16
  %v1021 = vpop.permute.xlu0 %1020
  %1026 = vrot.lane.b32.xlu0 %v930, 112
  %v1027 = vpop.permute.xlu0 %1026
  %1028 = vrot.lane.b32.xlu0 %v934, 112
  %v1029 = vpop.permute.xlu0 %1028
  %1032 = vrot.lane.b32.xlu0 %v930, 96
  %v1033 = vpop.permute.xlu0 %1032
  %1034 = vrot.lane.b32.xlu0 %v934, 96
  %v1035 = vpop.permute.xlu0 %1034
  %1038 = vrot.lane.b32.xlu0 %v930, 80
  %v1039 = vpop.permute.xlu0 %1038
  %1040 = vrot.lane.b32.xlu0 %v934, 80
  %v1041 = vpop.permute.xlu0 %1040
  %1044 = vrot.lane.b32.xlu0 %v930, 64
  %v1045 = vpop.permute.xlu0 %1044
  %1046 = vrot.lane.b32.xlu0 %v934, 64
  %v1047 = vpop.permute.xlu0 %1046
  %1050 = vrot.lane.b32.xlu0 %v930, 48
  %v1051 = vpop.permute.xlu0 %1050
  %1052 = vrot.lane.b32.xlu0 %v934, 48
  %v1053 = vpop.permute.xlu0 %1052
  %1056 = vrot.lane.b32.xlu0 %v930, 32
  %v1057 = vpop.permute.xlu0 %1056
  %1058 = vrot.lane.b32.xlu0 %v934, 32
  %v1059 = vpop.permute.xlu0 %1058
  %1062 = vrot.lane.b32.xlu0 %v930, 16
  %v1063 = vpop.permute.xlu0 %1062
  %1064 = vrot.lane.b32.xlu0 %v934, 16
  %v1065 = vpop.permute.xlu0 %1064
  %1070 = vrot.lane.b32.xlu0 %v931, 112
  %v1071 = vpop.permute.xlu0 %1070
  %1072 = vrot.lane.b32.xlu0 %v935, 112
  %v1073 = vpop.permute.xlu0 %1072
  %1076 = vrot.lane.b32.xlu0 %v931, 96
  %v1077 = vpop.permute.xlu0 %1076
  %1078 = vrot.lane.b32.xlu0 %v935, 96
  %v1079 = vpop.permute.xlu0 %1078
  %1082 = vrot.lane.b32.xlu0 %v931, 80
  %v1083 = vpop.permute.xlu0 %1082
  %1084 = vrot.lane.b32.xlu0 %v935, 80
  %v1085 = vpop.permute.xlu0 %1084
  %1088 = vrot.lane.b32.xlu0 %v931, 64
  %v1089 = vpop.permute.xlu0 %1088
  %1090 = vrot.lane.b32.xlu0 %v935, 64
  %v1091 = vpop.permute.xlu0 %1090
  %1094 = vrot.lane.b32.xlu0 %v931, 48
  %v1095 = vpop.permute.xlu0 %1094
  %1096 = vrot.lane.b32.xlu0 %v935, 48
  %v1097 = vpop.permute.xlu0 %1096
  %1100 = vrot.lane.b32.xlu0 %v931, 32
  %v1101 = vpop.permute.xlu0 %1100
  %1102 = vrot.lane.b32.xlu0 %v935, 32
  %v1103 = vpop.permute.xlu0 %1102
  %v1106 = vcombine.low %v928, %v945
  %v1107 = vcombine.high %v928, %v945
  %v1109 = vunpack.c.l.s4 1983009808
  %v1110 = vunpack.c.0.s8 %v1109
  %v1111 = vlaneseq
  %v1112 = vshrl.u32 %v1111, 7
  %v1113 = vsub.s32 %v1110, %v1112
  %v1114 = vrot.slane %v1106, %v1113
  %v1116 = vunpack.c.l.s4 1983009808
  %v1117 = vunpack.c.0.s8 %v1116
  %v1118 = vlaneseq
  %v1119 = vshrl.u32 %v1118, 7
  %v1120 = vsub.s32 %v1117, %v1119
  %v1121 = vrot.slane %v1107, %v1120
  %v1122 = vcombine.low %v939, %v951
  %v1123 = vcombine.high %v939, %v951
  %v1125 = vunpack.c.l.s4 1983009808
  %v1126 = vunpack.c.0.s8 %v1125
  %v1127 = vlaneseq
  %v1128 = vshrl.u32 %v1127, 7
  %v1129 = vsub.s32 %v1126, %v1128
  %v1130 = vrot.slane %v1122, %v1129
  %v1132 = vunpack.c.l.s4 1983009808
  %v1133 = vunpack.c.0.s8 %v1132
  %v1134 = vlaneseq
  %v1135 = vshrl.u32 %v1134, 7
  %v1136 = vsub.s32 %v1133, %v1135
  %v1137 = vrot.slane %v1123, %v1136
  %v1138 = vcombine.low %v957, %v969
  %v1139 = vcombine.high %v957, %v969
  %v1141 = vunpack.c.l.s4 1983009808
  %v1142 = vunpack.c.0.s8 %v1141
  %v1143 = vlaneseq
  %v1144 = vshrl.u32 %v1143, 7
  %v1145 = vsub.s32 %v1142, %v1144
  %v1146 = vrot.slane %v1138, %v1145
  %v1148 = vunpack.c.l.s4 1983009808
  %v1149 = vunpack.c.0.s8 %v1148
  %v1150 = vlaneseq
  %v1151 = vshrl.u32 %v1150, 7
  %v1152 = vsub.s32 %v1149, %v1151
  %v1153 = vrot.slane %v1139, %v1152
  %v1154 = vcombine.low %v963, %v975
  %v1155 = vcombine.high %v963, %v975
  %v1157 = vunpack.c.l.s4 1983009808
  %v1158 = vunpack.c.0.s8 %v1157
  %v1159 = vlaneseq
  %v1160 = vshrl.u32 %v1159, 7
  %v1161 = vsub.s32 %v1158, %v1160
  %v1162 = vrot.slane %v1154, %v1161
  %v1164 = vunpack.c.l.s4 1983009808
  %v1165 = vunpack.c.0.s8 %v1164
  %v1166 = vlaneseq
  %v1167 = vshrl.u32 %v1166, 7
  %v1168 = vsub.s32 %v1165, %v1167
  %v1169 = vrot.slane %v1155, %v1168
  %v1170 = vcombine.low %v1114, %v1130
  %v1171 = vcombine.high %v1114, %v1130
  %v1173 = vunpack.c.l.s4 1934713408
  %v1174 = vunpack.c.0.s8 %v1173
  %v1175 = vlaneseq
  %v1176 = vshrl.u32 %v1175, 7
  %v1177 = vsub.s32 %v1174, %v1176
  %v1178 = vrot.slane %v1170, %v1177
  %v1180 = vunpack.c.l.s4 1934713408
  %v1181 = vunpack.c.0.s8 %v1180
  %v1182 = vlaneseq
  %v1183 = vshrl.u32 %v1182, 7
  %v1184 = vsub.s32 %v1181, %v1183
  %v1185 = vrot.slane %v1171, %v1184
  %v1186 = vcombine.low %v1121, %v1137
  %v1187 = vcombine.high %v1121, %v1137
  %v1189 = vunpack.c.l.s4 1934713408
  %v1190 = vunpack.c.0.s8 %v1189
  %v1191 = vlaneseq
  %v1192 = vshrl.u32 %v1191, 7
  %v1193 = vsub.s32 %v1190, %v1192
  %v1194 = vrot.slane %v1186, %v1193
  %v1196 = vunpack.c.l.s4 1934713408
  %v1197 = vunpack.c.0.s8 %v1196
  %v1198 = vlaneseq
  %v1199 = vshrl.u32 %v1198, 7
  %v1200 = vsub.s32 %v1197, %v1199
  %v1201 = vrot.slane %v1187, %v1200
  %v1202 = vcombine.low %v1146, %v1162
  %v1203 = vcombine.high %v1146, %v1162
  %v1205 = vunpack.c.l.s4 1934713408
  %v1206 = vunpack.c.0.s8 %v1205
  %v1207 = vlaneseq
  %v1208 = vshrl.u32 %v1207, 7
  %v1209 = vsub.s32 %v1206, %v1208
  %v1210 = vrot.slane %v1202, %v1209
  %v1212 = vunpack.c.l.s4 1934713408
  %v1213 = vunpack.c.0.s8 %v1212
  %v1214 = vlaneseq
  %v1215 = vshrl.u32 %v1214, 7
  %v1216 = vsub.s32 %v1213, %v1215
  %v1217 = vrot.slane %v1203, %v1216
  %v1218 = vcombine.low %v1153, %v1169
  %v1219 = vcombine.high %v1153, %v1169
  %v1221 = vunpack.c.l.s4 1934713408
  %v1222 = vunpack.c.0.s8 %v1221
  %v1223 = vlaneseq
  %v1224 = vshrl.u32 %v1223, 7
  %v1225 = vsub.s32 %v1222, %v1224
  %v1226 = vrot.slane %v1218, %v1225
  %v1228 = vunpack.c.l.s4 1934713408
  %v1229 = vunpack.c.0.s8 %v1228
  %v1230 = vlaneseq
  %v1231 = vshrl.u32 %v1230, 7
  %v1232 = vsub.s32 %v1229, %v1231
  %v1233 = vrot.slane %v1219, %v1232
  %v1234 = vcombine.low %v1178, %v1210
  %v1235 = vcombine.high %v1178, %v1210
  %v1236 = vcombine.low %v1185, %v1217
  %v1237 = vcombine.high %v1185, %v1217
  %v1238 = vcombine.low %v1194, %v1226
  %v1239 = vcombine.high %v1194, %v1226
  %v1240 = vcombine.low %v1201, %v1233
  %v1241 = vcombine.high %v1201, %v1233
  %v1242 = vcombine.low %v929, %v989
  %v1243 = vcombine.high %v929, %v989
  %v1245 = vunpack.c.l.s4 1983009808
  %v1246 = vunpack.c.0.s8 %v1245
  %v1247 = vlaneseq
  %v1248 = vshrl.u32 %v1247, 7
  %v1249 = vsub.s32 %v1246, %v1248
  %v1250 = vrot.slane %v1242, %v1249
  %v1252 = vunpack.c.l.s4 1983009808
  %v1253 = vunpack.c.0.s8 %v1252
  %v1254 = vlaneseq
  %v1255 = vshrl.u32 %v1254, 7
  %v1256 = vsub.s32 %v1253, %v1255
  %v1257 = vrot.slane %v1243, %v1256
  %v1258 = vcombine.low %v983, %v995
  %v1259 = vcombine.high %v983, %v995
  %v1261 = vunpack.c.l.s4 1983009808
  %v1262 = vunpack.c.0.s8 %v1261
  %v1263 = vlaneseq
  %v1264 = vshrl.u32 %v1263, 7
  %v1265 = vsub.s32 %v1262, %v1264
  %v1266 = vrot.slane %v1258, %v1265
  %v1268 = vunpack.c.l.s4 1983009808
  %v1269 = vunpack.c.0.s8 %v1268
  %v1270 = vlaneseq
  %v1271 = vshrl.u32 %v1270, 7
  %v1272 = vsub.s32 %v1269, %v1271
  %v1273 = vrot.slane %v1259, %v1272
  %v1274 = vcombine.low %v1001, %v1013
  %v1275 = vcombine.high %v1001, %v1013
  %v1277 = vunpack.c.l.s4 1983009808
  %v1278 = vunpack.c.0.s8 %v1277
  %v1279 = vlaneseq
  %v1280 = vshrl.u32 %v1279, 7
  %v1281 = vsub.s32 %v1278, %v1280
  %v1282 = vrot.slane %v1274, %v1281
  %v1284 = vunpack.c.l.s4 1983009808
  %v1285 = vunpack.c.0.s8 %v1284
  %v1286 = vlaneseq
  %v1287 = vshrl.u32 %v1286, 7
  %v1288 = vsub.s32 %v1285, %v1287
  %v1289 = vrot.slane %v1275, %v1288
  %v1290 = vcombine.low %v1007, %v1019
  %v1291 = vcombine.high %v1007, %v1019
  %v1293 = vunpack.c.l.s4 1983009808
  %v1294 = vunpack.c.0.s8 %v1293
  %v1295 = vlaneseq
  %v1296 = vshrl.u32 %v1295, 7
  %v1297 = vsub.s32 %v1294, %v1296
  %v1298 = vrot.slane %v1290, %v1297
  %v1300 = vunpack.c.l.s4 1983009808
  %v1301 = vunpack.c.0.s8 %v1300
  %v1302 = vlaneseq
  %v1303 = vshrl.u32 %v1302, 7
  %v1304 = vsub.s32 %v1301, %v1303
  %v1305 = vrot.slane %v1291, %v1304
  %v1306 = vcombine.low %v1250, %v1266
  %v1307 = vcombine.high %v1250, %v1266
  %v1309 = vunpack.c.l.s4 1934713408
  %v1310 = vunpack.c.0.s8 %v1309
  %v1311 = vlaneseq
  %v1312 = vshrl.u32 %v1311, 7
  %v1313 = vsub.s32 %v1310, %v1312
  %v1314 = vrot.slane %v1306, %v1313
  %v1316 = vunpack.c.l.s4 1934713408
  %v1317 = vunpack.c.0.s8 %v1316
  %v1318 = vlaneseq
  %v1319 = vshrl.u32 %v1318, 7
  %v1320 = vsub.s32 %v1317, %v1319
  %v1321 = vrot.slane %v1307, %v1320
  %v1322 = vcombine.low %v1257, %v1273
  %v1323 = vcombine.high %v1257, %v1273
  %v1325 = vunpack.c.l.s4 1934713408
  %v1326 = vunpack.c.0.s8 %v1325
  %v1327 = vlaneseq
  %v1328 = vshrl.u32 %v1327, 7
  %v1329 = vsub.s32 %v1326, %v1328
  %v1330 = vrot.slane %v1322, %v1329
  %v1332 = vunpack.c.l.s4 1934713408
  %v1333 = vunpack.c.0.s8 %v1332
  %v1334 = vlaneseq
  %v1335 = vshrl.u32 %v1334, 7
  %v1336 = vsub.s32 %v1333, %v1335
  %v1337 = vrot.slane %v1323, %v1336
  %v1338 = vcombine.low %v1282, %v1298
  %v1339 = vcombine.high %v1282, %v1298
  %v1341 = vunpack.c.l.s4 1934713408
  %v1342 = vunpack.c.0.s8 %v1341
  %v1343 = vlaneseq
  %v1344 = vshrl.u32 %v1343, 7
  %v1345 = vsub.s32 %v1342, %v1344
  %v1346 = vrot.slane %v1338, %v1345
  %v1348 = vunpack.c.l.s4 1934713408
  %v1349 = vunpack.c.0.s8 %v1348
  %v1350 = vlaneseq
  %v1351 = vshrl.u32 %v1350, 7
  %v1352 = vsub.s32 %v1349, %v1351
  %v1353 = vrot.slane %v1339, %v1352
  %v1354 = vcombine.low %v1289, %v1305
  %v1355 = vcombine.high %v1289, %v1305
  %v1357 = vunpack.c.l.s4 1934713408
  %v1358 = vunpack.c.0.s8 %v1357
  %v1359 = vlaneseq
  %v1360 = vshrl.u32 %v1359, 7
  %v1361 = vsub.s32 %v1358, %v1360
  %v1362 = vrot.slane %v1354, %v1361
  %v1364 = vunpack.c.l.s4 1934713408
  %v1365 = vunpack.c.0.s8 %v1364
  %v1366 = vlaneseq
  %v1367 = vshrl.u32 %v1366, 7
  %v1368 = vsub.s32 %v1365, %v1367
  %v1369 = vrot.slane %v1355, %v1368
  %v1370 = vcombine.low %v1314, %v1346
  %v1371 = vcombine.high %v1314, %v1346
  %v1372 = vcombine.low %v1321, %v1353
  %v1373 = vcombine.high %v1321, %v1353
  %v1374 = vcombine.low %v1330, %v1362
  %v1375 = vcombine.high %v1330, %v1362
  %v1376 = vcombine.low %v1337, %v1369
  %v1377 = vcombine.high %v1337, %v1369
  %v1378 = vcombine.low %v930, %v1033
  %v1379 = vcombine.high %v930, %v1033
  %v1381 = vunpack.c.l.s4 1983009808
  %v1382 = vunpack.c.0.s8 %v1381
  %v1383 = vlaneseq
  %v1384 = vshrl.u32 %v1383, 7
  %v1385 = vsub.s32 %v1382, %v1384
  %v1386 = vrot.slane %v1378, %v1385
  %v1388 = vunpack.c.l.s4 1983009808
  %v1389 = vunpack.c.0.s8 %v1388
  %v1390 = vlaneseq
  %v1391 = vshrl.u32 %v1390, 7
  %v1392 = vsub.s32 %v1389, %v1391
  %v1393 = vrot.slane %v1379, %v1392
  %v1394 = vcombine.low %v1027, %v1039
  %v1395 = vcombine.high %v1027, %v1039
  %v1397 = vunpack.c.l.s4 1983009808
  %v1398 = vunpack.c.0.s8 %v1397
  %v1399 = vlaneseq
  %v1400 = vshrl.u32 %v1399, 7
  %v1401 = vsub.s32 %v1398, %v1400
  %v1402 = vrot.slane %v1394, %v1401
  %v1404 = vunpack.c.l.s4 1983009808
  %v1405 = vunpack.c.0.s8 %v1404
  %v1406 = vlaneseq
  %v1407 = vshrl.u32 %v1406, 7
  %v1408 = vsub.s32 %v1405, %v1407
  %v1409 = vrot.slane %v1395, %v1408
  %v1410 = vcombine.low %v1045, %v1057
  %v1411 = vcombine.high %v1045, %v1057
  %v1413 = vunpack.c.l.s4 1983009808
  %v1414 = vunpack.c.0.s8 %v1413
  %v1415 = vlaneseq
  %v1416 = vshrl.u32 %v1415, 7
  %v1417 = vsub.s32 %v1414, %v1416
  %v1418 = vrot.slane %v1410, %v1417
  %v1420 = vunpack.c.l.s4 1983009808
  %v1421 = vunpack.c.0.s8 %v1420
  %v1422 = vlaneseq
  %v1423 = vshrl.u32 %v1422, 7
  %v1424 = vsub.s32 %v1421, %v1423
  %v1425 = vrot.slane %v1411, %v1424
  %v1426 = vcombine.low %v1051, %v1063
  %v1427 = vcombine.high %v1051, %v1063
  %v1429 = vunpack.c.l.s4 1983009808
  %v1430 = vunpack.c.0.s8 %v1429
  %v1431 = vlaneseq
  %v1432 = vshrl.u32 %v1431, 7
  %v1433 = vsub.s32 %v1430, %v1432
  %v1434 = vrot.slane %v1426, %v1433
  %v1436 = vunpack.c.l.s4 1983009808
  %v1437 = vunpack.c.0.s8 %v1436
  %v1438 = vlaneseq
  %v1439 = vshrl.u32 %v1438, 7
  %v1440 = vsub.s32 %v1437, %v1439
  %v1441 = vrot.slane %v1427, %v1440
  %v1442 = vcombine.low %v1386, %v1402
  %v1443 = vcombine.high %v1386, %v1402
  %v1445 = vunpack.c.l.s4 1934713408
  %v1446 = vunpack.c.0.s8 %v1445
  %v1447 = vlaneseq
  %v1448 = vshrl.u32 %v1447, 7
  %v1449 = vsub.s32 %v1446, %v1448
  %v1450 = vrot.slane %v1442, %v1449
  %v1452 = vunpack.c.l.s4 1934713408
  %v1453 = vunpack.c.0.s8 %v1452
  %v1454 = vlaneseq
  %v1455 = vshrl.u32 %v1454, 7
  %v1456 = vsub.s32 %v1453, %v1455
  %v1457 = vrot.slane %v1443, %v1456
  %v1458 = vcombine.low %v1393, %v1409
  %v1459 = vcombine.high %v1393, %v1409
  %v1461 = vunpack.c.l.s4 1934713408
  %v1462 = vunpack.c.0.s8 %v1461
  %v1463 = vlaneseq
  %v1464 = vshrl.u32 %v1463, 7
  %v1465 = vsub.s32 %v1462, %v1464
  %v1466 = vrot.slane %v1458, %v1465
  %v1468 = vunpack.c.l.s4 1934713408
  %v1469 = vunpack.c.0.s8 %v1468
  %v1470 = vlaneseq
  %v1471 = vshrl.u32 %v1470, 7
  %v1472 = vsub.s32 %v1469, %v1471
  %v1473 = vrot.slane %v1459, %v1472
  %v1474 = vcombine.low %v1418, %v1434
  %v1475 = vcombine.high %v1418, %v1434
  %v1477 = vunpack.c.l.s4 1934713408
  %v1478 = vunpack.c.0.s8 %v1477
  %v1479 = vlaneseq
  %v1480 = vshrl.u32 %v1479, 7
  %v1481 = vsub.s32 %v1478, %v1480
  %v1482 = vrot.slane %v1474, %v1481
  %v1484 = vunpack.c.l.s4 1934713408
  %v1485 = vunpack.c.0.s8 %v1484
  %v1486 = vlaneseq
  %v1487 = vshrl.u32 %v1486, 7
  %v1488 = vsub.s32 %v1485, %v1487
  %v1489 = vrot.slane %v1475, %v1488
  %v1490 = vcombine.low %v1425, %v1441
  %v1491 = vcombine.high %v1425, %v1441
  %v1493 = vunpack.c.l.s4 1934713408
  %v1494 = vunpack.c.0.s8 %v1493
  %v1495 = vlaneseq
  %v1496 = vshrl.u32 %v1495, 7
  %v1497 = vsub.s32 %v1494, %v1496
  %v1498 = vrot.slane %v1490, %v1497
  %v1500 = vunpack.c.l.s4 1934713408
  %v1501 = vunpack.c.0.s8 %v1500
  %v1502 = vlaneseq
  %v1503 = vshrl.u32 %v1502, 7
  %v1504 = vsub.s32 %v1501, %v1503
  %v1505 = vrot.slane %v1491, %v1504
  %v1506 = vcombine.low %v1450, %v1482
  %v1507 = vcombine.high %v1450, %v1482
  %v1508 = vcombine.low %v1457, %v1489
  %v1509 = vcombine.high %v1457, %v1489
  %v1510 = vcombine.low %v1466, %v1498
  %v1511 = vcombine.high %v1466, %v1498
  %v1512 = vcombine.low %v1473, %v1505
  %v1513 = vcombine.high %v1473, %v1505
  %v1514 = vcombine.low %v931, %v1077
  %v1515 = vcombine.high %v931, %v1077
  %v1517 = vunpack.c.l.s4 1983009808
  %v1518 = vunpack.c.0.s8 %v1517
  %v1519 = vlaneseq
  %v1520 = vshrl.u32 %v1519, 7
  %v1521 = vsub.s32 %v1518, %v1520
  %v1522 = vrot.slane %v1514, %v1521
  %v1524 = vunpack.c.l.s4 1983009808
  %v1525 = vunpack.c.0.s8 %v1524
  %v1526 = vlaneseq
  %v1527 = vshrl.u32 %v1526, 7
  %v1528 = vsub.s32 %v1525, %v1527
  %v1529 = vrot.slane %v1515, %v1528
  %v1530 = vcombine.low %v1071, %v1083
  %v1531 = vcombine.high %v1071, %v1083
  %v1533 = vunpack.c.l.s4 1983009808
  %v1534 = vunpack.c.0.s8 %v1533
  %v1535 = vlaneseq
  %v1536 = vshrl.u32 %v1535, 7
  %v1537 = vsub.s32 %v1534, %v1536
  %v1538 = vrot.slane %v1530, %v1537
  %v1540 = vunpack.c.l.s4 1983009808
  %v1541 = vunpack.c.0.s8 %v1540
  %v1542 = vlaneseq
  %v1543 = vshrl.u32 %v1542, 7
  %v1544 = vsub.s32 %v1541, %v1543
  %v1545 = vrot.slane %v1531, %v1544
  %v1546 = vcombine.low %v1089, %v1101
  %v1547 = vcombine.high %v1089, %v1101
  %v1549 = vunpack.c.l.s4 1983009808
  %v1550 = vunpack.c.0.s8 %v1549
  %v1551 = vlaneseq
  %v1552 = vshrl.u32 %v1551, 7
  %v1553 = vsub.s32 %v1550, %v1552
  %v1554 = vrot.slane %v1546, %v1553
  %v1556 = vunpack.c.l.s4 1983009808
  %v1557 = vunpack.c.0.s8 %v1556
  %v1558 = vlaneseq
  %v1559 = vshrl.u32 %v1558, 7
  %v1560 = vsub.s32 %v1557, %v1559
  %v1561 = vrot.slane %v1547, %v1560
  %v1562 = vcombine.high %v1095, 0.0
  %v1564 = vunpack.c.l.s4 1983009808
  %v1565 = vunpack.c.0.s8 %v1564
  %v1566 = vlaneseq
  %v1567 = vshrl.u32 %v1566, 7
  %v1568 = vsub.s32 %v1565, %v1567
  %v1569 = vrot.slane %v1095, %v1568
  %v1571 = vunpack.c.l.s4 1983009808
  %v1572 = vunpack.c.0.s8 %v1571
  %v1573 = vlaneseq
  %v1574 = vshrl.u32 %v1573, 7
  %v1575 = vsub.s32 %v1572, %v1574
  %v1576 = vrot.slane %v1562, %v1575
  %v1577 = vcombine.low %v1522, %v1538
  %v1578 = vcombine.high %v1522, %v1538
  %v1580 = vunpack.c.l.s4 1934713408
  %v1581 = vunpack.c.0.s8 %v1580
  %v1582 = vlaneseq
  %v1583 = vshrl.u32 %v1582, 7
  %v1584 = vsub.s32 %v1581, %v1583
  %v1585 = vrot.slane %v1577, %v1584
  %v1587 = vunpack.c.l.s4 1934713408
  %v1588 = vunpack.c.0.s8 %v1587
  %v1589 = vlaneseq
  %v1590 = vshrl.u32 %v1589, 7
  %v1591 = vsub.s32 %v1588, %v1590
  %v1592 = vrot.slane %v1578, %v1591
  %v1593 = vcombine.low %v1529, %v1545
  %v1594 = vcombine.high %v1529, %v1545
  %v1596 = vunpack.c.l.s4 1934713408
  %v1597 = vunpack.c.0.s8 %v1596
  %v1598 = vlaneseq
  %v1599 = vshrl.u32 %v1598, 7
  %v1600 = vsub.s32 %v1597, %v1599
  %v1601 = vrot.slane %v1593, %v1600
  %v1603 = vunpack.c.l.s4 1934713408
  %v1604 = vunpack.c.0.s8 %v1603
  %v1605 = vlaneseq
  %v1606 = vshrl.u32 %v1605, 7
  %v1607 = vsub.s32 %v1604, %v1606
  %v1608 = vrot.slane %v1594, %v1607
  %v1609 = vcombine.low %v1554, %v1569
  %v1610 = vcombine.high %v1554, %v1569
  %v1612 = vunpack.c.l.s4 1934713408
  %v1613 = vunpack.c.0.s8 %v1612
  %v1614 = vlaneseq
  %v1615 = vshrl.u32 %v1614, 7
  %v1616 = vsub.s32 %v1613, %v1615
  %v1617 = vrot.slane %v1609, %v1616
  %v1619 = vunpack.c.l.s4 1934713408
  %v1620 = vunpack.c.0.s8 %v1619
  %v1621 = vlaneseq
  %v1622 = vshrl.u32 %v1621, 7
  %v1623 = vsub.s32 %v1620, %v1622
  %v1624 = vrot.slane %v1610, %v1623
  %v1625 = vcombine.low %v1561, %v1576
  %v1626 = vcombine.high %v1561, %v1576
  %v1628 = vunpack.c.l.s4 1934713408
  %v1629 = vunpack.c.0.s8 %v1628
  %v1630 = vlaneseq
  %v1631 = vshrl.u32 %v1630, 7
  %v1632 = vsub.s32 %v1629, %v1631
  %v1633 = vrot.slane %v1625, %v1632
  %v1635 = vunpack.c.l.s4 1934713408
  %v1636 = vunpack.c.0.s8 %v1635
  %v1637 = vlaneseq
  %v1638 = vshrl.u32 %v1637, 7
  %v1639 = vsub.s32 %v1636, %v1638
  %v1640 = vrot.slane %v1626, %v1639
  %v1641 = vcombine.low %v1585, %v1617
  %v1642 = vcombine.high %v1585, %v1617
  %v1643 = vcombine.low %v1592, %v1624
  %v1644 = vcombine.high %v1592, %v1624
  %v1645 = vcombine.low %v1601, %v1633
  %v1646 = vcombine.high %v1601, %v1633
  %v1647 = vcombine.low %v1608, %v1640
  %v1648 = vcombine.high %v1608, %v1640
  %v1649 = vcombine.low %v932, %v947
  %v1650 = vcombine.high %v932, %v947
  %v1652 = vunpack.c.l.s4 1983009808
  %v1653 = vunpack.c.0.s8 %v1652
  %v1654 = vlaneseq
  %v1655 = vshrl.u32 %v1654, 7
  %v1656 = vsub.s32 %v1653, %v1655
  %v1657 = vrot.slane %v1649, %v1656
  %v1659 = vunpack.c.l.s4 1983009808
  %v1660 = vunpack.c.0.s8 %v1659
  %v1661 = vlaneseq
  %v1662 = vshrl.u32 %v1661, 7
  %v1663 = vsub.s32 %v1660, %v1662
  %v1664 = vrot.slane %v1650, %v1663
  %v1665 = vcombine.low %v941, %v953
  %v1666 = vcombine.high %v941, %v953
  %v1668 = vunpack.c.l.s4 1983009808
  %v1669 = vunpack.c.0.s8 %v1668
  %v1670 = vlaneseq
  %v1671 = vshrl.u32 %v1670, 7
  %v1672 = vsub.s32 %v1669, %v1671
  %v1673 = vrot.slane %v1665, %v1672
  %v1675 = vunpack.c.l.s4 1983009808
  %v1676 = vunpack.c.0.s8 %v1675
  %v1677 = vlaneseq
  %v1678 = vshrl.u32 %v1677, 7
  %v1679 = vsub.s32 %v1676, %v1678
  %v1680 = vrot.slane %v1666, %v1679
  %v1681 = vcombine.low %v959, %v971
  %v1682 = vcombine.high %v959, %v971
  %v1684 = vunpack.c.l.s4 1983009808
  %v1685 = vunpack.c.0.s8 %v1684
  %v1686 = vlaneseq
  %v1687 = vshrl.u32 %v1686, 7
  %v1688 = vsub.s32 %v1685, %v1687
  %v1689 = vrot.slane %v1681, %v1688
  %v1691 = vunpack.c.l.s4 1983009808
  %v1692 = vunpack.c.0.s8 %v1691
  %v1693 = vlaneseq
  %v1694 = vshrl.u32 %v1693, 7
  %v1695 = vsub.s32 %v1692, %v1694
  %v1696 = vrot.slane %v1682, %v1695
  %v1697 = vcombine.low %v965, %v977
  %v1698 = vcombine.high %v965, %v977
  %v1700 = vunpack.c.l.s4 1983009808
  %v1701 = vunpack.c.0.s8 %v1700
  %v1702 = vlaneseq
  %v1703 = vshrl.u32 %v1702, 7
  %v1704 = vsub.s32 %v1701, %v1703
  %v1705 = vrot.slane %v1697, %v1704
  %v1707 = vunpack.c.l.s4 1983009808
  %v1708 = vunpack.c.0.s8 %v1707
  %v1709 = vlaneseq
  %v1710 = vshrl.u32 %v1709, 7
  %v1711 = vsub.s32 %v1708, %v1710
  %v1712 = vrot.slane %v1698, %v1711
  %v1713 = vcombine.low %v1657, %v1673
  %v1714 = vcombine.high %v1657, %v1673
  %v1716 = vunpack.c.l.s4 1934713408
  %v1717 = vunpack.c.0.s8 %v1716
  %v1718 = vlaneseq
  %v1719 = vshrl.u32 %v1718, 7
  %v1720 = vsub.s32 %v1717, %v1719
  %v1721 = vrot.slane %v1713, %v1720
  %v1723 = vunpack.c.l.s4 1934713408
  %v1724 = vunpack.c.0.s8 %v1723
  %v1725 = vlaneseq
  %v1726 = vshrl.u32 %v1725, 7
  %v1727 = vsub.s32 %v1724, %v1726
  %v1728 = vrot.slane %v1714, %v1727
  %v1729 = vcombine.low %v1664, %v1680
  %v1730 = vcombine.high %v1664, %v1680
  %v1732 = vunpack.c.l.s4 1934713408
  %v1733 = vunpack.c.0.s8 %v1732
  %v1734 = vlaneseq
  %v1735 = vshrl.u32 %v1734, 7
  %v1736 = vsub.s32 %v1733, %v1735
  %v1737 = vrot.slane %v1729, %v1736
  %v1739 = vunpack.c.l.s4 1934713408
  %v1740 = vunpack.c.0.s8 %v1739
  %v1741 = vlaneseq
  %v1742 = vshrl.u32 %v1741, 7
  %v1743 = vsub.s32 %v1740, %v1742
  %v1744 = vrot.slane %v1730, %v1743
  %v1745 = vcombine.low %v1689, %v1705
  %v1746 = vcombine.high %v1689, %v1705
  %v1748 = vunpack.c.l.s4 1934713408
  %v1749 = vunpack.c.0.s8 %v1748
  %v1750 = vlaneseq
  %v1751 = vshrl.u32 %v1750, 7
  %v1752 = vsub.s32 %v1749, %v1751
  %v1753 = vrot.slane %v1745, %v1752
  %v1755 = vunpack.c.l.s4 1934713408
  %v1756 = vunpack.c.0.s8 %v1755
  %v1757 = vlaneseq
  %v1758 = vshrl.u32 %v1757, 7
  %v1759 = vsub.s32 %v1756, %v1758
  %v1760 = vrot.slane %v1746, %v1759
  %v1761 = vcombine.low %v1696, %v1712
  %v1762 = vcombine.high %v1696, %v1712
  %v1764 = vunpack.c.l.s4 1934713408
  %v1765 = vunpack.c.0.s8 %v1764
  %v1766 = vlaneseq
  %v1767 = vshrl.u32 %v1766, 7
  %v1768 = vsub.s32 %v1765, %v1767
  %v1769 = vrot.slane %v1761, %v1768
  %v1771 = vunpack.c.l.s4 1934713408
  %v1772 = vunpack.c.0.s8 %v1771
  %v1773 = vlaneseq
  %v1774 = vshrl.u32 %v1773, 7
  %v1775 = vsub.s32 %v1772, %v1774
  %v1776 = vrot.slane %v1762, %v1775
  %v1777 = vcombine.low %v1721, %v1753
  %v1778 = vcombine.high %v1721, %v1753
  %v1779 = vcombine.low %v1728, %v1760
  %v1780 = vcombine.high %v1728, %v1760
  %v1781 = vcombine.low %v1737, %v1769
  %v1782 = vcombine.high %v1737, %v1769
  %v1783 = vcombine.low %v1744, %v1776
  %v1784 = vcombine.high %v1744, %v1776
  %v1785 = vcombine.low %v933, %v991
  %v1786 = vcombine.high %v933, %v991
  %v1788 = vunpack.c.l.s4 1983009808
  %v1789 = vunpack.c.0.s8 %v1788
  %v1790 = vlaneseq
  %v1791 = vshrl.u32 %v1790, 7
  %v1792 = vsub.s32 %v1789, %v1791
  %v1793 = vrot.slane %v1785, %v1792
  %v1795 = vunpack.c.l.s4 1983009808
  %v1796 = vunpack.c.0.s8 %v1795
  %v1797 = vlaneseq
  %v1798 = vshrl.u32 %v1797, 7
  %v1799 = vsub.s32 %v1796, %v1798
  %v1800 = vrot.slane %v1786, %v1799
  %v1801 = vcombine.low %v985, %v997
  %v1802 = vcombine.high %v985, %v997
  %v1804 = vunpack.c.l.s4 1983009808
  %v1805 = vunpack.c.0.s8 %v1804
  %v1806 = vlaneseq
  %v1807 = vshrl.u32 %v1806, 7
  %v1808 = vsub.s32 %v1805, %v1807
  %v1809 = vrot.slane %v1801, %v1808
  %v1811 = vunpack.c.l.s4 1983009808
  %v1812 = vunpack.c.0.s8 %v1811
  %v1813 = vlaneseq
  %v1814 = vshrl.u32 %v1813, 7
  %v1815 = vsub.s32 %v1812, %v1814
  %v1816 = vrot.slane %v1802, %v1815
  %v1817 = vcombine.low %v1003, %v1015
  %v1818 = vcombine.high %v1003, %v1015
  %v1820 = vunpack.c.l.s4 1983009808
  %v1821 = vunpack.c.0.s8 %v1820
  %v1822 = vlaneseq
  %v1823 = vshrl.u32 %v1822, 7
  %v1824 = vsub.s32 %v1821, %v1823
  %v1825 = vrot.slane %v1817, %v1824
  %v1827 = vunpack.c.l.s4 1983009808
  %v1828 = vunpack.c.0.s8 %v1827
  %v1829 = vlaneseq
  %v1830 = vshrl.u32 %v1829, 7
  %v1831 = vsub.s32 %v1828, %v1830
  %v1832 = vrot.slane %v1818, %v1831
  %v1833 = vcombine.low %v1009, %v1021
  %v1834 = vcombine.high %v1009, %v1021
  %v1836 = vunpack.c.l.s4 1983009808
  %v1837 = vunpack.c.0.s8 %v1836
  %v1838 = vlaneseq
  %v1839 = vshrl.u32 %v1838, 7
  %v1840 = vsub.s32 %v1837, %v1839
  %v1841 = vrot.slane %v1833, %v1840
  %v1843 = vunpack.c.l.s4 1983009808
  %v1844 = vunpack.c.0.s8 %v1843
  %v1845 = vlaneseq
  %v1846 = vshrl.u32 %v1845, 7
  %v1847 = vsub.s32 %v1844, %v1846
  %v1848 = vrot.slane %v1834, %v1847
  %v1849 = vcombine.low %v1793, %v1809
  %v1850 = vcombine.high %v1793, %v1809
  %v1852 = vunpack.c.l.s4 1934713408
  %v1853 = vunpack.c.0.s8 %v1852
  %v1854 = vlaneseq
  %v1855 = vshrl.u32 %v1854, 7
  %v1856 = vsub.s32 %v1853, %v1855
  %v1857 = vrot.slane %v1849, %v1856
  %v1859 = vunpack.c.l.s4 1934713408
  %v1860 = vunpack.c.0.s8 %v1859
  %v1861 = vlaneseq
  %v1862 = vshrl.u32 %v1861, 7
  %v1863 = vsub.s32 %v1860, %v1862
  %v1864 = vrot.slane %v1850, %v1863
  %v1865 = vcombine.low %v1800, %v1816
  %v1866 = vcombine.high %v1800, %v1816
  %v1868 = vunpack.c.l.s4 1934713408
  %v1869 = vunpack.c.0.s8 %v1868
  %v1870 = vlaneseq
  %v1871 = vshrl.u32 %v1870, 7
  %v1872 = vsub.s32 %v1869, %v1871
  %v1873 = vrot.slane %v1865, %v1872
  %v1875 = vunpack.c.l.s4 1934713408
  %v1876 = vunpack.c.0.s8 %v1875
  %v1877 = vlaneseq
  %v1878 = vshrl.u32 %v1877, 7
  %v1879 = vsub.s32 %v1876, %v1878
  %v1880 = vrot.slane %v1866, %v1879
  %v1881 = vcombine.low %v1825, %v1841
  %v1882 = vcombine.high %v1825, %v1841
  %v1884 = vunpack.c.l.s4 1934713408
  %v1885 = vunpack.c.0.s8 %v1884
  %v1886 = vlaneseq
  %v1887 = vshrl.u32 %v1886, 7
  %v1888 = vsub.s32 %v1885, %v1887
  %v1889 = vrot.slane %v1881, %v1888
  %v1891 = vunpack.c.l.s4 1934713408
  %v1892 = vunpack.c.0.s8 %v1891
  %v1893 = vlaneseq
  %v1894 = vshrl.u32 %v1893, 7
  %v1895 = vsub.s32 %v1892, %v1894
  %v1896 = vrot.slane %v1882, %v1895
  %v1897 = vcombine.low %v1832, %v1848
  %v1898 = vcombine.high %v1832, %v1848
  %v1900 = vunpack.c.l.s4 1934713408
  %v1901 = vunpack.c.0.s8 %v1900
  %v1902 = vlaneseq
  %v1903 = vshrl.u32 %v1902, 7
  %v1904 = vsub.s32 %v1901, %v1903
  %v1905 = vrot.slane %v1897, %v1904
  %v1907 = vunpack.c.l.s4 1934713408
  %v1908 = vunpack.c.0.s8 %v1907
  %v1909 = vlaneseq
  %v1910 = vshrl.u32 %v1909, 7
  %v1911 = vsub.s32 %v1908, %v1910
  %v1912 = vrot.slane %v1898, %v1911
  %v1913 = vcombine.low %v1857, %v1889
  %v1914 = vcombine.high %v1857, %v1889
  %v1915 = vcombine.low %v1864, %v1896
  %v1916 = vcombine.high %v1864, %v1896
  %v1917 = vcombine.low %v1873, %v1905
  %v1918 = vcombine.high %v1873, %v1905
  %v1919 = vcombine.low %v1880, %v1912
  %v1920 = vcombine.high %v1880, %v1912
  %v1921 = vcombine.low %v934, %v1035
  %v1922 = vcombine.high %v934, %v1035
  %v1924 = vunpack.c.l.s4 1983009808
  %v1925 = vunpack.c.0.s8 %v1924
  %v1926 = vlaneseq
  %v1927 = vshrl.u32 %v1926, 7
  %v1928 = vsub.s32 %v1925, %v1927
  %v1929 = vrot.slane %v1921, %v1928
  %v1931 = vunpack.c.l.s4 1983009808
  %v1932 = vunpack.c.0.s8 %v1931
  %v1933 = vlaneseq
  %v1934 = vshrl.u32 %v1933, 7
  %v1935 = vsub.s32 %v1932, %v1934
  %v1936 = vrot.slane %v1922, %v1935
  %v1937 = vcombine.low %v1029, %v1041
  %v1938 = vcombine.high %v1029, %v1041
  %v1940 = vunpack.c.l.s4 1983009808
  %v1941 = vunpack.c.0.s8 %v1940
  %v1942 = vlaneseq
  %v1943 = vshrl.u32 %v1942, 7
  %v1944 = vsub.s32 %v1941, %v1943
  %v1945 = vrot.slane %v1937, %v1944
  %v1947 = vunpack.c.l.s4 1983009808
  %v1948 = vunpack.c.0.s8 %v1947
  %v1949 = vlaneseq
  %v1950 = vshrl.u32 %v1949, 7
  %v1951 = vsub.s32 %v1948, %v1950
  %v1952 = vrot.slane %v1938, %v1951
  %v1953 = vcombine.low %v1047, %v1059
  %v1954 = vcombine.high %v1047, %v1059
  %v1956 = vunpack.c.l.s4 1983009808
  %v1957 = vunpack.c.0.s8 %v1956
  %v1958 = vlaneseq
  %v1959 = vshrl.u32 %v1958, 7
  %v1960 = vsub.s32 %v1957, %v1959
  %v1961 = vrot.slane %v1953, %v1960
  %v1963 = vunpack.c.l.s4 1983009808
  %v1964 = vunpack.c.0.s8 %v1963
  %v1965 = vlaneseq
  %v1966 = vshrl.u32 %v1965, 7
  %v1967 = vsub.s32 %v1964, %v1966
  %v1968 = vrot.slane %v1954, %v1967
  %v1969 = vcombine.low %v1053, %v1065
  %v1970 = vcombine.high %v1053, %v1065
  %v1972 = vunpack.c.l.s4 1983009808
  %v1973 = vunpack.c.0.s8 %v1972
  %v1974 = vlaneseq
  %v1975 = vshrl.u32 %v1974, 7
  %v1976 = vsub.s32 %v1973, %v1975
  %v1977 = vrot.slane %v1969, %v1976
  %v1979 = vunpack.c.l.s4 1983009808
  %v1980 = vunpack.c.0.s8 %v1979
  %v1981 = vlaneseq
  %v1982 = vshrl.u32 %v1981, 7
  %v1983 = vsub.s32 %v1980, %v1982
  %v1984 = vrot.slane %v1970, %v1983
  %v1985 = vcombine.low %v1929, %v1945
  %v1986 = vcombine.high %v1929, %v1945
  %v1988 = vunpack.c.l.s4 1934713408
  %v1989 = vunpack.c.0.s8 %v1988
  %v1990 = vlaneseq
  %v1991 = vshrl.u32 %v1990, 7
  %v1992 = vsub.s32 %v1989, %v1991
  %v1993 = vrot.slane %v1985, %v1992
  %v1995 = vunpack.c.l.s4 1934713408
  %v1996 = vunpack.c.0.s8 %v1995
  %v1997 = vlaneseq
  %v1998 = vshrl.u32 %v1997, 7
  %v1999 = vsub.s32 %v1996, %v1998
  %v2000 = vrot.slane %v1986, %v1999
  %v2001 = vcombine.low %v1936, %v1952
  %v2002 = vcombine.high %v1936, %v1952
  %v2004 = vunpack.c.l.s4 1934713408
  %v2005 = vunpack.c.0.s8 %v2004
  %v2006 = vlaneseq
  %v2007 = vshrl.u32 %v2006, 7
  %v2008 = vsub.s32 %v2005, %v2007
  %v2009 = vrot.slane %v2001, %v2008
  %v2011 = vunpack.c.l.s4 1934713408
  %v2012 = vunpack.c.0.s8 %v2011
  %v2013 = vlaneseq
  %v2014 = vshrl.u32 %v2013, 7
  %v2015 = vsub.s32 %v2012, %v2014
  %v2016 = vrot.slane %v2002, %v2015
  %v2017 = vcombine.low %v1961, %v1977
  %v2018 = vcombine.high %v1961, %v1977
  %v2020 = vunpack.c.l.s4 1934713408
  %v2021 = vunpack.c.0.s8 %v2020
  %v2022 = vlaneseq
  %v2023 = vshrl.u32 %v2022, 7
  %v2024 = vsub.s32 %v2021, %v2023
  %v2025 = vrot.slane %v2017, %v2024
  %v2027 = vunpack.c.l.s4 1934713408
  %v2028 = vunpack.c.0.s8 %v2027
  %v2029 = vlaneseq
  %v2030 = vshrl.u32 %v2029, 7
  %v2031 = vsub.s32 %v2028, %v2030
  %v2032 = vrot.slane %v2018, %v2031
  %v2033 = vcombine.low %v1968, %v1984
  %v2034 = vcombine.high %v1968, %v1984
  %v2036 = vunpack.c.l.s4 1934713408
  %v2037 = vunpack.c.0.s8 %v2036
  %v2038 = vlaneseq
  %v2039 = vshrl.u32 %v2038, 7
  %v2040 = vsub.s32 %v2037, %v2039
  %v2041 = vrot.slane %v2033, %v2040
  %v2043 = vunpack.c.l.s4 1934713408
  %v2044 = vunpack.c.0.s8 %v2043
  %v2045 = vlaneseq
  %v2046 = vshrl.u32 %v2045, 7
  %v2047 = vsub.s32 %v2044, %v2046
  %v2048 = vrot.slane %v2034, %v2047
  %v2049 = vcombine.low %v1993, %v2025
  %v2050 = vcombine.high %v1993, %v2025
  %v2051 = vcombine.low %v2000, %v2032
  %v2052 = vcombine.high %v2000, %v2032
  %v2053 = vcombine.low %v2009, %v2041
  %v2054 = vcombine.high %v2009, %v2041
  %v2055 = vcombine.low %v2016, %v2048
  %v2056 = vcombine.high %v2016, %v2048
  %v2057 = vcombine.low %v935, %v1079
  %v2058 = vcombine.high %v935, %v1079
  %v2060 = vunpack.c.l.s4 1983009808
  %v2061 = vunpack.c.0.s8 %v2060
  %v2062 = vlaneseq
  %v2063 = vshrl.u32 %v2062, 7
  %v2064 = vsub.s32 %v2061, %v2063
  %v2065 = vrot.slane %v2057, %v2064
  %v2067 = vunpack.c.l.s4 1983009808
  %v2068 = vunpack.c.0.s8 %v2067
  %v2069 = vlaneseq
  %v2070 = vshrl.u32 %v2069, 7
  %v2071 = vsub.s32 %v2068, %v2070
  %v2072 = vrot.slane %v2058, %v2071
  %v2073 = vcombine.low %v1073, %v1085
  %v2074 = vcombine.high %v1073, %v1085
  %v2076 = vunpack.c.l.s4 1983009808
  %v2077 = vunpack.c.0.s8 %v2076
  %v2078 = vlaneseq
  %v2079 = vshrl.u32 %v2078, 7
  %v2080 = vsub.s32 %v2077, %v2079
  %v2081 = vrot.slane %v2073, %v2080
  %v2083 = vunpack.c.l.s4 1983009808
  %v2084 = vunpack.c.0.s8 %v2083
  %v2085 = vlaneseq
  %v2086 = vshrl.u32 %v2085, 7
  %v2087 = vsub.s32 %v2084, %v2086
  %v2088 = vrot.slane %v2074, %v2087
  %v2089 = vcombine.low %v1091, %v1103
  %v2090 = vcombine.high %v1091, %v1103
  %v2092 = vunpack.c.l.s4 1983009808
  %v2093 = vunpack.c.0.s8 %v2092
  %v2094 = vlaneseq
  %v2095 = vshrl.u32 %v2094, 7
  %v2096 = vsub.s32 %v2093, %v2095
  %v2097 = vrot.slane %v2089, %v2096
  %v2099 = vunpack.c.l.s4 1983009808
  %v2100 = vunpack.c.0.s8 %v2099
  %v2101 = vlaneseq
  %v2102 = vshrl.u32 %v2101, 7
  %v2103 = vsub.s32 %v2100, %v2102
  %v2104 = vrot.slane %v2090, %v2103
  %v2105 = vcombine.high %v1097, 0.0
  %v2107 = vunpack.c.l.s4 1983009808
  %v2108 = vunpack.c.0.s8 %v2107
  %v2109 = vlaneseq
  %v2110 = vshrl.u32 %v2109, 7
  %v2111 = vsub.s32 %v2108, %v2110
  %v2112 = vrot.slane %v1097, %v2111
  %v2114 = vunpack.c.l.s4 1983009808
  %v2115 = vunpack.c.0.s8 %v2114
  %v2116 = vlaneseq
  %v2117 = vshrl.u32 %v2116, 7
  %v2118 = vsub.s32 %v2115, %v2117
  %v2119 = vrot.slane %v2105, %v2118
  %v2120 = vcombine.low %v2065, %v2081
  %v2121 = vcombine.high %v2065, %v2081
  %v2123 = vunpack.c.l.s4 1934713408
  %v2124 = vunpack.c.0.s8 %v2123
  %v2125 = vlaneseq
  %v2126 = vshrl.u32 %v2125, 7
  %v2127 = vsub.s32 %v2124, %v2126
  %v2128 = vrot.slane %v2120, %v2127
  %v2130 = vunpack.c.l.s4 1934713408
  %v2131 = vunpack.c.0.s8 %v2130
  %v2132 = vlaneseq
  %v2133 = vshrl.u32 %v2132, 7
  %v2134 = vsub.s32 %v2131, %v2133
  %v2135 = vrot.slane %v2121, %v2134
  %v2136 = vcombine.low %v2072, %v2088
  %v2137 = vcombine.high %v2072, %v2088
  %v2139 = vunpack.c.l.s4 1934713408
  %v2140 = vunpack.c.0.s8 %v2139
  %v2141 = vlaneseq
  %v2142 = vshrl.u32 %v2141, 7
  %v2143 = vsub.s32 %v2140, %v2142
  %v2144 = vrot.slane %v2136, %v2143
  %v2146 = vunpack.c.l.s4 1934713408
  %v2147 = vunpack.c.0.s8 %v2146
  %v2148 = vlaneseq
  %v2149 = vshrl.u32 %v2148, 7
  %v2150 = vsub.s32 %v2147, %v2149
  %v2151 = vrot.slane %v2137, %v2150
  %v2152 = vcombine.low %v2097, %v2112
  %v2153 = vcombine.high %v2097, %v2112
  %v2155 = vunpack.c.l.s4 1934713408
  %v2156 = vunpack.c.0.s8 %v2155
  %v2157 = vlaneseq
  %v2158 = vshrl.u32 %v2157, 7
  %v2159 = vsub.s32 %v2156, %v2158
  %v2160 = vrot.slane %v2152, %v2159
  %v2162 = vunpack.c.l.s4 1934713408
  %v2163 = vunpack.c.0.s8 %v2162
  %v2164 = vlaneseq
  %v2165 = vshrl.u32 %v2164, 7
  %v2166 = vsub.s32 %v2163, %v2165
  %v2167 = vrot.slane %v2153, %v2166
  %v2168 = vcombine.low %v2104, %v2119
  %v2169 = vcombine.high %v2104, %v2119
  %v2171 = vunpack.c.l.s4 1934713408
  %v2172 = vunpack.c.0.s8 %v2171
  %v2173 = vlaneseq
  %v2174 = vshrl.u32 %v2173, 7
  %v2175 = vsub.s32 %v2172, %v2174
  %v2176 = vrot.slane %v2168, %v2175
  %v2178 = vunpack.c.l.s4 1934713408
  %v2179 = vunpack.c.0.s8 %v2178
  %v2180 = vlaneseq
  %v2181 = vshrl.u32 %v2180, 7
  %v2182 = vsub.s32 %v2179, %v2181
  %v2183 = vrot.slane %v2169, %v2182
  %v2184 = vcombine.low %v2128, %v2160
  %v2185 = vcombine.high %v2128, %v2160
  %v2186 = vcombine.low %v2135, %v2167
  %v2187 = vcombine.high %v2135, %v2167
  %v2188 = vcombine.low %v2144, %v2176
  %v2189 = vcombine.high %v2144, %v2176
  %v2190 = vcombine.low %v2151, %v2183
  %v2191 = vcombine.high %v2151, %v2183
  %2256 = vrot.lane.b32.xlu0 %v1234, 120
  %v2257 = vpop.permute.xlu0 %2256
  %2258 = vrot.lane.b32.xlu0 %v1370, 120
  %v2259 = vpop.permute.xlu0 %2258
  %2260 = vrot.lane.b32.xlu0 %v1506, 120
  %v2261 = vpop.permute.xlu0 %2260
  %2262 = vrot.lane.b32.xlu0 %v1641, 120
  %v2263 = vpop.permute.xlu0 %2262
  %2264 = vrot.lane.b32.xlu0 %v1235, 120
  %v2265 = vpop.permute.xlu0 %2264
  %2266 = vrot.lane.b32.xlu0 %v1371, 120
  %v2267 = vpop.permute.xlu0 %2266
  %2268 = vrot.lane.b32.xlu0 %v1507, 120
  %v2269 = vpop.permute.xlu0 %2268
  %2270 = vrot.lane.b32.xlu0 %v1642, 120
  %v2271 = vpop.permute.xlu0 %2270
  %2272 = vrot.lane.b32.xlu0 %v1236, 120
  %v2273 = vpop.permute.xlu0 %2272
  %2274 = vrot.lane.b32.xlu0 %v1372, 120
  %v2275 = vpop.permute.xlu0 %2274
  %2276 = vrot.lane.b32.xlu0 %v1508, 120
  %v2277 = vpop.permute.xlu0 %2276
  %2278 = vrot.lane.b32.xlu0 %v1643, 120
  %v2279 = vpop.permute.xlu0 %2278
  %2280 = vrot.lane.b32.xlu0 %v1237, 120
  %v2281 = vpop.permute.xlu0 %2280
  %2282 = vrot.lane.b32.xlu0 %v1373, 120
  %v2283 = vpop.permute.xlu0 %2282
  %2284 = vrot.lane.b32.xlu0 %v1509, 120
  %v2285 = vpop.permute.xlu0 %2284
  %2286 = vrot.lane.b32.xlu0 %v1644, 120
  %v2287 = vpop.permute.xlu0 %2286
  %2288 = vrot.lane.b32.xlu0 %v1238, 120
  %v2289 = vpop.permute.xlu0 %2288
  %2290 = vrot.lane.b32.xlu0 %v1374, 120
  %v2291 = vpop.permute.xlu0 %2290
  %2292 = vrot.lane.b32.xlu0 %v1510, 120
  %v2293 = vpop.permute.xlu0 %2292
  %2294 = vrot.lane.b32.xlu0 %v1645, 120
  %v2295 = vpop.permute.xlu0 %2294
  %2296 = vrot.lane.b32.xlu0 %v1239, 120
  %v2297 = vpop.permute.xlu0 %2296
  %2298 = vrot.lane.b32.xlu0 %v1375, 120
  %v2299 = vpop.permute.xlu0 %2298
  %2300 = vrot.lane.b32.xlu0 %v1511, 120
  %v2301 = vpop.permute.xlu0 %2300
  %2302 = vrot.lane.b32.xlu0 %v1646, 120
  %v2303 = vpop.permute.xlu0 %2302
  %2304 = vrot.lane.b32.xlu0 %v1240, 120
  %v2305 = vpop.permute.xlu0 %2304
  %2306 = vrot.lane.b32.xlu0 %v1376, 120
  %v2307 = vpop.permute.xlu0 %2306
  %2308 = vrot.lane.b32.xlu0 %v1512, 120
  %v2309 = vpop.permute.xlu0 %2308
  %2310 = vrot.lane.b32.xlu0 %v1647, 120
  %v2311 = vpop.permute.xlu0 %2310
  %2312 = vrot.lane.b32.xlu0 %v1241, 120
  %v2313 = vpop.permute.xlu0 %2312
  %2314 = vrot.lane.b32.xlu0 %v1377, 120
  %v2315 = vpop.permute.xlu0 %2314
  %2316 = vrot.lane.b32.xlu0 %v1513, 120
  %v2317 = vpop.permute.xlu0 %2316
  %2318 = vrot.lane.b32.xlu0 %v1648, 120
  %v2319 = vpop.permute.xlu0 %2318
  %2320 = vrot.lane.b32.xlu0 %v1777, 120
  %v2321 = vpop.permute.xlu0 %2320
  %2322 = vrot.lane.b32.xlu0 %v1913, 120
  %v2323 = vpop.permute.xlu0 %2322
  %2324 = vrot.lane.b32.xlu0 %v2049, 120
  %v2325 = vpop.permute.xlu0 %2324
  %2326 = vrot.lane.b32.xlu0 %v2184, 120
  %v2327 = vpop.permute.xlu0 %2326
  %2328 = vrot.lane.b32.xlu0 %v1778, 120
  %v2329 = vpop.permute.xlu0 %2328
  %2330 = vrot.lane.b32.xlu0 %v1914, 120
  %v2331 = vpop.permute.xlu0 %2330
  %2332 = vrot.lane.b32.xlu0 %v2050, 120
  %v2333 = vpop.permute.xlu0 %2332
  %2334 = vrot.lane.b32.xlu0 %v2185, 120
  %v2335 = vpop.permute.xlu0 %2334
  %2336 = vrot.lane.b32.xlu0 %v1779, 120
  %v2337 = vpop.permute.xlu0 %2336
  %2338 = vrot.lane.b32.xlu0 %v1915, 120
  %v2339 = vpop.permute.xlu0 %2338
  %2340 = vrot.lane.b32.xlu0 %v2051, 120
  %v2341 = vpop.permute.xlu0 %2340
  %2342 = vrot.lane.b32.xlu0 %v2186, 120
  %v2343 = vpop.permute.xlu0 %2342
  %2344 = vrot.lane.b32.xlu0 %v1780, 120
  %v2345 = vpop.permute.xlu0 %2344
  %2346 = vrot.lane.b32.xlu0 %v1916, 120
  %v2347 = vpop.permute.xlu0 %2346
  %2348 = vrot.lane.b32.xlu0 %v2052, 120
  %v2349 = vpop.permute.xlu0 %2348
  %2350 = vrot.lane.b32.xlu0 %v2187, 120
  %v2351 = vpop.permute.xlu0 %2350
  %2352 = vrot.lane.b32.xlu0 %v1781, 120
  %v2353 = vpop.permute.xlu0 %2352
  %2354 = vrot.lane.b32.xlu0 %v1917, 120
  %v2355 = vpop.permute.xlu0 %2354
  %2356 = vrot.lane.b32.xlu0 %v2053, 120
  %v2357 = vpop.permute.xlu0 %2356
  %2358 = vrot.lane.b32.xlu0 %v2188, 120
  %v2359 = vpop.permute.xlu0 %2358
  %2360 = vrot.lane.b32.xlu0 %v1782, 120
  %v2361 = vpop.permute.xlu0 %2360
  %2362 = vrot.lane.b32.xlu0 %v1918, 120
  %v2363 = vpop.permute.xlu0 %2362
  %2364 = vrot.lane.b32.xlu0 %v2054, 120
  %v2365 = vpop.permute.xlu0 %2364
  %2366 = vrot.lane.b32.xlu0 %v2189, 120
  %v2367 = vpop.permute.xlu0 %2366
  %2368 = vrot.lane.b32.xlu0 %v1783, 120
  %v2369 = vpop.permute.xlu0 %2368
  %2370 = vrot.lane.b32.xlu0 %v1919, 120
  %v2371 = vpop.permute.xlu0 %2370
  %2372 = vrot.lane.b32.xlu0 %v2055, 120
  %v2373 = vpop.permute.xlu0 %2372
  %2374 = vrot.lane.b32.xlu0 %v2190, 120
  %v2375 = vpop.permute.xlu0 %2374
  %2376 = vrot.lane.b32.xlu0 %v1784, 120
  %v2377 = vpop.permute.xlu0 %2376
  %2378 = vrot.lane.b32.xlu0 %v1920, 120
  %v2379 = vpop.permute.xlu0 %2378
  %2380 = vrot.lane.b32.xlu0 %v2056, 120
  %v2381 = vpop.permute.xlu0 %2380
  %2382 = vrot.lane.b32.xlu0 %v2191, 120
  %v2383 = vpop.permute.xlu0 %2382
  %v2448 = vmax.f32 %v1234, %v2257
  %v2449 = vmax.f32 %v1370, %v2259
  %v2450 = vmax.f32 %v1506, %v2261
  %v2451 = vmax.f32 %v1641, %v2263
  %v2452 = vmax.f32 %v1235, %v2265
  %v2453 = vmax.f32 %v1371, %v2267
  %v2454 = vmax.f32 %v1507, %v2269
  %v2455 = vmax.f32 %v1642, %v2271
  %v2456 = vmax.f32 %v1236, %v2273
  %v2457 = vmax.f32 %v1372, %v2275
  %v2458 = vmax.f32 %v1508, %v2277
  %v2459 = vmax.f32 %v1643, %v2279
  %v2460 = vmax.f32 %v1237, %v2281
  %v2461 = vmax.f32 %v1373, %v2283
  %v2462 = vmax.f32 %v1509, %v2285
  %v2463 = vmax.f32 %v1644, %v2287
  %v2464 = vmax.f32 %v1238, %v2289
  %v2465 = vmax.f32 %v1374, %v2291
  %v2466 = vmax.f32 %v1510, %v2293
  %v2467 = vmax.f32 %v1645, %v2295
  %v2468 = vmax.f32 %v1239, %v2297
  %v2469 = vmax.f32 %v1375, %v2299
  %v2470 = vmax.f32 %v1511, %v2301
  %v2471 = vmax.f32 %v1646, %v2303
  %v2472 = vmax.f32 %v1240, %v2305
  %v2473 = vmax.f32 %v1376, %v2307
  %v2474 = vmax.f32 %v1512, %v2309
  %v2475 = vmax.f32 %v1647, %v2311
  %v2476 = vmax.f32 %v1241, %v2313
  %v2477 = vmax.f32 %v1377, %v2315
  %v2478 = vmax.f32 %v1513, %v2317
  %v2479 = vmax.f32 %v1648, %v2319
  %v2480 = vmax.f32 %v1777, %v2321
  %v2481 = vmax.f32 %v1913, %v2323
  %v2482 = vmax.f32 %v2049, %v2325
  %v2483 = vmax.f32 %v2184, %v2327
  %v2484 = vmax.f32 %v1778, %v2329
  %v2485 = vmax.f32 %v1914, %v2331
  %v2486 = vmax.f32 %v2050, %v2333
  %v2487 = vmax.f32 %v2185, %v2335
  %v2488 = vmax.f32 %v1779, %v2337
  %v2489 = vmax.f32 %v1915, %v2339
  %v2490 = vmax.f32 %v2051, %v2341
  %v2491 = vmax.f32 %v2186, %v2343
  %v2492 = vmax.f32 %v1780, %v2345
  %v2493 = vmax.f32 %v1916, %v2347
  %v2494 = vmax.f32 %v2052, %v2349
  %v2495 = vmax.f32 %v2187, %v2351
  %v2496 = vmax.f32 %v1781, %v2353
  %v2497 = vmax.f32 %v1917, %v2355
  %v2498 = vmax.f32 %v2053, %v2357
  %v2499 = vmax.f32 %v2188, %v2359
  %v2500 = vmax.f32 %v1782, %v2361
  %v2501 = vmax.f32 %v1918, %v2363
  %v2502 = vmax.f32 %v2054, %v2365
  %v2503 = vmax.f32 %v2189, %v2367
  %v2504 = vmax.f32 %v1783, %v2369
  %v2505 = vmax.f32 %v1919, %v2371
  %v2506 = vmax.f32 %v2055, %v2373
  %v2507 = vmax.f32 %v2190, %v2375
  %v2508 = vmax.f32 %v1784, %v2377
  %v2509 = vmax.f32 %v1920, %v2379
  %v2510 = vmax.f32 %v2056, %v2381
  %v2511 = vmax.f32 %v2191, %v2383
  %v2512 = vpack.c.bf16 %v2449, %v2448
  %v2513 = vpack.c.bf16 %v2451, %v2450
  %v2514 = vpack.c.bf16 %v2453, %v2452
  %v2515 = vpack.c.bf16 %v2455, %v2454
  %v2516 = vpack.c.bf16 %v2457, %v2456
  %v2517 = vpack.c.bf16 %v2459, %v2458
  %v2518 = vpack.c.bf16 %v2461, %v2460
  %v2519 = vpack.c.bf16 %v2463, %v2462
  %v2520 = vpack.c.bf16 %v2465, %v2464
  %v2521 = vpack.c.bf16 %v2467, %v2466
  %v2522 = vpack.c.bf16 %v2469, %v2468
  %v2523 = vpack.c.bf16 %v2471, %v2470
  %v2524 = vpack.c.bf16 %v2473, %v2472
  %v2525 = vpack.c.bf16 %v2475, %v2474
  %v2526 = vpack.c.bf16 %v2477, %v2476
  %v2527 = vpack.c.bf16 %v2479, %v2478
  %v2528 = vpack.c.bf16 %v2481, %v2480
  %v2529 = vpack.c.bf16 %v2483, %v2482
  %v2530 = vpack.c.bf16 %v2485, %v2484
  %v2531 = vpack.c.bf16 %v2487, %v2486
  %v2532 = vpack.c.bf16 %v2489, %v2488
  %v2533 = vpack.c.bf16 %v2491, %v2490
  %v2534 = vpack.c.bf16 %v2493, %v2492
  %v2535 = vpack.c.bf16 %v2495, %v2494
  %v2536 = vpack.c.bf16 %v2497, %v2496
  %v2537 = vpack.c.bf16 %v2499, %v2498
  %v2538 = vpack.c.bf16 %v2501, %v2500
  %v2539 = vpack.c.bf16 %v2503, %v2502
  %v2540 = vpack.c.bf16 %v2505, %v2504
  %v2541 = vpack.c.bf16 %v2507, %v2506
  %v2542 = vpack.c.bf16 %v2509, %v2508
  %v2543 = vpack.c.bf16 %v2511, %v2510
  %v2544 = vcombine.low %v2512, %v2520
  %v2545 = vcombine.high %v2512, %v2520
  %v2547 = vunpack.c.l.s4 1983009808
  %v2548 = vunpack.c.0.s8 %v2547
  %v2549 = vlaneseq
  %v2550 = vshrl.u32 %v2549, 7
  %v2551 = vsub.s32 %v2548, %v2550
  %v2552 = vrot.slane %v2544, %v2551
  %v2554 = vunpack.c.l.s4 1983009808
  %v2555 = vunpack.c.0.s8 %v2554
  %v2556 = vlaneseq
  %v2557 = vshrl.u32 %v2556, 7
  %v2558 = vsub.s32 %v2555, %v2557
  %v2559 = vrot.slane %v2545, %v2558
  %v2560 = vcombine.low %v2516, %v2524
  %v2561 = vcombine.high %v2516, %v2524
  %v2563 = vunpack.c.l.s4 1983009808
  %v2564 = vunpack.c.0.s8 %v2563
  %v2565 = vlaneseq
  %v2566 = vshrl.u32 %v2565, 7
  %v2567 = vsub.s32 %v2564, %v2566
  %v2568 = vrot.slane %v2560, %v2567
  %v2570 = vunpack.c.l.s4 1983009808
  %v2571 = vunpack.c.0.s8 %v2570
  %v2572 = vlaneseq
  %v2573 = vshrl.u32 %v2572, 7
  %v2574 = vsub.s32 %v2571, %v2573
  %v2575 = vrot.slane %v2561, %v2574
  %v2576 = vcombine.low %v2528, %v2536
  %v2577 = vcombine.high %v2528, %v2536
  %v2579 = vunpack.c.l.s4 1983009808
  %v2580 = vunpack.c.0.s8 %v2579
  %v2581 = vlaneseq
  %v2582 = vshrl.u32 %v2581, 7
  %v2583 = vsub.s32 %v2580, %v2582
  %v2584 = vrot.slane %v2576, %v2583
  %v2586 = vunpack.c.l.s4 1983009808
  %v2587 = vunpack.c.0.s8 %v2586
  %v2588 = vlaneseq
  %v2589 = vshrl.u32 %v2588, 7
  %v2590 = vsub.s32 %v2587, %v2589
  %v2591 = vrot.slane %v2577, %v2590
  %v2592 = vcombine.low %v2532, %v2540
  %v2593 = vcombine.high %v2532, %v2540
  %v2595 = vunpack.c.l.s4 1983009808
  %v2596 = vunpack.c.0.s8 %v2595
  %v2597 = vlaneseq
  %v2598 = vshrl.u32 %v2597, 7
  %v2599 = vsub.s32 %v2596, %v2598
  %v2600 = vrot.slane %v2592, %v2599
  %v2602 = vunpack.c.l.s4 1983009808
  %v2603 = vunpack.c.0.s8 %v2602
  %v2604 = vlaneseq
  %v2605 = vshrl.u32 %v2604, 7
  %v2606 = vsub.s32 %v2603, %v2605
  %v2607 = vrot.slane %v2593, %v2606
  %v2608 = vcombine.low %v2552, %v2568
  %v2609 = vcombine.high %v2552, %v2568
  %v2611 = vunpack.c.l.s4 1934713408
  %v2612 = vunpack.c.0.s8 %v2611
  %v2613 = vlaneseq
  %v2614 = vshrl.u32 %v2613, 7
  %v2615 = vsub.s32 %v2612, %v2614
  %v2616 = vrot.slane %v2608, %v2615
  %v2618 = vunpack.c.l.s4 1934713408
  %v2619 = vunpack.c.0.s8 %v2618
  %v2620 = vlaneseq
  %v2621 = vshrl.u32 %v2620, 7
  %v2622 = vsub.s32 %v2619, %v2621
  %v2623 = vrot.slane %v2609, %v2622
  %v2624 = vcombine.low %v2559, %v2575
  %v2625 = vcombine.high %v2559, %v2575
  %v2627 = vunpack.c.l.s4 1934713408
  %v2628 = vunpack.c.0.s8 %v2627
  %v2629 = vlaneseq
  %v2630 = vshrl.u32 %v2629, 7
  %v2631 = vsub.s32 %v2628, %v2630
  %v2632 = vrot.slane %v2624, %v2631
  %v2634 = vunpack.c.l.s4 1934713408
  %v2635 = vunpack.c.0.s8 %v2634
  %v2636 = vlaneseq
  %v2637 = vshrl.u32 %v2636, 7
  %v2638 = vsub.s32 %v2635, %v2637
  %v2639 = vrot.slane %v2625, %v2638
  %v2640 = vcombine.low %v2584, %v2600
  %v2641 = vcombine.high %v2584, %v2600
  %v2643 = vunpack.c.l.s4 1934713408
  %v2644 = vunpack.c.0.s8 %v2643
  %v2645 = vlaneseq
  %v2646 = vshrl.u32 %v2645, 7
  %v2647 = vsub.s32 %v2644, %v2646
  %v2648 = vrot.slane %v2640, %v2647
  %v2650 = vunpack.c.l.s4 1934713408
  %v2651 = vunpack.c.0.s8 %v2650
  %v2652 = vlaneseq
  %v2653 = vshrl.u32 %v2652, 7
  %v2654 = vsub.s32 %v2651, %v2653
  %v2655 = vrot.slane %v2641, %v2654
  %v2656 = vcombine.low %v2591, %v2607
  %v2657 = vcombine.high %v2591, %v2607
  %v2659 = vunpack.c.l.s4 1934713408
  %v2660 = vunpack.c.0.s8 %v2659
  %v2661 = vlaneseq
  %v2662 = vshrl.u32 %v2661, 7
  %v2663 = vsub.s32 %v2660, %v2662
  %v2664 = vrot.slane %v2656, %v2663
  %v2666 = vunpack.c.l.s4 1934713408
  %v2667 = vunpack.c.0.s8 %v2666
  %v2668 = vlaneseq
  %v2669 = vshrl.u32 %v2668, 7
  %v2670 = vsub.s32 %v2667, %v2669
  %v2671 = vrot.slane %v2657, %v2670
  %v2672 = vcombine.low %v2616, %v2648
  %v2673 = vcombine.high %v2616, %v2648
  %v2674 = vcombine.low %v2623, %v2655
  %v2675 = vcombine.high %v2623, %v2655
  %v2676 = vcombine.low %v2632, %v2664
  %v2677 = vcombine.high %v2632, %v2664
  %v2678 = vcombine.low %v2639, %v2671
  %v2679 = vcombine.high %v2639, %v2671
  %v2680 = vcombine.low %v2514, %v2522
  %v2681 = vcombine.high %v2514, %v2522
  %v2683 = vunpack.c.l.s4 1983009808
  %v2684 = vunpack.c.0.s8 %v2683
  %v2685 = vlaneseq
  %v2686 = vshrl.u32 %v2685, 7
  %v2687 = vsub.s32 %v2684, %v2686
  %v2688 = vrot.slane %v2680, %v2687
  %v2690 = vunpack.c.l.s4 1983009808
  %v2691 = vunpack.c.0.s8 %v2690
  %v2692 = vlaneseq
  %v2693 = vshrl.u32 %v2692, 7
  %v2694 = vsub.s32 %v2691, %v2693
  %v2695 = vrot.slane %v2681, %v2694
  %v2696 = vcombine.low %v2518, %v2526
  %v2697 = vcombine.high %v2518, %v2526
  %v2699 = vunpack.c.l.s4 1983009808
  %v2700 = vunpack.c.0.s8 %v2699
  %v2701 = vlaneseq
  %v2702 = vshrl.u32 %v2701, 7
  %v2703 = vsub.s32 %v2700, %v2702
  %v2704 = vrot.slane %v2696, %v2703
  %v2706 = vunpack.c.l.s4 1983009808
  %v2707 = vunpack.c.0.s8 %v2706
  %v2708 = vlaneseq
  %v2709 = vshrl.u32 %v2708, 7
  %v2710 = vsub.s32 %v2707, %v2709
  %v2711 = vrot.slane %v2697, %v2710
  %v2712 = vcombine.low %v2530, %v2538
  %v2713 = vcombine.high %v2530, %v2538
  %v2715 = vunpack.c.l.s4 1983009808
  %v2716 = vunpack.c.0.s8 %v2715
  %v2717 = vlaneseq
  %v2718 = vshrl.u32 %v2717, 7
  %v2719 = vsub.s32 %v2716, %v2718
  %v2720 = vrot.slane %v2712, %v2719
  %v2722 = vunpack.c.l.s4 1983009808
  %v2723 = vunpack.c.0.s8 %v2722
  %v2724 = vlaneseq
  %v2725 = vshrl.u32 %v2724, 7
  %v2726 = vsub.s32 %v2723, %v2725
  %v2727 = vrot.slane %v2713, %v2726
  %v2728 = vcombine.low %v2534, %v2542
  %v2729 = vcombine.high %v2534, %v2542
  %v2731 = vunpack.c.l.s4 1983009808
  %v2732 = vunpack.c.0.s8 %v2731
  %v2733 = vlaneseq
  %v2734 = vshrl.u32 %v2733, 7
  %v2735 = vsub.s32 %v2732, %v2734
  %v2736 = vrot.slane %v2728, %v2735
  %v2738 = vunpack.c.l.s4 1983009808
  %v2739 = vunpack.c.0.s8 %v2738
  %v2740 = vlaneseq
  %v2741 = vshrl.u32 %v2740, 7
  %v2742 = vsub.s32 %v2739, %v2741
  %v2743 = vrot.slane %v2729, %v2742
  %v2744 = vcombine.low %v2688, %v2704
  %v2745 = vcombine.high %v2688, %v2704
  %v2747 = vunpack.c.l.s4 1934713408
  %v2748 = vunpack.c.0.s8 %v2747
  %v2749 = vlaneseq
  %v2750 = vshrl.u32 %v2749, 7
  %v2751 = vsub.s32 %v2748, %v2750
  %v2752 = vrot.slane %v2744, %v2751
  %v2754 = vunpack.c.l.s4 1934713408
  %v2755 = vunpack.c.0.s8 %v2754
  %v2756 = vlaneseq
  %v2757 = vshrl.u32 %v2756, 7
  %v2758 = vsub.s32 %v2755, %v2757
  %v2759 = vrot.slane %v2745, %v2758
  %v2760 = vcombine.low %v2695, %v2711
  %v2761 = vcombine.high %v2695, %v2711
  %v2763 = vunpack.c.l.s4 1934713408
  %v2764 = vunpack.c.0.s8 %v2763
  %v2765 = vlaneseq
  %v2766 = vshrl.u32 %v2765, 7
  %v2767 = vsub.s32 %v2764, %v2766
  %v2768 = vrot.slane %v2760, %v2767
  %v2770 = vunpack.c.l.s4 1934713408
  %v2771 = vunpack.c.0.s8 %v2770
  %v2772 = vlaneseq
  %v2773 = vshrl.u32 %v2772, 7
  %v2774 = vsub.s32 %v2771, %v2773
  %v2775 = vrot.slane %v2761, %v2774
  %v2776 = vcombine.low %v2720, %v2736
  %v2777 = vcombine.high %v2720, %v2736
  %v2779 = vunpack.c.l.s4 1934713408
  %v2780 = vunpack.c.0.s8 %v2779
  %v2781 = vlaneseq
  %v2782 = vshrl.u32 %v2781, 7
  %v2783 = vsub.s32 %v2780, %v2782
  %v2784 = vrot.slane %v2776, %v2783
  %v2786 = vunpack.c.l.s4 1934713408
  %v2787 = vunpack.c.0.s8 %v2786
  %v2788 = vlaneseq
  %v2789 = vshrl.u32 %v2788, 7
  %v2790 = vsub.s32 %v2787, %v2789
  %v2791 = vrot.slane %v2777, %v2790
  %v2792 = vcombine.low %v2727, %v2743
  %v2793 = vcombine.high %v2727, %v2743
  %v2795 = vunpack.c.l.s4 1934713408
  %v2796 = vunpack.c.0.s8 %v2795
  %v2797 = vlaneseq
  %v2798 = vshrl.u32 %v2797, 7
  %v2799 = vsub.s32 %v2796, %v2798
  %v2800 = vrot.slane %v2792, %v2799
  %v2802 = vunpack.c.l.s4 1934713408
  %v2803 = vunpack.c.0.s8 %v2802
  %v2804 = vlaneseq
  %v2805 = vshrl.u32 %v2804, 7
  %v2806 = vsub.s32 %v2803, %v2805
  %v2807 = vrot.slane %v2793, %v2806
  %v2808 = vcombine.low %v2752, %v2784
  %v2809 = vcombine.high %v2752, %v2784
  %v2810 = vcombine.low %v2759, %v2791
  %v2811 = vcombine.high %v2759, %v2791
  %v2812 = vcombine.low %v2768, %v2800
  %v2813 = vcombine.high %v2768, %v2800
  %v2814 = vcombine.low %v2775, %v2807
  %v2815 = vcombine.high %v2775, %v2807
  %v2816 = vcombine.low %v2513, %v2521
  %v2817 = vcombine.high %v2513, %v2521
  %v2819 = vunpack.c.l.s4 1983009808
  %v2820 = vunpack.c.0.s8 %v2819
  %v2821 = vlaneseq
  %v2822 = vshrl.u32 %v2821, 7
  %v2823 = vsub.s32 %v2820, %v2822
  %v2824 = vrot.slane %v2816, %v2823
  %v2826 = vunpack.c.l.s4 1983009808
  %v2827 = vunpack.c.0.s8 %v2826
  %v2828 = vlaneseq
  %v2829 = vshrl.u32 %v2828, 7
  %v2830 = vsub.s32 %v2827, %v2829
  %v2831 = vrot.slane %v2817, %v2830
  %v2832 = vcombine.low %v2517, %v2525
  %v2833 = vcombine.high %v2517, %v2525
  %v2835 = vunpack.c.l.s4 1983009808
  %v2836 = vunpack.c.0.s8 %v2835
  %v2837 = vlaneseq
  %v2838 = vshrl.u32 %v2837, 7
  %v2839 = vsub.s32 %v2836, %v2838
  %v2840 = vrot.slane %v2832, %v2839
  %v2842 = vunpack.c.l.s4 1983009808
  %v2843 = vunpack.c.0.s8 %v2842
  %v2844 = vlaneseq
  %v2845 = vshrl.u32 %v2844, 7
  %v2846 = vsub.s32 %v2843, %v2845
  %v2847 = vrot.slane %v2833, %v2846
  %v2848 = vcombine.low %v2529, %v2537
  %v2849 = vcombine.high %v2529, %v2537
  %v2851 = vunpack.c.l.s4 1983009808
  %v2852 = vunpack.c.0.s8 %v2851
  %v2853 = vlaneseq
  %v2854 = vshrl.u32 %v2853, 7
  %v2855 = vsub.s32 %v2852, %v2854
  %v2856 = vrot.slane %v2848, %v2855
  %v2858 = vunpack.c.l.s4 1983009808
  %v2859 = vunpack.c.0.s8 %v2858
  %v2860 = vlaneseq
  %v2861 = vshrl.u32 %v2860, 7
  %v2862 = vsub.s32 %v2859, %v2861
  %v2863 = vrot.slane %v2849, %v2862
  %v2864 = vcombine.low %v2533, %v2541
  %v2865 = vcombine.high %v2533, %v2541
  %v2867 = vunpack.c.l.s4 1983009808
  %v2868 = vunpack.c.0.s8 %v2867
  %v2869 = vlaneseq
  %v2870 = vshrl.u32 %v2869, 7
  %v2871 = vsub.s32 %v2868, %v2870
  %v2872 = vrot.slane %v2864, %v2871
  %v2874 = vunpack.c.l.s4 1983009808
  %v2875 = vunpack.c.0.s8 %v2874
  %v2876 = vlaneseq
  %v2877 = vshrl.u32 %v2876, 7
  %v2878 = vsub.s32 %v2875, %v2877
  %v2879 = vrot.slane %v2865, %v2878
  %v2880 = vcombine.low %v2824, %v2840
  %v2881 = vcombine.high %v2824, %v2840
  %v2883 = vunpack.c.l.s4 1934713408
  %v2884 = vunpack.c.0.s8 %v2883
  %v2885 = vlaneseq
  %v2886 = vshrl.u32 %v2885, 7
  %v2887 = vsub.s32 %v2884, %v2886
  %v2888 = vrot.slane %v2880, %v2887
  %v2890 = vunpack.c.l.s4 1934713408
  %v2891 = vunpack.c.0.s8 %v2890
  %v2892 = vlaneseq
  %v2893 = vshrl.u32 %v2892, 7
  %v2894 = vsub.s32 %v2891, %v2893
  %v2895 = vrot.slane %v2881, %v2894
  %v2896 = vcombine.low %v2831, %v2847
  %v2897 = vcombine.high %v2831, %v2847
  %v2899 = vunpack.c.l.s4 1934713408
  %v2900 = vunpack.c.0.s8 %v2899
  %v2901 = vlaneseq
  %v2902 = vshrl.u32 %v2901, 7
  %v2903 = vsub.s32 %v2900, %v2902
  %v2904 = vrot.slane %v2896, %v2903
  %v2906 = vunpack.c.l.s4 1934713408
  %v2907 = vunpack.c.0.s8 %v2906
  %v2908 = vlaneseq
  %v2909 = vshrl.u32 %v2908, 7
  %v2910 = vsub.s32 %v2907, %v2909
  %v2911 = vrot.slane %v2897, %v2910
  %v2912 = vcombine.low %v2856, %v2872
  %v2913 = vcombine.high %v2856, %v2872
  %v2915 = vunpack.c.l.s4 1934713408
  %v2916 = vunpack.c.0.s8 %v2915
  %v2917 = vlaneseq
  %v2918 = vshrl.u32 %v2917, 7
  %v2919 = vsub.s32 %v2916, %v2918
  %v2920 = vrot.slane %v2912, %v2919
  %v2922 = vunpack.c.l.s4 1934713408
  %v2923 = vunpack.c.0.s8 %v2922
  %v2924 = vlaneseq
  %v2925 = vshrl.u32 %v2924, 7
  %v2926 = vsub.s32 %v2923, %v2925
  %v2927 = vrot.slane %v2913, %v2926
  %v2928 = vcombine.low %v2863, %v2879
  %v2929 = vcombine.high %v2863, %v2879
  %v2931 = vunpack.c.l.s4 1934713408
  %v2932 = vunpack.c.0.s8 %v2931
  %v2933 = vlaneseq
  %v2934 = vshrl.u32 %v2933, 7
  %v2935 = vsub.s32 %v2932, %v2934
  %v2936 = vrot.slane %v2928, %v2935
  %v2938 = vunpack.c.l.s4 1934713408
  %v2939 = vunpack.c.0.s8 %v2938
  %v2940 = vlaneseq
  %v2941 = vshrl.u32 %v2940, 7
  %v2942 = vsub.s32 %v2939, %v2941
  %v2943 = vrot.slane %v2929, %v2942
  %v2944 = vcombine.low %v2888, %v2920
  %v2945 = vcombine.high %v2888, %v2920
  %v2946 = vcombine.low %v2895, %v2927
  %v2947 = vcombine.high %v2895, %v2927
  %v2948 = vcombine.low %v2904, %v2936
  %v2949 = vcombine.high %v2904, %v2936
  %v2950 = vcombine.low %v2911, %v2943
  %v2951 = vcombine.high %v2911, %v2943
  %v2952 = vcombine.low %v2515, %v2523
  %v2953 = vcombine.high %v2515, %v2523
  %v2955 = vunpack.c.l.s4 1983009808
  %v2956 = vunpack.c.0.s8 %v2955
  %v2957 = vlaneseq
  %v2958 = vshrl.u32 %v2957, 7
  %v2959 = vsub.s32 %v2956, %v2958
  %v2960 = vrot.slane %v2952, %v2959
  %v2962 = vunpack.c.l.s4 1983009808
  %v2963 = vunpack.c.0.s8 %v2962
  %v2964 = vlaneseq
  %v2965 = vshrl.u32 %v2964, 7
  %v2966 = vsub.s32 %v2963, %v2965
  %v2967 = vrot.slane %v2953, %v2966
  %v2968 = vcombine.low %v2519, %v2527
  %v2969 = vcombine.high %v2519, %v2527
  %v2971 = vunpack.c.l.s4 1983009808
  %v2972 = vunpack.c.0.s8 %v2971
  %v2973 = vlaneseq
  %v2974 = vshrl.u32 %v2973, 7
  %v2975 = vsub.s32 %v2972, %v2974
  %v2976 = vrot.slane %v2968, %v2975
  %v2978 = vunpack.c.l.s4 1983009808
  %v2979 = vunpack.c.0.s8 %v2978
  %v2980 = vlaneseq
  %v2981 = vshrl.u32 %v2980, 7
  %v2982 = vsub.s32 %v2979, %v2981
  %v2983 = vrot.slane %v2969, %v2982
  %v2984 = vcombine.low %v2531, %v2539
  %v2985 = vcombine.high %v2531, %v2539
  %v2987 = vunpack.c.l.s4 1983009808
  %v2988 = vunpack.c.0.s8 %v2987
  %v2989 = vlaneseq
  %v2990 = vshrl.u32 %v2989, 7
  %v2991 = vsub.s32 %v2988, %v2990
  %v2992 = vrot.slane %v2984, %v2991
  %v2994 = vunpack.c.l.s4 1983009808
  %v2995 = vunpack.c.0.s8 %v2994
  %v2996 = vlaneseq
  %v2997 = vshrl.u32 %v2996, 7
  %v2998 = vsub.s32 %v2995, %v2997
  %v2999 = vrot.slane %v2985, %v2998
  %v3000 = vcombine.low %v2535, %v2543
  %v3001 = vcombine.high %v2535, %v2543
  %v3003 = vunpack.c.l.s4 1983009808
  %v3004 = vunpack.c.0.s8 %v3003
  %v3005 = vlaneseq
  %v3006 = vshrl.u32 %v3005, 7
  %v3007 = vsub.s32 %v3004, %v3006
  %v3008 = vrot.slane %v3000, %v3007
  %v3010 = vunpack.c.l.s4 1983009808
  %v3011 = vunpack.c.0.s8 %v3010
  %v3012 = vlaneseq
  %v3013 = vshrl.u32 %v3012, 7
  %v3014 = vsub.s32 %v3011, %v3013
  %v3015 = vrot.slane %v3001, %v3014
  %v3016 = vcombine.low %v2960, %v2976
  %v3017 = vcombine.high %v2960, %v2976
  %v3019 = vunpack.c.l.s4 1934713408
  %v3020 = vunpack.c.0.s8 %v3019
  %v3021 = vlaneseq
  %v3022 = vshrl.u32 %v3021, 7
  %v3023 = vsub.s32 %v3020, %v3022
  %v3024 = vrot.slane %v3016, %v3023
  %v3026 = vunpack.c.l.s4 1934713408
  %v3027 = vunpack.c.0.s8 %v3026
  %v3028 = vlaneseq
  %v3029 = vshrl.u32 %v3028, 7
  %v3030 = vsub.s32 %v3027, %v3029
  %v3031 = vrot.slane %v3017, %v3030
  %v3032 = vcombine.low %v2967, %v2983
  %v3033 = vcombine.high %v2967, %v2983
  %v3035 = vunpack.c.l.s4 1934713408
  %v3036 = vunpack.c.0.s8 %v3035
  %v3037 = vlaneseq
  %v3038 = vshrl.u32 %v3037, 7
  %v3039 = vsub.s32 %v3036, %v3038
  %v3040 = vrot.slane %v3032, %v3039
  %v3042 = vunpack.c.l.s4 1934713408
  %v3043 = vunpack.c.0.s8 %v3042
  %v3044 = vlaneseq
  %v3045 = vshrl.u32 %v3044, 7
  %v3046 = vsub.s32 %v3043, %v3045
  %v3047 = vrot.slane %v3033, %v3046
  %v3048 = vcombine.low %v2992, %v3008
  %v3049 = vcombine.high %v2992, %v3008
  %v3051 = vunpack.c.l.s4 1934713408
  %v3052 = vunpack.c.0.s8 %v3051
  %v3053 = vlaneseq
  %v3054 = vshrl.u32 %v3053, 7
  %v3055 = vsub.s32 %v3052, %v3054
  %v3056 = vrot.slane %v3048, %v3055
  %v3058 = vunpack.c.l.s4 1934713408
  %v3059 = vunpack.c.0.s8 %v3058
  %v3060 = vlaneseq
  %v3061 = vshrl.u32 %v3060, 7
  %v3062 = vsub.s32 %v3059, %v3061
  %v3063 = vrot.slane %v3049, %v3062
  %v3064 = vcombine.low %v2999, %v3015
  %v3065 = vcombine.high %v2999, %v3015
  %v3067 = vunpack.c.l.s4 1934713408
  %v3068 = vunpack.c.0.s8 %v3067
  %v3069 = vlaneseq
  %v3070 = vshrl.u32 %v3069, 7
  %v3071 = vsub.s32 %v3068, %v3070
  %v3072 = vrot.slane %v3064, %v3071
  %v3074 = vunpack.c.l.s4 1934713408
  %v3075 = vunpack.c.0.s8 %v3074
  %v3076 = vlaneseq
  %v3077 = vshrl.u32 %v3076, 7
  %v3078 = vsub.s32 %v3075, %v3077
  %v3079 = vrot.slane %v3065, %v3078
  %v3080 = vcombine.low %v3024, %v3056
  %v3081 = vcombine.high %v3024, %v3056
  %v3082 = vcombine.low %v3031, %v3063
  %v3083 = vcombine.high %v3031, %v3063
  %v3084 = vcombine.low %v3040, %v3072
  %v3085 = vcombine.high %v3040, %v3072
  %v3086 = vcombine.low %v3047, %v3079
  %v3087 = vcombine.high %v3047, %v3079
  %v3090 = vpack.i.b16 %v2808, %v2672
  %v3091 = vshrl.u32 %v2672, 16
  %v3092 = vshrl.u32 %v2808, 16
  %v3093 = vpack.i.b16 %v3092, %v3091
  %v3096 = vpack.i.b16 %v2809, %v2673
  %v3097 = vshrl.u32 %v2673, 16
  %v3098 = vshrl.u32 %v2809, 16
  %v3099 = vpack.i.b16 %v3098, %v3097
  %v3102 = vpack.i.b16 %v2810, %v2674
  %v3103 = vshrl.u32 %v2674, 16
  %v3104 = vshrl.u32 %v2810, 16
  %v3105 = vpack.i.b16 %v3104, %v3103
  %v3108 = vpack.i.b16 %v2811, %v2675
  %v3109 = vshrl.u32 %v2675, 16
  %v3110 = vshrl.u32 %v2811, 16
  %v3111 = vpack.i.b16 %v3110, %v3109
  %v3114 = vpack.i.b16 %v2812, %v2676
  %v3115 = vshrl.u32 %v2676, 16
  %v3116 = vshrl.u32 %v2812, 16
  %v3117 = vpack.i.b16 %v3116, %v3115
  %v3120 = vpack.i.b16 %v2813, %v2677
  %v3121 = vshrl.u32 %v2677, 16
  %v3122 = vshrl.u32 %v2813, 16
  %v3123 = vpack.i.b16 %v3122, %v3121
  %v3126 = vpack.i.b16 %v2814, %v2678
  %v3127 = vshrl.u32 %v2678, 16
  %v3128 = vshrl.u32 %v2814, 16
  %v3129 = vpack.i.b16 %v3128, %v3127
  %v3132 = vpack.i.b16 %v2815, %v2679
  %v3133 = vshrl.u32 %v2679, 16
  %v3134 = vshrl.u32 %v2815, 16
  %v3135 = vpack.i.b16 %v3134, %v3133
  %v3138 = vpack.i.b16 %v3080, %v2944
  %v3139 = vshrl.u32 %v2944, 16
  %v3140 = vshrl.u32 %v3080, 16
  %v3141 = vpack.i.b16 %v3140, %v3139
  %v3144 = vpack.i.b16 %v3081, %v2945
  %v3145 = vshrl.u32 %v2945, 16
  %v3146 = vshrl.u32 %v3081, 16
  %v3147 = vpack.i.b16 %v3146, %v3145
  %v3150 = vpack.i.b16 %v3082, %v2946
  %v3151 = vshrl.u32 %v2946, 16
  %v3152 = vshrl.u32 %v3082, 16
  %v3153 = vpack.i.b16 %v3152, %v3151
  %v3156 = vpack.i.b16 %v3083, %v2947
  %v3157 = vshrl.u32 %v2947, 16
  %v3158 = vshrl.u32 %v3083, 16
  %v3159 = vpack.i.b16 %v3158, %v3157
  %v3162 = vpack.i.b16 %v3084, %v2948
  %v3163 = vshrl.u32 %v2948, 16
  %v3164 = vshrl.u32 %v3084, 16
  %v3165 = vpack.i.b16 %v3164, %v3163
  %v3168 = vpack.i.b16 %v3085, %v2949
  %v3169 = vshrl.u32 %v2949, 16
  %v3170 = vshrl.u32 %v3085, 16
  %v3171 = vpack.i.b16 %v3170, %v3169
  %v3174 = vpack.i.b16 %v3086, %v2950
  %v3175 = vshrl.u32 %v2950, 16
  %v3176 = vshrl.u32 %v3086, 16
  %v3177 = vpack.i.b16 %v3176, %v3175
  %v3180 = vpack.i.b16 %v3087, %v2951
  %3181 = vrot.lane.b32.xlu0 %v3093, 8
  %v3182 = vpop.permute.xlu0 %3181
  %3183 = vrot.lane.b32.xlu0 %v3096, 16
  %v3184 = vpop.permute.xlu0 %3183
  %3185 = vrot.lane.b32.xlu0 %v3099, 24
  %v3186 = vpop.permute.xlu0 %3185
  %3187 = vrot.lane.b32.xlu0 %v3102, 32
  %v3188 = vpop.permute.xlu0 %3187
  %3189 = vrot.lane.b32.xlu0 %v3105, 40
  %v3190 = vpop.permute.xlu0 %3189
  %3191 = vrot.lane.b32.xlu0 %v3108, 48
  %v3192 = vpop.permute.xlu0 %3191
  %3193 = vrot.lane.b32.xlu0 %v3111, 56
  %v3194 = vpop.permute.xlu0 %3193
  %3195 = vrot.lane.b32.xlu0 %v3114, 64
  %v3196 = vpop.permute.xlu0 %3195
  %3197 = vrot.lane.b32.xlu0 %v3117, 72
  %v3198 = vpop.permute.xlu0 %3197
  %3199 = vrot.lane.b32.xlu0 %v3120, 80
  %v3200 = vpop.permute.xlu0 %3199
  %3201 = vrot.lane.b32.xlu0 %v3123, 88
  %v3202 = vpop.permute.xlu0 %3201
  %3203 = vrot.lane.b32.xlu0 %v3126, 96
  %v3204 = vpop.permute.xlu0 %3203
  %3205 = vrot.lane.b32.xlu0 %v3129, 104
  %v3206 = vpop.permute.xlu0 %3205
  %3207 = vrot.lane.b32.xlu0 %v3132, 112
  %v3208 = vpop.permute.xlu0 %3207
  %3209 = vrot.lane.b32.xlu0 %v3135, 120
  %v3210 = vpop.permute.xlu0 %3209
  %3211 = vrot.lane.b32.xlu0 %v3141, 8
  %v3212 = vpop.permute.xlu0 %3211
  %3213 = vrot.lane.b32.xlu0 %v3144, 16
  %v3214 = vpop.permute.xlu0 %3213
  %3215 = vrot.lane.b32.xlu0 %v3147, 24
  %v3216 = vpop.permute.xlu0 %3215
  %3217 = vrot.lane.b32.xlu0 %v3150, 32
  %v3218 = vpop.permute.xlu0 %3217
  %3219 = vrot.lane.b32.xlu0 %v3153, 40
  %v3220 = vpop.permute.xlu0 %3219
  %3221 = vrot.lane.b32.xlu0 %v3156, 48
  %v3222 = vpop.permute.xlu0 %3221
  %3223 = vrot.lane.b32.xlu0 %v3159, 56
  %v3224 = vpop.permute.xlu0 %3223
  %3225 = vrot.lane.b32.xlu0 %v3162, 64
  %v3226 = vpop.permute.xlu0 %3225
  %3227 = vrot.lane.b32.xlu0 %v3165, 72
  %v3228 = vpop.permute.xlu0 %3227
  %3229 = vrot.lane.b32.xlu0 %v3168, 80
  %v3230 = vpop.permute.xlu0 %3229
  %3231 = vrot.lane.b32.xlu0 %v3171, 88
  %v3232 = vpop.permute.xlu0 %3231
  %3233 = vrot.lane.b32.xlu0 %v3174, 96
  %v3234 = vpop.permute.xlu0 %3233
  %3235 = vrot.lane.b32.xlu0 %v3177, 104
  %v3236 = vpop.permute.xlu0 %3235
  %3237 = vrot.lane.b32.xlu0 %v3180, 112
  %v3238 = vpop.permute.xlu0 %3237
  %v3241 = vsel %vm673, %v3090, %v3182
  %v3243 = vsel %vm675, %v3241, %v3184
  %v3245 = vsel %vm677, %v3243, %v3186
  %v3247 = vsel %vm679, %v3245, %v3188
  %v3249 = vsel %vm681, %v3247, %v3190
  %v3251 = vsel %vm683, %v3249, %v3192
  %v3253 = vsel %vm685, %v3251, %v3194
  %v3255 = vsel %vm687, %v3253, %v3196
  %v3257 = vsel %vm689, %v3255, %v3198
  %v3259 = vsel %vm691, %v3257, %v3200
  %v3261 = vsel %vm693, %v3259, %v3202
  %v3263 = vsel %vm695, %v3261, %v3204
  %v3265 = vsel %vm697, %v3263, %v3206
  %v3267 = vsel %vm699, %v3265, %v3208
  %v3269 = vsel %vm701, %v3267, %v3210
  %v3273 = vsel %vm673, %v3138, %v3212
  %v3275 = vsel %vm675, %v3273, %v3214
  %v3277 = vsel %vm677, %v3275, %v3216
  %v3279 = vsel %vm679, %v3277, %v3218
  %v3281 = vsel %vm681, %v3279, %v3220
  %v3283 = vsel %vm683, %v3281, %v3222
  %v3285 = vsel %vm685, %v3283, %v3224
  %v3287 = vsel %vm687, %v3285, %v3226
  %v3289 = vsel %vm689, %v3287, %v3228
  %v3291 = vsel %vm691, %v3289, %v3230
  %v3293 = vsel %vm693, %v3291, %v3232
  %v3295 = vsel %vm695, %v3293, %v3234
  %v3297 = vsel %vm697, %v3295, %v3236
  %v3299 = vsel %vm699, %v3297, %v3238
  %3303 = vrot.lane.b32.xlu0 %v3269, 120
  %v3304 = vpop.permute.xlu0 %3303
  %3305 = vrot.lane.b32.xlu0 %v3299, 120
  %v3306 = vpop.permute.xlu0 %3305
  %vm3307 = vcmask 982016
  %v3308 = vsel %vm3307, %v3304, %v3306
  %3311 = vrot.lane.b32.xlu0 %v3269, 112
  %v3312 = vpop.permute.xlu0 %3311
  %3313 = vrot.lane.b32.xlu0 %v3299, 112
  %v3314 = vpop.permute.xlu0 %3313
  %vm3315 = vcmask 916480
  %v3316 = vsel %vm3315, %v3312, %v3314
  %v3319 = vld [vmem:[%s3] sm:$0xf]
  %v3320 = vld [vmem:[%s3 + $0x4] sm:$0xf]
  %v3321 = vld [vmem:[%s3 + $0x8] sm:$0xf]
  %v3322 = vld [vmem:[%s3 + $0xc] sm:$0xf]
  %v3323 = vld [vmem:[%s4] sm:$0xff]
  %v3324 = vld [vmem:[%s4 + $0x8] sm:$0xff]
  %v3325 = vld [vmem:[%s4 + $0x10] sm:$0xff]
  %v3326 = vld [vmem:[%s4 + $0x18] sm:$0xff]
  %3328 = vset.pattern.permute.xlu0 0
  %3329 = vperm.xlu0 %3328, %v3323
  %v3330 = vpop.permute.xlu0 %3329
  %3333 = vset.pattern.permute.xlu0 0
  %3334 = vperm.xlu0 %3333, %v3324
  %v3335 = vpop.permute.xlu0 %3334
  %3338 = vset.pattern.permute.xlu0 0
  %3339 = vperm.xlu0 %3338, %v3325
  %v3340 = vpop.permute.xlu0 %3339
  %3343 = vset.pattern.permute.xlu0 0
  %3344 = vperm.xlu0 %3343, %v3326
  %v3345 = vpop.permute.xlu0 %3344
  %v3351 = vunpack.c.l.b16 %v3319
  %v3352 = vunpack.c.l.b16 %v3320
  %v3353 = vunpack.c.l.b16 %v3321
  %v3354 = vunpack.c.l.b16 %v3322
  %v3355 = vpack.c.b16 %v3352, %v3351
  %v3356 = vpack.c.b16 %v3354, %v3353
  %v3358 = vsel %vm683, %v3355, 0
  %v3361 = vsel %vm683, %v3356, 0
  %3363 = vmatprep.subr.bf16.mxu0 %v3299
  %3364 = vmatpush1.bf16.msra.mxu0 %v3269
  %3365 = vmatprep.subr.bf16.mxu0 %v3306
  %3366 = vmatpush1.bf16.msra.mxu0 %v3308
  %3367 = vmatprep.subr.bf16.mxu0 %v3314
  %3368 = vmatpush1.bf16.msra.mxu0 %v3316
  %3369 = vmatprep.subr.bf16.mxu0 0
  %3370 = vmatpush1.bf16.msra.mxu0 0
  %3371 = vmatprep.subr.bf16.mxu0 0
  %3372 = vmatpush1.bf16.msra.mxu0 0
  %3373 = vmatprep.subr.bf16.mxu0 0
  %3374 = vmatpush1.bf16.msra.mxu0 0
  %3375 = vmatprep.subr.bf16.mxu0 0
  %3376 = vmatpush1.bf16.msra.mxu0 0
  %3377 = vmatprep.subr.bf16.mxu0 0
  %3378 = vmatpush1.bf16.msra.mxu0 0
  %3379 = vmatprep.subr.bf16.mxu0 0
  %3380 = vmatpush1.bf16.msra.mxu0 0
  %3381 = vmatprep.subr.bf16.mxu0 0
  %3382 = vmatpush1.bf16.msra.mxu0 0
  %3383 = vmatprep.subr.bf16.mxu0 0
  %3384 = vmatpush1.bf16.msra.mxu0 0
  %3385 = vmatprep.subr.bf16.mxu0 0
  %3386 = vmatpush1.bf16.msra.mxu0 0
  %3387 = vmatprep.subr.bf16.mxu0 0
  %3388 = vmatpush1.bf16.msra.mxu0 0
  %3389 = vmatprep.subr.bf16.mxu0 0
  %3390 = vmatpush1.bf16.msra.mxu0 0
  %3391 = vmatprep.subr.bf16.mxu0 0
  %3392 = vmatpush1.bf16.msra.mxu0 0
  %3393 = vmatprep.subr.bf16.mxu0 0
  %3394 = vmatpush1.bf16.msra.mxu0 0
  %3395 = vmatprep.mubr.bf16.mxu0 0
  %3396 = vmatmul.mubr.bf16.gmra.mrb[0].mxu0 %v3358
  %v3397 = vpop.f32.mrb[0].mxu0
  %v3398 = vadd.f32 %v3330, %v3397
  %v3399 = vpop.f32.mrb[0].mxu0
  %v3400 = vadd.f32 %v3330, %v3399
  %v3401 = vpop.f32.mrb[0].mxu0
  %v3402 = vadd.f32 %v3335, %v3401
  %v3403 = vpop.f32.mrb[0].mxu0
  %v3404 = vadd.f32 %v3335, %v3403
  %3405 = vmatprep.mubr.bf16.mxu0 0
  %3406 = vmatmul.mubr.bf16.gmra.mrb[0].mxu0 %v3361
  %v3407 = vpop.f32.mrb[0].mxu0
  %v3408 = vadd.f32 %v3340, %v3407
  %v3409 = vpop.f32.mrb[0].mxu0
  %v3410 = vadd.f32 %v3340, %v3409
  %v3411 = vpop.f32.mrb[0].mxu0
  %v3412 = vadd.f32 %v3345, %v3411
  %v3413 = vpop.f32.mrb[0].mxu0
  %v3414 = vadd.f32 %v3345, %v3413
  %3415 = vdwg.mxu0
  %v3416 = vmax.f32 %v3398, 0.0
  %v3417 = vmax.f32 %v3400, 0.0
  %v3418 = vmax.f32 %v3402, 0.0
  %v3419 = vmax.f32 %v3404, 0.0
  %v3420 = vmax.f32 %v3408, 0.0
  %v3421 = vmax.f32 %v3410, 0.0
  %v3422 = vmax.f32 %v3412, 0.0
  %v3423 = vmax.f32 %v3414, 0.0
  %3428 = vrot.lane.b32.xlu0 %v3416, 112
  %v3429 = vpop.permute.xlu0 %3428
  %3430 = vrot.lane.b32.xlu0 %v3418, 112
  %v3431 = vpop.permute.xlu0 %3430
  %3432 = vrot.lane.b32.xlu0 %v3420, 112
  %v3433 = vpop.permute.xlu0 %3432
  %3434 = vrot.lane.b32.xlu0 %v3422, 112
  %v3435 = vpop.permute.xlu0 %3434
  %3440 = vrot.lane.b32.xlu0 %v3416, 96
  %v3441 = vpop.permute.xlu0 %3440
  %3442 = vrot.lane.b32.xlu0 %v3418, 96
  %v3443 = vpop.permute.xlu0 %3442
  %3444 = vrot.lane.b32.xlu0 %v3420, 96
  %v3445 = vpop.permute.xlu0 %3444
  %3446 = vrot.lane.b32.xlu0 %v3422, 96
  %v3447 = vpop.permute.xlu0 %3446
  %3452 = vrot.lane.b32.xlu0 %v3416, 80
  %v3453 = vpop.permute.xlu0 %3452
  %3454 = vrot.lane.b32.xlu0 %v3418, 80
  %v3455 = vpop.permute.xlu0 %3454
  %3456 = vrot.lane.b32.xlu0 %v3420, 80
  %v3457 = vpop.permute.xlu0 %3456
  %3458 = vrot.lane.b32.xlu0 %v3422, 80
  %v3459 = vpop.permute.xlu0 %3458
  %3464 = vrot.lane.b32.xlu0 %v3416, 64
  %v3465 = vpop.permute.xlu0 %3464
  %3466 = vrot.lane.b32.xlu0 %v3418, 64
  %v3467 = vpop.permute.xlu0 %3466
  %3468 = vrot.lane.b32.xlu0 %v3420, 64
  %v3469 = vpop.permute.xlu0 %3468
  %3470 = vrot.lane.b32.xlu0 %v3422, 64
  %v3471 = vpop.permute.xlu0 %3470
  %3476 = vrot.lane.b32.xlu0 %v3416, 48
  %v3477 = vpop.permute.xlu0 %3476
  %3478 = vrot.lane.b32.xlu0 %v3418, 48
  %v3479 = vpop.permute.xlu0 %3478
  %3480 = vrot.lane.b32.xlu0 %v3420, 48
  %v3481 = vpop.permute.xlu0 %3480
  %3482 = vrot.lane.b32.xlu0 %v3422, 48
  %v3483 = vpop.permute.xlu0 %3482
  %3488 = vrot.lane.b32.xlu0 %v3416, 32
  %v3489 = vpop.permute.xlu0 %3488
  %3490 = vrot.lane.b32.xlu0 %v3418, 32
  %v3491 = vpop.permute.xlu0 %3490
  %3492 = vrot.lane.b32.xlu0 %v3420, 32
  %v3493 = vpop.permute.xlu0 %3492
  %3494 = vrot.lane.b32.xlu0 %v3422, 32
  %v3495 = vpop.permute.xlu0 %3494
  %3500 = vrot.lane.b32.xlu0 %v3416, 16
  %v3501 = vpop.permute.xlu0 %3500
  %3502 = vrot.lane.b32.xlu0 %v3418, 16
  %v3503 = vpop.permute.xlu0 %3502
  %3504 = vrot.lane.b32.xlu0 %v3420, 16
  %v3505 = vpop.permute.xlu0 %3504
  %3506 = vrot.lane.b32.xlu0 %v3422, 16
  %v3507 = vpop.permute.xlu0 %3506
  %3516 = vrot.lane.b32.xlu0 %v3417, 112
  %v3517 = vpop.permute.xlu0 %3516
  %3518 = vrot.lane.b32.xlu0 %v3419, 112
  %v3519 = vpop.permute.xlu0 %3518
  %3520 = vrot.lane.b32.xlu0 %v3421, 112
  %v3521 = vpop.permute.xlu0 %3520
  %3522 = vrot.lane.b32.xlu0 %v3423, 112
  %v3523 = vpop.permute.xlu0 %3522
  %3528 = vrot.lane.b32.xlu0 %v3417, 96
  %v3529 = vpop.permute.xlu0 %3528
  %3530 = vrot.lane.b32.xlu0 %v3419, 96
  %v3531 = vpop.permute.xlu0 %3530
  %3532 = vrot.lane.b32.xlu0 %v3421, 96
  %v3533 = vpop.permute.xlu0 %3532
  %3534 = vrot.lane.b32.xlu0 %v3423, 96
  %v3535 = vpop.permute.xlu0 %3534
  %3540 = vrot.lane.b32.xlu0 %v3417, 80
  %v3541 = vpop.permute.xlu0 %3540
  %3542 = vrot.lane.b32.xlu0 %v3419, 80
  %v3543 = vpop.permute.xlu0 %3542
  %3544 = vrot.lane.b32.xlu0 %v3421, 80
  %v3545 = vpop.permute.xlu0 %3544
  %3546 = vrot.lane.b32.xlu0 %v3423, 80
  %v3547 = vpop.permute.xlu0 %3546
  %3552 = vrot.lane.b32.xlu0 %v3417, 64
  %v3553 = vpop.permute.xlu0 %3552
  %3554 = vrot.lane.b32.xlu0 %v3419, 64
  %v3555 = vpop.permute.xlu0 %3554
  %3556 = vrot.lane.b32.xlu0 %v3421, 64
  %v3557 = vpop.permute.xlu0 %3556
  %3558 = vrot.lane.b32.xlu0 %v3423, 64
  %v3559 = vpop.permute.xlu0 %3558
  %3564 = vrot.lane.b32.xlu0 %v3417, 48
  %v3565 = vpop.permute.xlu0 %3564
  %3566 = vrot.lane.b32.xlu0 %v3419, 48
  %v3567 = vpop.permute.xlu0 %3566
  %3568 = vrot.lane.b32.xlu0 %v3421, 48
  %v3569 = vpop.permute.xlu0 %3568
  %3570 = vrot.lane.b32.xlu0 %v3423, 48
  %v3571 = vpop.permute.xlu0 %3570
  %v3576 = vcombine.low %v3416, %v3441
  %v3577 = vcombine.high %v3416, %v3441
  %v3579 = vunpack.c.l.s4 1983009808
  %v3580 = vunpack.c.0.s8 %v3579
  %v3581 = vlaneseq
  %v3582 = vshrl.u32 %v3581, 7
  %v3583 = vsub.s32 %v3580, %v3582
  %v3584 = vrot.slane %v3576, %v3583
  %v3586 = vunpack.c.l.s4 1983009808
  %v3587 = vunpack.c.0.s8 %v3586
  %v3588 = vlaneseq
  %v3589 = vshrl.u32 %v3588, 7
  %v3590 = vsub.s32 %v3587, %v3589
  %v3591 = vrot.slane %v3577, %v3590
  %v3592 = vcombine.low %v3429, %v3453
  %v3593 = vcombine.high %v3429, %v3453
  %v3595 = vunpack.c.l.s4 1983009808
  %v3596 = vunpack.c.0.s8 %v3595
  %v3597 = vlaneseq
  %v3598 = vshrl.u32 %v3597, 7
  %v3599 = vsub.s32 %v3596, %v3598
  %v3600 = vrot.slane %v3592, %v3599
  %v3602 = vunpack.c.l.s4 1983009808
  %v3603 = vunpack.c.0.s8 %v3602
  %v3604 = vlaneseq
  %v3605 = vshrl.u32 %v3604, 7
  %v3606 = vsub.s32 %v3603, %v3605
  %v3607 = vrot.slane %v3593, %v3606
  %v3608 = vcombine.low %v3465, %v3489
  %v3609 = vcombine.high %v3465, %v3489
  %v3611 = vunpack.c.l.s4 1983009808
  %v3612 = vunpack.c.0.s8 %v3611
  %v3613 = vlaneseq
  %v3614 = vshrl.u32 %v3613, 7
  %v3615 = vsub.s32 %v3612, %v3614
  %v3616 = vrot.slane %v3608, %v3615
  %v3618 = vunpack.c.l.s4 1983009808
  %v3619 = vunpack.c.0.s8 %v3618
  %v3620 = vlaneseq
  %v3621 = vshrl.u32 %v3620, 7
  %v3622 = vsub.s32 %v3619, %v3621
  %v3623 = vrot.slane %v3609, %v3622
  %v3624 = vcombine.low %v3477, %v3501
  %v3625 = vcombine.high %v3477, %v3501
  %v3627 = vunpack.c.l.s4 1983009808
  %v3628 = vunpack.c.0.s8 %v3627
  %v3629 = vlaneseq
  %v3630 = vshrl.u32 %v3629, 7
  %v3631 = vsub.s32 %v3628, %v3630
  %v3632 = vrot.slane %v3624, %v3631
  %v3634 = vunpack.c.l.s4 1983009808
  %v3635 = vunpack.c.0.s8 %v3634
  %v3636 = vlaneseq
  %v3637 = vshrl.u32 %v3636, 7
  %v3638 = vsub.s32 %v3635, %v3637
  %v3639 = vrot.slane %v3625, %v3638
  %v3640 = vcombine.low %v3584, %v3600
  %v3641 = vcombine.high %v3584, %v3600
  %v3643 = vunpack.c.l.s4 1934713408
  %v3644 = vunpack.c.0.s8 %v3643
  %v3645 = vlaneseq
  %v3646 = vshrl.u32 %v3645, 7
  %v3647 = vsub.s32 %v3644, %v3646
  %v3648 = vrot.slane %v3640, %v3647
  %v3650 = vunpack.c.l.s4 1934713408
  %v3651 = vunpack.c.0.s8 %v3650
  %v3652 = vlaneseq
  %v3653 = vshrl.u32 %v3652, 7
  %v3654 = vsub.s32 %v3651, %v3653
  %v3655 = vrot.slane %v3641, %v3654
  %v3656 = vcombine.low %v3591, %v3607
  %v3657 = vcombine.high %v3591, %v3607
  %v3659 = vunpack.c.l.s4 1934713408
  %v3660 = vunpack.c.0.s8 %v3659
  %v3661 = vlaneseq
  %v3662 = vshrl.u32 %v3661, 7
  %v3663 = vsub.s32 %v3660, %v3662
  %v3664 = vrot.slane %v3656, %v3663
  %v3666 = vunpack.c.l.s4 1934713408
  %v3667 = vunpack.c.0.s8 %v3666
  %v3668 = vlaneseq
  %v3669 = vshrl.u32 %v3668, 7
  %v3670 = vsub.s32 %v3667, %v3669
  %v3671 = vrot.slane %v3657, %v3670
  %v3672 = vcombine.low %v3616, %v3632
  %v3673 = vcombine.high %v3616, %v3632
  %v3675 = vunpack.c.l.s4 1934713408
  %v3676 = vunpack.c.0.s8 %v3675
  %v3677 = vlaneseq
  %v3678 = vshrl.u32 %v3677, 7
  %v3679 = vsub.s32 %v3676, %v3678
  %v3680 = vrot.slane %v3672, %v3679
  %v3682 = vunpack.c.l.s4 1934713408
  %v3683 = vunpack.c.0.s8 %v3682
  %v3684 = vlaneseq
  %v3685 = vshrl.u32 %v3684, 7
  %v3686 = vsub.s32 %v3683, %v3685
  %v3687 = vrot.slane %v3673, %v3686
  %v3688 = vcombine.low %v3623, %v3639
  %v3689 = vcombine.high %v3623, %v3639
  %v3691 = vunpack.c.l.s4 1934713408
  %v3692 = vunpack.c.0.s8 %v3691
  %v3693 = vlaneseq
  %v3694 = vshrl.u32 %v3693, 7
  %v3695 = vsub.s32 %v3692, %v3694
  %v3696 = vrot.slane %v3688, %v3695
  %v3698 = vunpack.c.l.s4 1934713408
  %v3699 = vunpack.c.0.s8 %v3698
  %v3700 = vlaneseq
  %v3701 = vshrl.u32 %v3700, 7
  %v3702 = vsub.s32 %v3699, %v3701
  %v3703 = vrot.slane %v3689, %v3702
  %v3704 = vcombine.low %v3648, %v3680
  %v3705 = vcombine.high %v3648, %v3680
  %v3706 = vcombine.low %v3655, %v3687
  %v3707 = vcombine.high %v3655, %v3687
  %v3708 = vcombine.low %v3664, %v3696
  %v3709 = vcombine.high %v3664, %v3696
  %v3710 = vcombine.low %v3671, %v3703
  %v3711 = vcombine.high %v3671, %v3703
  %v3712 = vcombine.low %v3417, %v3529
  %v3713 = vcombine.high %v3417, %v3529
  %v3715 = vunpack.c.l.s4 1983009808
  %v3716 = vunpack.c.0.s8 %v3715
  %v3717 = vlaneseq
  %v3718 = vshrl.u32 %v3717, 7
  %v3719 = vsub.s32 %v3716, %v3718
  %v3720 = vrot.slane %v3712, %v3719
  %v3722 = vunpack.c.l.s4 1983009808
  %v3723 = vunpack.c.0.s8 %v3722
  %v3724 = vlaneseq
  %v3725 = vshrl.u32 %v3724, 7
  %v3726 = vsub.s32 %v3723, %v3725
  %v3727 = vrot.slane %v3713, %v3726
  %v3728 = vcombine.low %v3517, %v3541
  %v3729 = vcombine.high %v3517, %v3541
  %v3731 = vunpack.c.l.s4 1983009808
  %v3732 = vunpack.c.0.s8 %v3731
  %v3733 = vlaneseq
  %v3734 = vshrl.u32 %v3733, 7
  %v3735 = vsub.s32 %v3732, %v3734
  %v3736 = vrot.slane %v3728, %v3735
  %v3738 = vunpack.c.l.s4 1983009808
  %v3739 = vunpack.c.0.s8 %v3738
  %v3740 = vlaneseq
  %v3741 = vshrl.u32 %v3740, 7
  %v3742 = vsub.s32 %v3739, %v3741
  %v3743 = vrot.slane %v3729, %v3742
  %v3744 = vcombine.high %v3553, 0.0
  %v3746 = vunpack.c.l.s4 1983009808
  %v3747 = vunpack.c.0.s8 %v3746
  %v3748 = vlaneseq
  %v3749 = vshrl.u32 %v3748, 7
  %v3750 = vsub.s32 %v3747, %v3749
  %v3751 = vrot.slane %v3553, %v3750
  %v3753 = vunpack.c.l.s4 1983009808
  %v3754 = vunpack.c.0.s8 %v3753
  %v3755 = vlaneseq
  %v3756 = vshrl.u32 %v3755, 7
  %v3757 = vsub.s32 %v3754, %v3756
  %v3758 = vrot.slane %v3744, %v3757
  %v3759 = vcombine.high %v3565, 0.0
  %v3761 = vunpack.c.l.s4 1983009808
  %v3762 = vunpack.c.0.s8 %v3761
  %v3763 = vlaneseq
  %v3764 = vshrl.u32 %v3763, 7
  %v3765 = vsub.s32 %v3762, %v3764
  %v3766 = vrot.slane %v3565, %v3765
  %v3768 = vunpack.c.l.s4 1983009808
  %v3769 = vunpack.c.0.s8 %v3768
  %v3770 = vlaneseq
  %v3771 = vshrl.u32 %v3770, 7
  %v3772 = vsub.s32 %v3769, %v3771
  %v3773 = vrot.slane %v3759, %v3772
  %v3774 = vcombine.low %v3720, %v3736
  %v3775 = vcombine.high %v3720, %v3736
  %v3777 = vunpack.c.l.s4 1934713408
  %v3778 = vunpack.c.0.s8 %v3777
  %v3779 = vlaneseq
  %v3780 = vshrl.u32 %v3779, 7
  %v3781 = vsub.s32 %v3778, %v3780
  %v3782 = vrot.slane %v3774, %v3781
  %v3784 = vunpack.c.l.s4 1934713408
  %v3785 = vunpack.c.0.s8 %v3784
  %v3786 = vlaneseq
  %v3787 = vshrl.u32 %v3786, 7
  %v3788 = vsub.s32 %v3785, %v3787
  %v3789 = vrot.slane %v3775, %v3788
  %v3790 = vcombine.low %v3727, %v3743
  %v3791 = vcombine.high %v3727, %v3743
  %v3793 = vunpack.c.l.s4 1934713408
  %v3794 = vunpack.c.0.s8 %v3793
  %v3795 = vlaneseq
  %v3796 = vshrl.u32 %v3795, 7
  %v3797 = vsub.s32 %v3794, %v3796
  %v3798 = vrot.slane %v3790, %v3797
  %v3800 = vunpack.c.l.s4 1934713408
  %v3801 = vunpack.c.0.s8 %v3800
  %v3802 = vlaneseq
  %v3803 = vshrl.u32 %v3802, 7
  %v3804 = vsub.s32 %v3801, %v3803
  %v3805 = vrot.slane %v3791, %v3804
  %v3806 = vcombine.low %v3751, %v3766
  %v3807 = vcombine.high %v3751, %v3766
  %v3809 = vunpack.c.l.s4 1934713408
  %v3810 = vunpack.c.0.s8 %v3809
  %v3811 = vlaneseq
  %v3812 = vshrl.u32 %v3811, 7
  %v3813 = vsub.s32 %v3810, %v3812
  %v3814 = vrot.slane %v3806, %v3813
  %v3816 = vunpack.c.l.s4 1934713408
  %v3817 = vunpack.c.0.s8 %v3816
  %v3818 = vlaneseq
  %v3819 = vshrl.u32 %v3818, 7
  %v3820 = vsub.s32 %v3817, %v3819
  %v3821 = vrot.slane %v3807, %v3820
  %v3822 = vcombine.low %v3758, %v3773
  %v3823 = vcombine.high %v3758, %v3773
  %v3825 = vunpack.c.l.s4 1934713408
  %v3826 = vunpack.c.0.s8 %v3825
  %v3827 = vlaneseq
  %v3828 = vshrl.u32 %v3827, 7
  %v3829 = vsub.s32 %v3826, %v3828
  %v3830 = vrot.slane %v3822, %v3829
  %v3832 = vunpack.c.l.s4 1934713408
  %v3833 = vunpack.c.0.s8 %v3832
  %v3834 = vlaneseq
  %v3835 = vshrl.u32 %v3834, 7
  %v3836 = vsub.s32 %v3833, %v3835
  %v3837 = vrot.slane %v3823, %v3836
  %v3838 = vcombine.low %v3782, %v3814
  %v3839 = vcombine.high %v3782, %v3814
  %v3840 = vcombine.low %v3789, %v3821
  %v3841 = vcombine.high %v3789, %v3821
  %v3842 = vcombine.low %v3798, %v3830
  %v3843 = vcombine.high %v3798, %v3830
  %v3844 = vcombine.low %v3805, %v3837
  %v3845 = vcombine.high %v3805, %v3837
  %v3846 = vcombine.low %v3418, %v3443
  %v3847 = vcombine.high %v3418, %v3443
  %v3849 = vunpack.c.l.s4 1983009808
  %v3850 = vunpack.c.0.s8 %v3849
  %v3851 = vlaneseq
  %v3852 = vshrl.u32 %v3851, 7
  %v3853 = vsub.s32 %v3850, %v3852
  %v3854 = vrot.slane %v3846, %v3853
  %v3856 = vunpack.c.l.s4 1983009808
  %v3857 = vunpack.c.0.s8 %v3856
  %v3858 = vlaneseq
  %v3859 = vshrl.u32 %v3858, 7
  %v3860 = vsub.s32 %v3857, %v3859
  %v3861 = vrot.slane %v3847, %v3860
  %v3862 = vcombine.low %v3431, %v3455
  %v3863 = vcombine.high %v3431, %v3455
  %v3865 = vunpack.c.l.s4 1983009808
  %v3866 = vunpack.c.0.s8 %v3865
  %v3867 = vlaneseq
  %v3868 = vshrl.u32 %v3867, 7
  %v3869 = vsub.s32 %v3866, %v3868
  %v3870 = vrot.slane %v3862, %v3869
  %v3872 = vunpack.c.l.s4 1983009808
  %v3873 = vunpack.c.0.s8 %v3872
  %v3874 = vlaneseq
  %v3875 = vshrl.u32 %v3874, 7
  %v3876 = vsub.s32 %v3873, %v3875
  %v3877 = vrot.slane %v3863, %v3876
  %v3878 = vcombine.low %v3467, %v3491
  %v3879 = vcombine.high %v3467, %v3491
  %v3881 = vunpack.c.l.s4 1983009808
  %v3882 = vunpack.c.0.s8 %v3881
  %v3883 = vlaneseq
  %v3884 = vshrl.u32 %v3883, 7
  %v3885 = vsub.s32 %v3882, %v3884
  %v3886 = vrot.slane %v3878, %v3885
  %v3888 = vunpack.c.l.s4 1983009808
  %v3889 = vunpack.c.0.s8 %v3888
  %v3890 = vlaneseq
  %v3891 = vshrl.u32 %v3890, 7
  %v3892 = vsub.s32 %v3889, %v3891
  %v3893 = vrot.slane %v3879, %v3892
  %v3894 = vcombine.low %v3479, %v3503
  %v3895 = vcombine.high %v3479, %v3503
  %v3897 = vunpack.c.l.s4 1983009808
  %v3898 = vunpack.c.0.s8 %v3897
  %v3899 = vlaneseq
  %v3900 = vshrl.u32 %v3899, 7
  %v3901 = vsub.s32 %v3898, %v3900
  %v3902 = vrot.slane %v3894, %v3901
  %v3904 = vunpack.c.l.s4 1983009808
  %v3905 = vunpack.c.0.s8 %v3904
  %v3906 = vlaneseq
  %v3907 = vshrl.u32 %v3906, 7
  %v3908 = vsub.s32 %v3905, %v3907
  %v3909 = vrot.slane %v3895, %v3908
  %v3910 = vcombine.low %v3854, %v3870
  %v3911 = vcombine.high %v3854, %v3870
  %v3913 = vunpack.c.l.s4 1934713408
  %v3914 = vunpack.c.0.s8 %v3913
  %v3915 = vlaneseq
  %v3916 = vshrl.u32 %v3915, 7
  %v3917 = vsub.s32 %v3914, %v3916
  %v3918 = vrot.slane %v3910, %v3917
  %v3920 = vunpack.c.l.s4 1934713408
  %v3921 = vunpack.c.0.s8 %v3920
  %v3922 = vlaneseq
  %v3923 = vshrl.u32 %v3922, 7
  %v3924 = vsub.s32 %v3921, %v3923
  %v3925 = vrot.slane %v3911, %v3924
  %v3926 = vcombine.low %v3861, %v3877
  %v3927 = vcombine.high %v3861, %v3877
  %v3929 = vunpack.c.l.s4 1934713408
  %v3930 = vunpack.c.0.s8 %v3929
  %v3931 = vlaneseq
  %v3932 = vshrl.u32 %v3931, 7
  %v3933 = vsub.s32 %v3930, %v3932
  %v3934 = vrot.slane %v3926, %v3933
  %v3936 = vunpack.c.l.s4 1934713408
  %v3937 = vunpack.c.0.s8 %v3936
  %v3938 = vlaneseq
  %v3939 = vshrl.u32 %v3938, 7
  %v3940 = vsub.s32 %v3937, %v3939
  %v3941 = vrot.slane %v3927, %v3940
  %v3942 = vcombine.low %v3886, %v3902
  %v3943 = vcombine.high %v3886, %v3902
  %v3945 = vunpack.c.l.s4 1934713408
  %v3946 = vunpack.c.0.s8 %v3945
  %v3947 = vlaneseq
  %v3948 = vshrl.u32 %v3947, 7
  %v3949 = vsub.s32 %v3946, %v3948
  %v3950 = vrot.slane %v3942, %v3949
  %v3952 = vunpack.c.l.s4 1934713408
  %v3953 = vunpack.c.0.s8 %v3952
  %v3954 = vlaneseq
  %v3955 = vshrl.u32 %v3954, 7
  %v3956 = vsub.s32 %v3953, %v3955
  %v3957 = vrot.slane %v3943, %v3956
  %v3958 = vcombine.low %v3893, %v3909
  %v3959 = vcombine.high %v3893, %v3909
  %v3961 = vunpack.c.l.s4 1934713408
  %v3962 = vunpack.c.0.s8 %v3961
  %v3963 = vlaneseq
  %v3964 = vshrl.u32 %v3963, 7
  %v3965 = vsub.s32 %v3962, %v3964
  %v3966 = vrot.slane %v3958, %v3965
  %v3968 = vunpack.c.l.s4 1934713408
  %v3969 = vunpack.c.0.s8 %v3968
  %v3970 = vlaneseq
  %v3971 = vshrl.u32 %v3970, 7
  %v3972 = vsub.s32 %v3969, %v3971
  %v3973 = vrot.slane %v3959, %v3972
  %v3974 = vcombine.low %v3918, %v3950
  %v3975 = vcombine.high %v3918, %v3950
  %v3976 = vcombine.low %v3925, %v3957
  %v3977 = vcombine.high %v3925, %v3957
  %v3978 = vcombine.low %v3934, %v3966
  %v3979 = vcombine.high %v3934, %v3966
  %v3980 = vcombine.low %v3941, %v3973
  %v3981 = vcombine.high %v3941, %v3973
  %v3982 = vcombine.low %v3419, %v3531
  %v3983 = vcombine.high %v3419, %v3531
  %v3985 = vunpack.c.l.s4 1983009808
  %v3986 = vunpack.c.0.s8 %v3985
  %v3987 = vlaneseq
  %v3988 = vshrl.u32 %v3987, 7
  %v3989 = vsub.s32 %v3986, %v3988
  %v3990 = vrot.slane %v3982, %v3989
  %v3992 = vunpack.c.l.s4 1983009808
  %v3993 = vunpack.c.0.s8 %v3992
  %v3994 = vlaneseq
  %v3995 = vshrl.u32 %v3994, 7
  %v3996 = vsub.s32 %v3993, %v3995
  %v3997 = vrot.slane %v3983, %v3996
  %v3998 = vcombine.low %v3519, %v3543
  %v3999 = vcombine.high %v3519, %v3543
  %v4001 = vunpack.c.l.s4 1983009808
  %v4002 = vunpack.c.0.s8 %v4001
  %v4003 = vlaneseq
  %v4004 = vshrl.u32 %v4003, 7
  %v4005 = vsub.s32 %v4002, %v4004
  %v4006 = vrot.slane %v3998, %v4005
  %v4008 = vunpack.c.l.s4 1983009808
  %v4009 = vunpack.c.0.s8 %v4008
  %v4010 = vlaneseq
  %v4011 = vshrl.u32 %v4010, 7
  %v4012 = vsub.s32 %v4009, %v4011
  %v4013 = vrot.slane %v3999, %v4012
  %v4014 = vcombine.high %v3555, 0.0
  %v4016 = vunpack.c.l.s4 1983009808
  %v4017 = vunpack.c.0.s8 %v4016
  %v4018 = vlaneseq
  %v4019 = vshrl.u32 %v4018, 7
  %v4020 = vsub.s32 %v4017, %v4019
  %v4021 = vrot.slane %v3555, %v4020
  %v4023 = vunpack.c.l.s4 1983009808
  %v4024 = vunpack.c.0.s8 %v4023
  %v4025 = vlaneseq
  %v4026 = vshrl.u32 %v4025, 7
  %v4027 = vsub.s32 %v4024, %v4026
  %v4028 = vrot.slane %v4014, %v4027
  %v4029 = vcombine.high %v3567, 0.0
  %v4031 = vunpack.c.l.s4 1983009808
  %v4032 = vunpack.c.0.s8 %v4031
  %v4033 = vlaneseq
  %v4034 = vshrl.u32 %v4033, 7
  %v4035 = vsub.s32 %v4032, %v4034
  %v4036 = vrot.slane %v3567, %v4035
  %v4038 = vunpack.c.l.s4 1983009808
  %v4039 = vunpack.c.0.s8 %v4038
  %v4040 = vlaneseq
  %v4041 = vshrl.u32 %v4040, 7
  %v4042 = vsub.s32 %v4039, %v4041
  %v4043 = vrot.slane %v4029, %v4042
  %v4044 = vcombine.low %v3990, %v4006
  %v4045 = vcombine.high %v3990, %v4006
  %v4047 = vunpack.c.l.s4 1934713408
  %v4048 = vunpack.c.0.s8 %v4047
  %v4049 = vlaneseq
  %v4050 = vshrl.u32 %v4049, 7
  %v4051 = vsub.s32 %v4048, %v4050
  %v4052 = vrot.slane %v4044, %v4051
  %v4054 = vunpack.c.l.s4 1934713408
  %v4055 = vunpack.c.0.s8 %v4054
  %v4056 = vlaneseq
  %v4057 = vshrl.u32 %v4056, 7
  %v4058 = vsub.s32 %v4055, %v4057
  %v4059 = vrot.slane %v4045, %v4058
  %v4060 = vcombine.low %v3997, %v4013
  %v4061 = vcombine.high %v3997, %v4013
  %v4063 = vunpack.c.l.s4 1934713408
  %v4064 = vunpack.c.0.s8 %v4063
  %v4065 = vlaneseq
  %v4066 = vshrl.u32 %v4065, 7
  %v4067 = vsub.s32 %v4064, %v4066
  %v4068 = vrot.slane %v4060, %v4067
  %v4070 = vunpack.c.l.s4 1934713408
  %v4071 = vunpack.c.0.s8 %v4070
  %v4072 = vlaneseq
  %v4073 = vshrl.u32 %v4072, 7
  %v4074 = vsub.s32 %v4071, %v4073
  %v4075 = vrot.slane %v4061, %v4074
  %v4076 = vcombine.low %v4021, %v4036
  %v4077 = vcombine.high %v4021, %v4036
  %v4079 = vunpack.c.l.s4 1934713408
  %v4080 = vunpack.c.0.s8 %v4079
  %v4081 = vlaneseq
  %v4082 = vshrl.u32 %v4081, 7
  %v4083 = vsub.s32 %v4080, %v4082
  %v4084 = vrot.slane %v4076, %v4083
  %v4086 = vunpack.c.l.s4 1934713408
  %v4087 = vunpack.c.0.s8 %v4086
  %v4088 = vlaneseq
  %v4089 = vshrl.u32 %v4088, 7
  %v4090 = vsub.s32 %v4087, %v4089
  %v4091 = vrot.slane %v4077, %v4090
  %v4092 = vcombine.low %v4028, %v4043
  %v4093 = vcombine.high %v4028, %v4043
  %v4095 = vunpack.c.l.s4 1934713408
  %v4096 = vunpack.c.0.s8 %v4095
  %v4097 = vlaneseq
  %v4098 = vshrl.u32 %v4097, 7
  %v4099 = vsub.s32 %v4096, %v4098
  %v4100 = vrot.slane %v4092, %v4099
  %v4102 = vunpack.c.l.s4 1934713408
  %v4103 = vunpack.c.0.s8 %v4102
  %v4104 = vlaneseq
  %v4105 = vshrl.u32 %v4104, 7
  %v4106 = vsub.s32 %v4103, %v4105
  %v4107 = vrot.slane %v4093, %v4106
  %v4108 = vcombine.low %v4052, %v4084
  %v4109 = vcombine.high %v4052, %v4084
  %v4110 = vcombine.low %v4059, %v4091
  %v4111 = vcombine.high %v4059, %v4091
  %v4112 = vcombine.low %v4068, %v4100
  %v4113 = vcombine.high %v4068, %v4100
  %v4114 = vcombine.low %v4075, %v4107
  %v4115 = vcombine.high %v4075, %v4107
  %v4116 = vcombine.low %v3420, %v3445
  %v4117 = vcombine.high %v3420, %v3445
  %v4119 = vunpack.c.l.s4 1983009808
  %v4120 = vunpack.c.0.s8 %v4119
  %v4121 = vlaneseq
  %v4122 = vshrl.u32 %v4121, 7
  %v4123 = vsub.s32 %v4120, %v4122
  %v4124 = vrot.slane %v4116, %v4123
  %v4126 = vunpack.c.l.s4 1983009808
  %v4127 = vunpack.c.0.s8 %v4126
  %v4128 = vlaneseq
  %v4129 = vshrl.u32 %v4128, 7
  %v4130 = vsub.s32 %v4127, %v4129
  %v4131 = vrot.slane %v4117, %v4130
  %v4132 = vcombine.low %v3433, %v3457
  %v4133 = vcombine.high %v3433, %v3457
  %v4135 = vunpack.c.l.s4 1983009808
  %v4136 = vunpack.c.0.s8 %v4135
  %v4137 = vlaneseq
  %v4138 = vshrl.u32 %v4137, 7
  %v4139 = vsub.s32 %v4136, %v4138
  %v4140 = vrot.slane %v4132, %v4139
  %v4142 = vunpack.c.l.s4 1983009808
  %v4143 = vunpack.c.0.s8 %v4142
  %v4144 = vlaneseq
  %v4145 = vshrl.u32 %v4144, 7
  %v4146 = vsub.s32 %v4143, %v4145
  %v4147 = vrot.slane %v4133, %v4146
  %v4148 = vcombine.low %v3469, %v3493
  %v4149 = vcombine.high %v3469, %v3493
  %v4151 = vunpack.c.l.s4 1983009808
  %v4152 = vunpack.c.0.s8 %v4151
  %v4153 = vlaneseq
  %v4154 = vshrl.u32 %v4153, 7
  %v4155 = vsub.s32 %v4152, %v4154
  %v4156 = vrot.slane %v4148, %v4155
  %v4158 = vunpack.c.l.s4 1983009808
  %v4159 = vunpack.c.0.s8 %v4158
  %v4160 = vlaneseq
  %v4161 = vshrl.u32 %v4160, 7
  %v4162 = vsub.s32 %v4159, %v4161
  %v4163 = vrot.slane %v4149, %v4162
  %v4164 = vcombine.low %v3481, %v3505
  %v4165 = vcombine.high %v3481, %v3505
  %v4167 = vunpack.c.l.s4 1983009808
  %v4168 = vunpack.c.0.s8 %v4167
  %v4169 = vlaneseq
  %v4170 = vshrl.u32 %v4169, 7
  %v4171 = vsub.s32 %v4168, %v4170
  %v4172 = vrot.slane %v4164, %v4171
  %v4174 = vunpack.c.l.s4 1983009808
  %v4175 = vunpack.c.0.s8 %v4174
  %v4176 = vlaneseq
  %v4177 = vshrl.u32 %v4176, 7
  %v4178 = vsub.s32 %v4175, %v4177
  %v4179 = vrot.slane %v4165, %v4178
  %v4180 = vcombine.low %v4124, %v4140
  %v4181 = vcombine.high %v4124, %v4140
  %v4183 = vunpack.c.l.s4 1934713408
  %v4184 = vunpack.c.0.s8 %v4183
  %v4185 = vlaneseq
  %v4186 = vshrl.u32 %v4185, 7
  %v4187 = vsub.s32 %v4184, %v4186
  %v4188 = vrot.slane %v4180, %v4187
  %v4190 = vunpack.c.l.s4 1934713408
  %v4191 = vunpack.c.0.s8 %v4190
  %v4192 = vlaneseq
  %v4193 = vshrl.u32 %v4192, 7
  %v4194 = vsub.s32 %v4191, %v4193
  %v4195 = vrot.slane %v4181, %v4194
  %v4196 = vcombine.low %v4131, %v4147
  %v4197 = vcombine.high %v4131, %v4147
  %v4199 = vunpack.c.l.s4 1934713408
  %v4200 = vunpack.c.0.s8 %v4199
  %v4201 = vlaneseq
  %v4202 = vshrl.u32 %v4201, 7
  %v4203 = vsub.s32 %v4200, %v4202
  %v4204 = vrot.slane %v4196, %v4203
  %v4206 = vunpack.c.l.s4 1934713408
  %v4207 = vunpack.c.0.s8 %v4206
  %v4208 = vlaneseq
  %v4209 = vshrl.u32 %v4208, 7
  %v4210 = vsub.s32 %v4207, %v4209
  %v4211 = vrot.slane %v4197, %v4210
  %v4212 = vcombine.low %v4156, %v4172
  %v4213 = vcombine.high %v4156, %v4172
  %v4215 = vunpack.c.l.s4 1934713408
  %v4216 = vunpack.c.0.s8 %v4215
  %v4217 = vlaneseq
  %v4218 = vshrl.u32 %v4217, 7
  %v4219 = vsub.s32 %v4216, %v4218
  %v4220 = vrot.slane %v4212, %v4219
  %v4222 = vunpack.c.l.s4 1934713408
  %v4223 = vunpack.c.0.s8 %v4222
  %v4224 = vlaneseq
  %v4225 = vshrl.u32 %v4224, 7
  %v4226 = vsub.s32 %v4223, %v4225
  %v4227 = vrot.slane %v4213, %v4226
  %v4228 = vcombine.low %v4163, %v4179
  %v4229 = vcombine.high %v4163, %v4179
  %v4231 = vunpack.c.l.s4 1934713408
  %v4232 = vunpack.c.0.s8 %v4231
  %v4233 = vlaneseq
  %v4234 = vshrl.u32 %v4233, 7
  %v4235 = vsub.s32 %v4232, %v4234
  %v4236 = vrot.slane %v4228, %v4235
  %v4238 = vunpack.c.l.s4 1934713408
  %v4239 = vunpack.c.0.s8 %v4238
  %v4240 = vlaneseq
  %v4241 = vshrl.u32 %v4240, 7
  %v4242 = vsub.s32 %v4239, %v4241
  %v4243 = vrot.slane %v4229, %v4242
  %v4244 = vcombine.low %v4188, %v4220
  %v4245 = vcombine.high %v4188, %v4220
  %v4246 = vcombine.low %v4195, %v4227
  %v4247 = vcombine.high %v4195, %v4227
  %v4248 = vcombine.low %v4204, %v4236
  %v4249 = vcombine.high %v4204, %v4236
  %v4250 = vcombine.low %v4211, %v4243
  %v4251 = vcombine.high %v4211, %v4243
  %v4252 = vcombine.low %v3421, %v3533
  %v4253 = vcombine.high %v3421, %v3533
  %v4255 = vunpack.c.l.s4 1983009808
  %v4256 = vunpack.c.0.s8 %v4255
  %v4257 = vlaneseq
  %v4258 = vshrl.u32 %v4257, 7
  %v4259 = vsub.s32 %v4256, %v4258
  %v4260 = vrot.slane %v4252, %v4259
  %v4262 = vunpack.c.l.s4 1983009808
  %v4263 = vunpack.c.0.s8 %v4262
  %v4264 = vlaneseq
  %v4265 = vshrl.u32 %v4264, 7
  %v4266 = vsub.s32 %v4263, %v4265
  %v4267 = vrot.slane %v4253, %v4266
  %v4268 = vcombine.low %v3521, %v3545
  %v4269 = vcombine.high %v3521, %v3545
  %v4271 = vunpack.c.l.s4 1983009808
  %v4272 = vunpack.c.0.s8 %v4271
  %v4273 = vlaneseq
  %v4274 = vshrl.u32 %v4273, 7
  %v4275 = vsub.s32 %v4272, %v4274
  %v4276 = vrot.slane %v4268, %v4275
  %v4278 = vunpack.c.l.s4 1983009808
  %v4279 = vunpack.c.0.s8 %v4278
  %v4280 = vlaneseq
  %v4281 = vshrl.u32 %v4280, 7
  %v4282 = vsub.s32 %v4279, %v4281
  %v4283 = vrot.slane %v4269, %v4282
  %v4284 = vcombine.high %v3557, 0.0
  %v4286 = vunpack.c.l.s4 1983009808
  %v4287 = vunpack.c.0.s8 %v4286
  %v4288 = vlaneseq
  %v4289 = vshrl.u32 %v4288, 7
  %v4290 = vsub.s32 %v4287, %v4289
  %v4291 = vrot.slane %v3557, %v4290
  %v4293 = vunpack.c.l.s4 1983009808
  %v4294 = vunpack.c.0.s8 %v4293
  %v4295 = vlaneseq
  %v4296 = vshrl.u32 %v4295, 7
  %v4297 = vsub.s32 %v4294, %v4296
  %v4298 = vrot.slane %v4284, %v4297
  %v4299 = vcombine.high %v3569, 0.0
  %v4301 = vunpack.c.l.s4 1983009808
  %v4302 = vunpack.c.0.s8 %v4301
  %v4303 = vlaneseq
  %v4304 = vshrl.u32 %v4303, 7
  %v4305 = vsub.s32 %v4302, %v4304
  %v4306 = vrot.slane %v3569, %v4305
  %v4308 = vunpack.c.l.s4 1983009808
  %v4309 = vunpack.c.0.s8 %v4308
  %v4310 = vlaneseq
  %v4311 = vshrl.u32 %v4310, 7
  %v4312 = vsub.s32 %v4309, %v4311
  %v4313 = vrot.slane %v4299, %v4312
  %v4314 = vcombine.low %v4260, %v4276
  %v4315 = vcombine.high %v4260, %v4276
  %v4317 = vunpack.c.l.s4 1934713408
  %v4318 = vunpack.c.0.s8 %v4317
  %v4319 = vlaneseq
  %v4320 = vshrl.u32 %v4319, 7
  %v4321 = vsub.s32 %v4318, %v4320
  %v4322 = vrot.slane %v4314, %v4321
  %v4324 = vunpack.c.l.s4 1934713408
  %v4325 = vunpack.c.0.s8 %v4324
  %v4326 = vlaneseq
  %v4327 = vshrl.u32 %v4326, 7
  %v4328 = vsub.s32 %v4325, %v4327
  %v4329 = vrot.slane %v4315, %v4328
  %v4330 = vcombine.low %v4267, %v4283
  %v4331 = vcombine.high %v4267, %v4283
  %v4333 = vunpack.c.l.s4 1934713408
  %v4334 = vunpack.c.0.s8 %v4333
  %v4335 = vlaneseq
  %v4336 = vshrl.u32 %v4335, 7
  %v4337 = vsub.s32 %v4334, %v4336
  %v4338 = vrot.slane %v4330, %v4337
  %v4340 = vunpack.c.l.s4 1934713408
  %v4341 = vunpack.c.0.s8 %v4340
  %v4342 = vlaneseq
  %v4343 = vshrl.u32 %v4342, 7
  %v4344 = vsub.s32 %v4341, %v4343
  %v4345 = vrot.slane %v4331, %v4344
  %v4346 = vcombine.low %v4291, %v4306
  %v4347 = vcombine.high %v4291, %v4306
  %v4349 = vunpack.c.l.s4 1934713408
  %v4350 = vunpack.c.0.s8 %v4349
  %v4351 = vlaneseq
  %v4352 = vshrl.u32 %v4351, 7
  %v4353 = vsub.s32 %v4350, %v4352
  %v4354 = vrot.slane %v4346, %v4353
  %v4356 = vunpack.c.l.s4 1934713408
  %v4357 = vunpack.c.0.s8 %v4356
  %v4358 = vlaneseq
  %v4359 = vshrl.u32 %v4358, 7
  %v4360 = vsub.s32 %v4357, %v4359
  %v4361 = vrot.slane %v4347, %v4360
  %v4362 = vcombine.low %v4298, %v4313
  %v4363 = vcombine.high %v4298, %v4313
  %v4365 = vunpack.c.l.s4 1934713408
  %v4366 = vunpack.c.0.s8 %v4365
  %v4367 = vlaneseq
  %v4368 = vshrl.u32 %v4367, 7
  %v4369 = vsub.s32 %v4366, %v4368
  %v4370 = vrot.slane %v4362, %v4369
  %v4372 = vunpack.c.l.s4 1934713408
  %v4373 = vunpack.c.0.s8 %v4372
  %v4374 = vlaneseq
  %v4375 = vshrl.u32 %v4374, 7
  %v4376 = vsub.s32 %v4373, %v4375
  %v4377 = vrot.slane %v4363, %v4376
  %v4378 = vcombine.low %v4322, %v4354
  %v4379 = vcombine.high %v4322, %v4354
  %v4380 = vcombine.low %v4329, %v4361
  %v4381 = vcombine.high %v4329, %v4361
  %v4382 = vcombine.low %v4338, %v4370
  %v4383 = vcombine.high %v4338, %v4370
  %v4384 = vcombine.low %v4345, %v4377
  %v4385 = vcombine.high %v4345, %v4377
  %v4386 = vcombine.low %v3422, %v3447
  %v4387 = vcombine.high %v3422, %v3447
  %v4389 = vunpack.c.l.s4 1983009808
  %v4390 = vunpack.c.0.s8 %v4389
  %v4391 = vlaneseq
  %v4392 = vshrl.u32 %v4391, 7
  %v4393 = vsub.s32 %v4390, %v4392
  %v4394 = vrot.slane %v4386, %v4393
  %v4396 = vunpack.c.l.s4 1983009808
  %v4397 = vunpack.c.0.s8 %v4396
  %v4398 = vlaneseq
  %v4399 = vshrl.u32 %v4398, 7
  %v4400 = vsub.s32 %v4397, %v4399
  %v4401 = vrot.slane %v4387, %v4400
  %v4402 = vcombine.low %v3435, %v3459
  %v4403 = vcombine.high %v3435, %v3459
  %v4405 = vunpack.c.l.s4 1983009808
  %v4406 = vunpack.c.0.s8 %v4405
  %v4407 = vlaneseq
  %v4408 = vshrl.u32 %v4407, 7
  %v4409 = vsub.s32 %v4406, %v4408
  %v4410 = vrot.slane %v4402, %v4409
  %v4412 = vunpack.c.l.s4 1983009808
  %v4413 = vunpack.c.0.s8 %v4412
  %v4414 = vlaneseq
  %v4415 = vshrl.u32 %v4414, 7
  %v4416 = vsub.s32 %v4413, %v4415
  %v4417 = vrot.slane %v4403, %v4416
  %v4418 = vcombine.low %v3471, %v3495
  %v4419 = vcombine.high %v3471, %v3495
  %v4421 = vunpack.c.l.s4 1983009808
  %v4422 = vunpack.c.0.s8 %v4421
  %v4423 = vlaneseq
  %v4424 = vshrl.u32 %v4423, 7
  %v4425 = vsub.s32 %v4422, %v4424
  %v4426 = vrot.slane %v4418, %v4425
  %v4428 = vunpack.c.l.s4 1983009808
  %v4429 = vunpack.c.0.s8 %v4428
  %v4430 = vlaneseq
  %v4431 = vshrl.u32 %v4430, 7
  %v4432 = vsub.s32 %v4429, %v4431
  %v4433 = vrot.slane %v4419, %v4432
  %v4434 = vcombine.low %v3483, %v3507
  %v4435 = vcombine.high %v3483, %v3507
  %v4437 = vunpack.c.l.s4 1983009808
  %v4438 = vunpack.c.0.s8 %v4437
  %v4439 = vlaneseq
  %v4440 = vshrl.u32 %v4439, 7
  %v4441 = vsub.s32 %v4438, %v4440
  %v4442 = vrot.slane %v4434, %v4441
  %v4444 = vunpack.c.l.s4 1983009808
  %v4445 = vunpack.c.0.s8 %v4444
  %v4446 = vlaneseq
  %v4447 = vshrl.u32 %v4446, 7
  %v4448 = vsub.s32 %v4445, %v4447
  %v4449 = vrot.slane %v4435, %v4448
  %v4450 = vcombine.low %v4394, %v4410
  %v4451 = vcombine.high %v4394, %v4410
  %v4453 = vunpack.c.l.s4 1934713408
  %v4454 = vunpack.c.0.s8 %v4453
  %v4455 = vlaneseq
  %v4456 = vshrl.u32 %v4455, 7
  %v4457 = vsub.s32 %v4454, %v4456
  %v4458 = vrot.slane %v4450, %v4457
  %v4460 = vunpack.c.l.s4 1934713408
  %v4461 = vunpack.c.0.s8 %v4460
  %v4462 = vlaneseq
  %v4463 = vshrl.u32 %v4462, 7
  %v4464 = vsub.s32 %v4461, %v4463
  %v4465 = vrot.slane %v4451, %v4464
  %v4466 = vcombine.low %v4401, %v4417
  %v4467 = vcombine.high %v4401, %v4417
  %v4469 = vunpack.c.l.s4 1934713408
  %v4470 = vunpack.c.0.s8 %v4469
  %v4471 = vlaneseq
  %v4472 = vshrl.u32 %v4471, 7
  %v4473 = vsub.s32 %v4470, %v4472
  %v4474 = vrot.slane %v4466, %v4473
  %v4476 = vunpack.c.l.s4 1934713408
  %v4477 = vunpack.c.0.s8 %v4476
  %v4478 = vlaneseq
  %v4479 = vshrl.u32 %v4478, 7
  %v4480 = vsub.s32 %v4477, %v4479
  %v4481 = vrot.slane %v4467, %v4480
  %v4482 = vcombine.low %v4426, %v4442
  %v4483 = vcombine.high %v4426, %v4442
  %v4485 = vunpack.c.l.s4 1934713408
  %v4486 = vunpack.c.0.s8 %v4485
  %v4487 = vlaneseq
  %v4488 = vshrl.u32 %v4487, 7
  %v4489 = vsub.s32 %v4486, %v4488
  %v4490 = vrot.slane %v4482, %v4489
  %v4492 = vunpack.c.l.s4 1934713408
  %v4493 = vunpack.c.0.s8 %v4492
  %v4494 = vlaneseq
  %v4495 = vshrl.u32 %v4494, 7
  %v4496 = vsub.s32 %v4493, %v4495
  %v4497 = vrot.slane %v4483, %v4496
  %v4498 = vcombine.low %v4433, %v4449
  %v4499 = vcombine.high %v4433, %v4449
  %v4501 = vunpack.c.l.s4 1934713408
  %v4502 = vunpack.c.0.s8 %v4501
  %v4503 = vlaneseq
  %v4504 = vshrl.u32 %v4503, 7
  %v4505 = vsub.s32 %v4502, %v4504
  %v4506 = vrot.slane %v4498, %v4505
  %v4508 = vunpack.c.l.s4 1934713408
  %v4509 = vunpack.c.0.s8 %v4508
  %v4510 = vlaneseq
  %v4511 = vshrl.u32 %v4510, 7
  %v4512 = vsub.s32 %v4509, %v4511
  %v4513 = vrot.slane %v4499, %v4512
  %v4514 = vcombine.low %v4458, %v4490
  %v4515 = vcombine.high %v4458, %v4490
  %v4516 = vcombine.low %v4465, %v4497
  %v4517 = vcombine.high %v4465, %v4497
  %v4518 = vcombine.low %v4474, %v4506
  %v4519 = vcombine.high %v4474, %v4506
  %v4520 = vcombine.low %v4481, %v4513
  %v4521 = vcombine.high %v4481, %v4513
  %v4522 = vcombine.low %v3423, %v3535
  %v4523 = vcombine.high %v3423, %v3535
  %v4525 = vunpack.c.l.s4 1983009808
  %v4526 = vunpack.c.0.s8 %v4525
  %v4527 = vlaneseq
  %v4528 = vshrl.u32 %v4527, 7
  %v4529 = vsub.s32 %v4526, %v4528
  %v4530 = vrot.slane %v4522, %v4529
  %v4532 = vunpack.c.l.s4 1983009808
  %v4533 = vunpack.c.0.s8 %v4532
  %v4534 = vlaneseq
  %v4535 = vshrl.u32 %v4534, 7
  %v4536 = vsub.s32 %v4533, %v4535
  %v4537 = vrot.slane %v4523, %v4536
  %v4538 = vcombine.low %v3523, %v3547
  %v4539 = vcombine.high %v3523, %v3547
  %v4541 = vunpack.c.l.s4 1983009808
  %v4542 = vunpack.c.0.s8 %v4541
  %v4543 = vlaneseq
  %v4544 = vshrl.u32 %v4543, 7
  %v4545 = vsub.s32 %v4542, %v4544
  %v4546 = vrot.slane %v4538, %v4545
  %v4548 = vunpack.c.l.s4 1983009808
  %v4549 = vunpack.c.0.s8 %v4548
  %v4550 = vlaneseq
  %v4551 = vshrl.u32 %v4550, 7
  %v4552 = vsub.s32 %v4549, %v4551
  %v4553 = vrot.slane %v4539, %v4552
  %v4554 = vcombine.high %v3559, 0.0
  %v4556 = vunpack.c.l.s4 1983009808
  %v4557 = vunpack.c.0.s8 %v4556
  %v4558 = vlaneseq
  %v4559 = vshrl.u32 %v4558, 7
  %v4560 = vsub.s32 %v4557, %v4559
  %v4561 = vrot.slane %v3559, %v4560
  %v4563 = vunpack.c.l.s4 1983009808
  %v4564 = vunpack.c.0.s8 %v4563
  %v4565 = vlaneseq
  %v4566 = vshrl.u32 %v4565, 7
  %v4567 = vsub.s32 %v4564, %v4566
  %v4568 = vrot.slane %v4554, %v4567
  %v4569 = vcombine.high %v3571, 0.0
  %v4571 = vunpack.c.l.s4 1983009808
  %v4572 = vunpack.c.0.s8 %v4571
  %v4573 = vlaneseq
  %v4574 = vshrl.u32 %v4573, 7
  %v4575 = vsub.s32 %v4572, %v4574
  %v4576 = vrot.slane %v3571, %v4575
  %v4578 = vunpack.c.l.s4 1983009808
  %v4579 = vunpack.c.0.s8 %v4578
  %v4580 = vlaneseq
  %v4581 = vshrl.u32 %v4580, 7
  %v4582 = vsub.s32 %v4579, %v4581
  %v4583 = vrot.slane %v4569, %v4582
  %v4584 = vcombine.low %v4530, %v4546
  %v4585 = vcombine.high %v4530, %v4546
  %v4587 = vunpack.c.l.s4 1934713408
  %v4588 = vunpack.c.0.s8 %v4587
  %v4589 = vlaneseq
  %v4590 = vshrl.u32 %v4589, 7
  %v4591 = vsub.s32 %v4588, %v4590
  %v4592 = vrot.slane %v4584, %v4591
  %v4594 = vunpack.c.l.s4 1934713408
  %v4595 = vunpack.c.0.s8 %v4594
  %v4596 = vlaneseq
  %v4597 = vshrl.u32 %v4596, 7
  %v4598 = vsub.s32 %v4595, %v4597
  %v4599 = vrot.slane %v4585, %v4598
  %v4600 = vcombine.low %v4537, %v4553
  %v4601 = vcombine.high %v4537, %v4553
  %v4603 = vunpack.c.l.s4 1934713408
  %v4604 = vunpack.c.0.s8 %v4603
  %v4605 = vlaneseq
  %v4606 = vshrl.u32 %v4605, 7
  %v4607 = vsub.s32 %v4604, %v4606
  %v4608 = vrot.slane %v4600, %v4607
  %v4610 = vunpack.c.l.s4 1934713408
  %v4611 = vunpack.c.0.s8 %v4610
  %v4612 = vlaneseq
  %v4613 = vshrl.u32 %v4612, 7
  %v4614 = vsub.s32 %v4611, %v4613
  %v4615 = vrot.slane %v4601, %v4614
  %v4616 = vcombine.low %v4561, %v4576
  %v4617 = vcombine.high %v4561, %v4576
  %v4619 = vunpack.c.l.s4 1934713408
  %v4620 = vunpack.c.0.s8 %v4619
  %v4621 = vlaneseq
  %v4622 = vshrl.u32 %v4621, 7
  %v4623 = vsub.s32 %v4620, %v4622
  %v4624 = vrot.slane %v4616, %v4623
  %v4626 = vunpack.c.l.s4 1934713408
  %v4627 = vunpack.c.0.s8 %v4626
  %v4628 = vlaneseq
  %v4629 = vshrl.u32 %v4628, 7
  %v4630 = vsub.s32 %v4627, %v4629
  %v4631 = vrot.slane %v4617, %v4630
  %v4632 = vcombine.low %v4568, %v4583
  %v4633 = vcombine.high %v4568, %v4583
  %v4635 = vunpack.c.l.s4 1934713408
  %v4636 = vunpack.c.0.s8 %v4635
  %v4637 = vlaneseq
  %v4638 = vshrl.u32 %v4637, 7
  %v4639 = vsub.s32 %v4636, %v4638
  %v4640 = vrot.slane %v4632, %v4639
  %v4642 = vunpack.c.l.s4 1934713408
  %v4643 = vunpack.c.0.s8 %v4642
  %v4644 = vlaneseq
  %v4645 = vshrl.u32 %v4644, 7
  %v4646 = vsub.s32 %v4643, %v4645
  %v4647 = vrot.slane %v4633, %v4646
  %v4648 = vcombine.low %v4592, %v4624
  %v4649 = vcombine.high %v4592, %v4624
  %v4650 = vcombine.low %v4599, %v4631
  %v4651 = vcombine.high %v4599, %v4631
  %v4652 = vcombine.low %v4608, %v4640
  %v4653 = vcombine.high %v4608, %v4640
  %v4654 = vcombine.low %v4615, %v4647
  %v4655 = vcombine.high %v4615, %v4647
  %4720 = vrot.lane.b32.xlu0 %v3704, 120
  %v4721 = vpop.permute.xlu0 %4720
  %4722 = vrot.lane.b32.xlu0 %v3838, 120
  %v4723 = vpop.permute.xlu0 %4722
  %4724 = vrot.lane.b32.xlu0 %v3705, 120
  %v4725 = vpop.permute.xlu0 %4724
  %4726 = vrot.lane.b32.xlu0 %v3839, 120
  %v4727 = vpop.permute.xlu0 %4726
  %4728 = vrot.lane.b32.xlu0 %v3706, 120
  %v4729 = vpop.permute.xlu0 %4728
  %4730 = vrot.lane.b32.xlu0 %v3840, 120
  %v4731 = vpop.permute.xlu0 %4730
  %4732 = vrot.lane.b32.xlu0 %v3707, 120
  %v4733 = vpop.permute.xlu0 %4732
  %4734 = vrot.lane.b32.xlu0 %v3841, 120
  %v4735 = vpop.permute.xlu0 %4734
  %4736 = vrot.lane.b32.xlu0 %v3708, 120
  %v4737 = vpop.permute.xlu0 %4736
  %4738 = vrot.lane.b32.xlu0 %v3842, 120
  %v4739 = vpop.permute.xlu0 %4738
  %4740 = vrot.lane.b32.xlu0 %v3709, 120
  %v4741 = vpop.permute.xlu0 %4740
  %4742 = vrot.lane.b32.xlu0 %v3843, 120
  %v4743 = vpop.permute.xlu0 %4742
  %4744 = vrot.lane.b32.xlu0 %v3710, 120
  %v4745 = vpop.permute.xlu0 %4744
  %4746 = vrot.lane.b32.xlu0 %v3844, 120
  %v4747 = vpop.permute.xlu0 %4746
  %4748 = vrot.lane.b32.xlu0 %v3711, 120
  %v4749 = vpop.permute.xlu0 %4748
  %4750 = vrot.lane.b32.xlu0 %v3845, 120
  %v4751 = vpop.permute.xlu0 %4750
  %4752 = vrot.lane.b32.xlu0 %v3974, 120
  %v4753 = vpop.permute.xlu0 %4752
  %4754 = vrot.lane.b32.xlu0 %v4108, 120
  %v4755 = vpop.permute.xlu0 %4754
  %4756 = vrot.lane.b32.xlu0 %v3975, 120
  %v4757 = vpop.permute.xlu0 %4756
  %4758 = vrot.lane.b32.xlu0 %v4109, 120
  %v4759 = vpop.permute.xlu0 %4758
  %4760 = vrot.lane.b32.xlu0 %v3976, 120
  %v4761 = vpop.permute.xlu0 %4760
  %4762 = vrot.lane.b32.xlu0 %v4110, 120
  %v4763 = vpop.permute.xlu0 %4762
  %4764 = vrot.lane.b32.xlu0 %v3977, 120
  %v4765 = vpop.permute.xlu0 %4764
  %4766 = vrot.lane.b32.xlu0 %v4111, 120
  %v4767 = vpop.permute.xlu0 %4766
  %4768 = vrot.lane.b32.xlu0 %v3978, 120
  %v4769 = vpop.permute.xlu0 %4768
  %4770 = vrot.lane.b32.xlu0 %v4112, 120
  %v4771 = vpop.permute.xlu0 %4770
  %4772 = vrot.lane.b32.xlu0 %v3979, 120
  %v4773 = vpop.permute.xlu0 %4772
  %4774 = vrot.lane.b32.xlu0 %v4113, 120
  %v4775 = vpop.permute.xlu0 %4774
  %4776 = vrot.lane.b32.xlu0 %v3980, 120
  %v4777 = vpop.permute.xlu0 %4776
  %4778 = vrot.lane.b32.xlu0 %v4114, 120
  %v4779 = vpop.permute.xlu0 %4778
  %4780 = vrot.lane.b32.xlu0 %v3981, 120
  %v4781 = vpop.permute.xlu0 %4780
  %4782 = vrot.lane.b32.xlu0 %v4115, 120
  %v4783 = vpop.permute.xlu0 %4782
  %4784 = vrot.lane.b32.xlu0 %v4244, 120
  %v4785 = vpop.permute.xlu0 %4784
  %4786 = vrot.lane.b32.xlu0 %v4378, 120
  %v4787 = vpop.permute.xlu0 %4786
  %4788 = vrot.lane.b32.xlu0 %v4245, 120
  %v4789 = vpop.permute.xlu0 %4788
  %4790 = vrot.lane.b32.xlu0 %v4379, 120
  %v4791 = vpop.permute.xlu0 %4790
  %4792 = vrot.lane.b32.xlu0 %v4246, 120
  %v4793 = vpop.permute.xlu0 %4792
  %4794 = vrot.lane.b32.xlu0 %v4380, 120
  %v4795 = vpop.permute.xlu0 %4794
  %4796 = vrot.lane.b32.xlu0 %v4247, 120
  %v4797 = vpop.permute.xlu0 %4796
  %4798 = vrot.lane.b32.xlu0 %v4381, 120
  %v4799 = vpop.permute.xlu0 %4798
  %4800 = vrot.lane.b32.xlu0 %v4248, 120
  %v4801 = vpop.permute.xlu0 %4800
  %4802 = vrot.lane.b32.xlu0 %v4382, 120
  %v4803 = vpop.permute.xlu0 %4802
  %4804 = vrot.lane.b32.xlu0 %v4249, 120
  %v4805 = vpop.permute.xlu0 %4804
  %4806 = vrot.lane.b32.xlu0 %v4383, 120
  %v4807 = vpop.permute.xlu0 %4806
  %4808 = vrot.lane.b32.xlu0 %v4250, 120
  %v4809 = vpop.permute.xlu0 %4808
  %4810 = vrot.lane.b32.xlu0 %v4384, 120
  %v4811 = vpop.permute.xlu0 %4810
  %4812 = vrot.lane.b32.xlu0 %v4251, 120
  %v4813 = vpop.permute.xlu0 %4812
  %4814 = vrot.lane.b32.xlu0 %v4385, 120
  %v4815 = vpop.permute.xlu0 %4814
  %4816 = vrot.lane.b32.xlu0 %v4514, 120
  %v4817 = vpop.permute.xlu0 %4816
  %4818 = vrot.lane.b32.xlu0 %v4648, 120
  %v4819 = vpop.permute.xlu0 %4818
  %4820 = vrot.lane.b32.xlu0 %v4515, 120
  %v4821 = vpop.permute.xlu0 %4820
  %4822 = vrot.lane.b32.xlu0 %v4649, 120
  %v4823 = vpop.permute.xlu0 %4822
  %4824 = vrot.lane.b32.xlu0 %v4516, 120
  %v4825 = vpop.permute.xlu0 %4824
  %4826 = vrot.lane.b32.xlu0 %v4650, 120
  %v4827 = vpop.permute.xlu0 %4826
  %4828 = vrot.lane.b32.xlu0 %v4517, 120
  %v4829 = vpop.permute.xlu0 %4828
  %4830 = vrot.lane.b32.xlu0 %v4651, 120
  %v4831 = vpop.permute.xlu0 %4830
  %4832 = vrot.lane.b32.xlu0 %v4518, 120
  %v4833 = vpop.permute.xlu0 %4832
  %4834 = vrot.lane.b32.xlu0 %v4652, 120
  %v4835 = vpop.permute.xlu0 %4834
  %4836 = vrot.lane.b32.xlu0 %v4519, 120
  %v4837 = vpop.permute.xlu0 %4836
  %4838 = vrot.lane.b32.xlu0 %v4653, 120
  %v4839 = vpop.permute.xlu0 %4838
  %4840 = vrot.lane.b32.xlu0 %v4520, 120
  %v4841 = vpop.permute.xlu0 %4840
  %4842 = vrot.lane.b32.xlu0 %v4654, 120
  %v4843 = vpop.permute.xlu0 %4842
  %4844 = vrot.lane.b32.xlu0 %v4521, 120
  %v4845 = vpop.permute.xlu0 %4844
  %4846 = vrot.lane.b32.xlu0 %v4655, 120
  %v4847 = vpop.permute.xlu0 %4846
  %v4912 = vmax.f32 %v3704, %v4721
  %v4913 = vmax.f32 %v3838, %v4723
  %v4914 = vmax.f32 %v3705, %v4725
  %v4915 = vmax.f32 %v3839, %v4727
  %v4916 = vmax.f32 %v3706, %v4729
  %v4917 = vmax.f32 %v3840, %v4731
  %v4918 = vmax.f32 %v3707, %v4733
  %v4919 = vmax.f32 %v3841, %v4735
  %v4920 = vmax.f32 %v3708, %v4737
  %v4921 = vmax.f32 %v3842, %v4739
  %v4922 = vmax.f32 %v3709, %v4741
  %v4923 = vmax.f32 %v3843, %v4743
  %v4924 = vmax.f32 %v3710, %v4745
  %v4925 = vmax.f32 %v3844, %v4747
  %v4926 = vmax.f32 %v3711, %v4749
  %v4927 = vmax.f32 %v3845, %v4751
  %v4928 = vmax.f32 %v3974, %v4753
  %v4929 = vmax.f32 %v4108, %v4755
  %v4930 = vmax.f32 %v3975, %v4757
  %v4931 = vmax.f32 %v4109, %v4759
  %v4932 = vmax.f32 %v3976, %v4761
  %v4933 = vmax.f32 %v4110, %v4763
  %v4934 = vmax.f32 %v3977, %v4765
  %v4935 = vmax.f32 %v4111, %v4767
  %v4936 = vmax.f32 %v3978, %v4769
  %v4937 = vmax.f32 %v4112, %v4771
  %v4938 = vmax.f32 %v3979, %v4773
  %v4939 = vmax.f32 %v4113, %v4775
  %v4940 = vmax.f32 %v3980, %v4777
  %v4941 = vmax.f32 %v4114, %v4779
  %v4942 = vmax.f32 %v3981, %v4781
  %v4943 = vmax.f32 %v4115, %v4783
  %v4944 = vmax.f32 %v4244, %v4785
  %v4945 = vmax.f32 %v4378, %v4787
  %v4946 = vmax.f32 %v4245, %v4789
  %v4947 = vmax.f32 %v4379, %v4791
  %v4948 = vmax.f32 %v4246, %v4793
  %v4949 = vmax.f32 %v4380, %v4795
  %v4950 = vmax.f32 %v4247, %v4797
  %v4951 = vmax.f32 %v4381, %v4799
  %v4952 = vmax.f32 %v4248, %v4801
  %v4953 = vmax.f32 %v4382, %v4803
  %v4954 = vmax.f32 %v4249, %v4805
  %v4955 = vmax.f32 %v4383, %v4807
  %v4956 = vmax.f32 %v4250, %v4809
  %v4957 = vmax.f32 %v4384, %v4811
  %v4958 = vmax.f32 %v4251, %v4813
  %v4959 = vmax.f32 %v4385, %v4815
  %v4960 = vmax.f32 %v4514, %v4817
  %v4961 = vmax.f32 %v4648, %v4819
  %v4962 = vmax.f32 %v4515, %v4821
  %v4963 = vmax.f32 %v4649, %v4823
  %v4964 = vmax.f32 %v4516, %v4825
  %v4965 = vmax.f32 %v4650, %v4827
  %v4966 = vmax.f32 %v4517, %v4829
  %v4967 = vmax.f32 %v4651, %v4831
  %v4968 = vmax.f32 %v4518, %v4833
  %v4969 = vmax.f32 %v4652, %v4835
  %v4970 = vmax.f32 %v4519, %v4837
  %v4971 = vmax.f32 %v4653, %v4839
  %v4972 = vmax.f32 %v4520, %v4841
  %v4973 = vmax.f32 %v4654, %v4843
  %v4974 = vmax.f32 %v4521, %v4845
  %v4975 = vmax.f32 %v4655, %v4847
  %vm4976 = vcmask 1045504
  %v4977 = vsel %vm4976, %v4913, 0.0
  %v4978 = vsel %vm4976, %v4915, 0.0
  %v4979 = vsel %vm4976, %v4917, 0.0
  %v4980 = vsel %vm4976, %v4919, 0.0
  %v4981 = vsel %vm4976, %v4921, 0.0
  %v4982 = vsel %vm4976, %v4923, 0.0
  %v4983 = vsel %vm4976, %v4925, 0.0
  %v4984 = vsel %vm4976, %v4927, 0.0
  %v4985 = vsel %vm4976, %v4929, 0.0
  %v4986 = vsel %vm4976, %v4931, 0.0
  %v4987 = vsel %vm4976, %v4933, 0.0
  %v4988 = vsel %vm4976, %v4935, 0.0
  %v4989 = vsel %vm4976, %v4937, 0.0
  %v4990 = vsel %vm4976, %v4939, 0.0
  %v4991 = vsel %vm4976, %v4941, 0.0
  %v4992 = vsel %vm4976, %v4943, 0.0
  %v4993 = vsel %vm4976, %v4945, 0.0
  %v4994 = vsel %vm4976, %v4947, 0.0
  %v4995 = vsel %vm4976, %v4949, 0.0
  %v4996 = vsel %vm4976, %v4951, 0.0
  %v4997 = vsel %vm4976, %v4953, 0.0
  %v4998 = vsel %vm4976, %v4955, 0.0
  %v4999 = vsel %vm4976, %v4957, 0.0
  %v5000 = vsel %vm4976, %v4959, 0.0
  %v5001 = vsel %vm4976, %v4961, 0.0
  %v5002 = vsel %vm4976, %v4963, 0.0
  %v5003 = vsel %vm4976, %v4965, 0.0
  %v5004 = vsel %vm4976, %v4967, 0.0
  %v5005 = vsel %vm4976, %v4969, 0.0
  %v5006 = vsel %vm4976, %v4971, 0.0
  %v5007 = vsel %vm4976, %v4973, 0.0
  %v5008 = vsel %vm4976, %v4975, 0.0
  %v5009 = vpack.c.bf16 %v4977, %v4912
  %v5010 = vpack.c.bf16 %v4978, %v4914
  %v5011 = vpack.c.bf16 %v4979, %v4916
  %v5012 = vpack.c.bf16 %v4980, %v4918
  %v5013 = vpack.c.bf16 %v4981, %v4920
  %v5014 = vpack.c.bf16 %v4982, %v4922
  %v5015 = vpack.c.bf16 %v4983, %v4924
  %v5016 = vpack.c.bf16 %v4984, %v4926
  %v5017 = vpack.c.bf16 %v4985, %v4928
  %v5018 = vpack.c.bf16 %v4986, %v4930
  %v5019 = vpack.c.bf16 %v4987, %v4932
  %v5020 = vpack.c.bf16 %v4988, %v4934
  %v5021 = vpack.c.bf16 %v4989, %v4936
  %v5022 = vpack.c.bf16 %v4990, %v4938
  %v5023 = vpack.c.bf16 %v4991, %v4940
  %v5024 = vpack.c.bf16 %v4992, %v4942
  %v5025 = vpack.c.bf16 %v4993, %v4944
  %v5026 = vpack.c.bf16 %v4994, %v4946
  %v5027 = vpack.c.bf16 %v4995, %v4948
  %v5028 = vpack.c.bf16 %v4996, %v4950
  %v5029 = vpack.c.bf16 %v4997, %v4952
  %v5030 = vpack.c.bf16 %v4998, %v4954
  %v5031 = vpack.c.bf16 %v4999, %v4956
  %v5032 = vpack.c.bf16 %v5000, %v4958
  %v5033 = vpack.c.bf16 %v5001, %v4960
  %v5034 = vpack.c.bf16 %v5002, %v4962
  %v5035 = vpack.c.bf16 %v5003, %v4964
  %v5036 = vpack.c.bf16 %v5004, %v4966
  %v5037 = vpack.c.bf16 %v5005, %v4968
  %v5038 = vpack.c.bf16 %v5006, %v4970
  %v5039 = vpack.c.bf16 %v5007, %v4972
  %v5040 = vpack.c.bf16 %v5008, %v4974
  %v5041 = vld [vmem:[%s5] sm:$0xff]
  %v5042 = vld [vmem:[%s5 + $0x8] sm:$0xff]
  %v5043 = vld [vmem:[%s5 + $0x10] sm:$0xff]
  %v5044 = vld [vmem:[%s5 + $0x18] sm:$0xff]
  %v5045 = vld [vmem:[%s5 + $0x20] sm:$0xff]
  %v5046 = vld [vmem:[%s5 + $0x28] sm:$0xff]
  %v5047 = vld [vmem:[%s5 + $0x30] sm:$0xff]
  %v5048 = vld [vmem:[%s5 + $0x38] sm:$0xff]
  %v5049 = vld [vmem:[%s5 + $0x40] sm:$0xff]
  %v5050 = vld [vmem:[%s5 + $0x48] sm:$0xff]
  %v5051 = vld [vmem:[%s5 + $0x50] sm:$0xff]
  %v5052 = vld [vmem:[%s5 + $0x58] sm:$0xff]
  %v5053 = vld [vmem:[%s5 + $0x60] sm:$0xff]
  %v5054 = vld [vmem:[%s5 + $0x68] sm:$0xff]
  %v5055 = vld [vmem:[%s5 + $0x70] sm:$0xff]
  %v5056 = vld [vmem:[%s5 + $0x78] sm:$0xff]
  %v5057 = vld [vmem:[%s6] sm:$0xff]
  %v5058 = vld [vmem:[%s6 + $0x8] sm:$0xff]
  %v5059 = vld [vmem:[%s6 + $0x10] sm:$0xff]
  %v5060 = vld [vmem:[%s6 + $0x18] sm:$0xff]
  %v5061 = vld [vmem:[%s6 + $0x20] sm:$0xff]
  %v5062 = vld [vmem:[%s6 + $0x28] sm:$0xff]
  %v5063 = vld [vmem:[%s6 + $0x30] sm:$0xff]
  %v5064 = vld [vmem:[%s6 + $0x38] sm:$0xff]
  %5066 = vset.pattern.permute.xlu0 0
  %5067 = vperm.xlu0 %5066, %v5057
  %v5068 = vpop.permute.xlu0 %5067
  %5071 = vset.pattern.permute.xlu0 0
  %5072 = vperm.xlu0 %5071, %v5058
  %v5073 = vpop.permute.xlu0 %5072
  %5076 = vset.pattern.permute.xlu0 0
  %5077 = vperm.xlu0 %5076, %v5059
  %v5078 = vpop.permute.xlu0 %5077
  %5081 = vset.pattern.permute.xlu0 0
  %5082 = vperm.xlu0 %5081, %v5060
  %v5083 = vpop.permute.xlu0 %5082
  %5086 = vset.pattern.permute.xlu0 0
  %5087 = vperm.xlu0 %5086, %v5061
  %v5088 = vpop.permute.xlu0 %5087
  %5091 = vset.pattern.permute.xlu0 0
  %5092 = vperm.xlu0 %5091, %v5062
  %v5093 = vpop.permute.xlu0 %5092
  %5096 = vset.pattern.permute.xlu0 0
  %5097 = vperm.xlu0 %5096, %v5063
  %v5098 = vpop.permute.xlu0 %5097
  %5101 = vset.pattern.permute.xlu0 0
  %5102 = vperm.xlu0 %5101, %v5064
  %v5103 = vpop.permute.xlu0 %5102
  %v5121 = vunpack.c.l.b16 %v5041
  %v5122 = vunpack.c.h.b16 %v5041
  %v5123 = vunpack.c.l.b16 %v5042
  %v5124 = vunpack.c.h.b16 %v5042
  %v5125 = vunpack.c.l.b16 %v5043
  %v5126 = vunpack.c.h.b16 %v5043
  %v5127 = vunpack.c.l.b16 %v5044
  %v5128 = vunpack.c.h.b16 %v5044
  %v5129 = vunpack.c.l.b16 %v5045
  %v5130 = vunpack.c.h.b16 %v5045
  %v5131 = vunpack.c.l.b16 %v5046
  %v5132 = vunpack.c.h.b16 %v5046
  %v5133 = vunpack.c.l.b16 %v5047
  %v5134 = vunpack.c.h.b16 %v5047
  %v5135 = vunpack.c.l.b16 %v5048
  %v5136 = vunpack.c.h.b16 %v5048
  %v5137 = vunpack.c.l.b16 %v5049
  %v5138 = vunpack.c.h.b16 %v5049
  %v5139 = vunpack.c.l.b16 %v5050
  %v5140 = vunpack.c.h.b16 %v5050
  %v5141 = vunpack.c.l.b16 %v5051
  %v5142 = vunpack.c.h.b16 %v5051
  %v5143 = vunpack.c.l.b16 %v5052
  %v5144 = vunpack.c.h.b16 %v5052
  %v5145 = vunpack.c.l.b16 %v5053
  %v5146 = vunpack.c.h.b16 %v5053
  %v5147 = vunpack.c.l.b16 %v5054
  %v5148 = vunpack.c.h.b16 %v5054
  %v5149 = vunpack.c.l.b16 %v5055
  %v5150 = vunpack.c.h.b16 %v5055
  %v5151 = vunpack.c.l.b16 %v5056
  %v5152 = vunpack.c.h.b16 %v5056
  %v5153 = vpack.c.b16 %v5125, %v5121
  %v5154 = vpack.c.b16 %v5126, %v5122
  %v5155 = vpack.c.b16 %v5127, %v5123
  %v5156 = vpack.c.b16 %v5128, %v5124
  %v5157 = vpack.c.b16 %v5133, %v5129
  %v5158 = vpack.c.b16 %v5134, %v5130
  %v5159 = vpack.c.b16 %v5135, %v5131
  %v5160 = vpack.c.b16 %v5136, %v5132
  %v5161 = vpack.c.b16 %v5141, %v5137
  %v5162 = vpack.c.b16 %v5142, %v5138
  %v5163 = vpack.c.b16 %v5143, %v5139
  %v5164 = vpack.c.b16 %v5144, %v5140
  %v5165 = vpack.c.b16 %v5149, %v5145
  %v5166 = vpack.c.b16 %v5150, %v5146
  %v5167 = vpack.c.b16 %v5151, %v5147
  %v5168 = vpack.c.b16 %v5152, %v5148
  %5185 = vmatprep.subr.bf16.mxu0 0
  %5186 = vmatpush1.bf16.msra.mxu0 %v5009
  %5187 = vmatprep.subr.bf16.mxu0 0
  %5188 = vmatpush1.bf16.msra.mxu0 %v5010
  %5189 = vmatprep.subr.bf16.mxu0 0
  %5190 = vmatpush1.bf16.msra.mxu0 %v5011
  %5191 = vmatprep.subr.bf16.mxu0 0
  %5192 = vmatpush1.bf16.msra.mxu0 %v5012
  %5193 = vmatprep.subr.bf16.mxu0 0
  %5194 = vmatpush1.bf16.msra.mxu0 %v5013
  %5195 = vmatprep.subr.bf16.mxu0 0
  %5196 = vmatpush1.bf16.msra.mxu0 %v5014
  %5197 = vmatprep.subr.bf16.mxu0 0
  %5198 = vmatpush1.bf16.msra.mxu0 %v5015
  %5199 = vmatprep.subr.bf16.mxu0 0
  %5200 = vmatpush1.bf16.msra.mxu0 %v5016
  %5201 = vmatprep.subr.bf16.mxu0 0
  %5202 = vmatpush1.bf16.msra.mxu0 %v5017
  %5203 = vmatprep.subr.bf16.mxu0 0
  %5204 = vmatpush1.bf16.msra.mxu0 %v5018
  %5205 = vmatprep.subr.bf16.mxu0 0
  %5206 = vmatpush1.bf16.msra.mxu0 %v5019
  %5207 = vmatprep.subr.bf16.mxu0 0
  %5208 = vmatpush1.bf16.msra.mxu0 %v5020
  %5209 = vmatprep.subr.bf16.mxu0 0
  %5210 = vmatpush1.bf16.msra.mxu0 %v5021
  %5211 = vmatprep.subr.bf16.mxu0 0
  %5212 = vmatpush1.bf16.msra.mxu0 %v5022
  %5213 = vmatprep.subr.bf16.mxu0 0
  %5214 = vmatpush1.bf16.msra.mxu0 %v5023
  %5215 = vmatprep.subr.bf16.mxu0 0
  %5216 = vmatpush1.bf16.msra.mxu0 %v5024
  %5217 = vmatprep.mubr.bf16.mxu0 %v5154
  %5218 = vmatmul.mubr.bf16.gmra.mrb[0].mxu0 %v5153
  %v5219 = vpop.f32.mrb[0].mxu0
  %v5220 = vadd.f32 %v5068, %v5219
  %v5221 = vpop.f32.mrb[0].mxu0
  %v5222 = vpop.f32.mrb[0].mxu0
  %v5223 = vadd.f32 %v5073, %v5222
  %v5224 = vpop.f32.mrb[0].mxu0
  %5225 = vmatprep.mubr.bf16.mxu0 %v5158
  %5226 = vmatmul.mubr.bf16.gmra.mrb[0].mxu0 %v5157
  %v5227 = vpop.f32.mrb[0].mxu0
  %v5228 = vadd.f32 %v5078, %v5227
  %v5229 = vpop.f32.mrb[0].mxu0
  %v5230 = vpop.f32.mrb[0].mxu0
  %v5231 = vadd.f32 %v5083, %v5230
  %v5232 = vpop.f32.mrb[0].mxu0
  %5233 = vmatprep.mubr.bf16.mxu0 %v5162
  %5234 = vmatmul.mubr.bf16.gmra.mrb[0].mxu0 %v5161
  %v5235 = vpop.f32.mrb[0].mxu0
  %v5236 = vadd.f32 %v5088, %v5235
  %v5237 = vpop.f32.mrb[0].mxu0
  %v5238 = vpop.f32.mrb[0].mxu0
  %v5239 = vadd.f32 %v5093, %v5238
  %v5240 = vpop.f32.mrb[0].mxu0
  %5241 = vmatprep.mubr.bf16.mxu0 %v5166
  %5242 = vmatmul.mubr.bf16.gmra.mrb[0].mxu0 %v5165
  %v5243 = vpop.f32.mrb[0].mxu0
  %v5244 = vadd.f32 %v5098, %v5243
  %v5245 = vpop.f32.mrb[0].mxu0
  %v5246 = vpop.f32.mrb[0].mxu0
  %v5247 = vadd.f32 %v5103, %v5246
  %v5248 = vpop.f32.mrb[0].mxu0
  %5249 = vdwg.mxu0
  %5250 = vmatprep.subr.bf16.mxu0 0
  %5251 = vmatpush1.bf16.msra.mxu0 %v5025
  %5252 = vmatprep.subr.bf16.mxu0 0
  %5253 = vmatpush1.bf16.msra.mxu0 %v5026
  %5254 = vmatprep.subr.bf16.mxu0 0
  %5255 = vmatpush1.bf16.msra.mxu0 %v5027
  %5256 = vmatprep.subr.bf16.mxu0 0
  %5257 = vmatpush1.bf16.msra.mxu0 %v5028
  %5258 = vmatprep.subr.bf16.mxu0 0
  %5259 = vmatpush1.bf16.msra.mxu0 %v5029
  %5260 = vmatprep.subr.bf16.mxu0 0
  %5261 = vmatpush1.bf16.msra.mxu0 %v5030
  %5262 = vmatprep.subr.bf16.mxu0 0
  %5263 = vmatpush1.bf16.msra.mxu0 %v5031
  %5264 = vmatprep.subr.bf16.mxu0 0
  %5265 = vmatpush1.bf16.msra.mxu0 %v5032
  %5266 = vmatprep.subr.bf16.mxu0 0
  %5267 = vmatpush1.bf16.msra.mxu0 %v5033
  %5268 = vmatprep.subr.bf16.mxu0 0
  %5269 = vmatpush1.bf16.msra.mxu0 %v5034
  %5270 = vmatprep.subr.bf16.mxu0 0
  %5271 = vmatpush1.bf16.msra.mxu0 %v5035
  %5272 = vmatprep.subr.bf16.mxu0 0
  %5273 = vmatpush1.bf16.msra.mxu0 %v5036
  %5274 = vmatprep.subr.bf16.mxu0 0
  %5275 = vmatpush1.bf16.msra.mxu0 %v5037
  %5276 = vmatprep.subr.bf16.mxu0 0
  %5277 = vmatpush1.bf16.msra.mxu0 %v5038
  %5278 = vmatprep.subr.bf16.mxu0 0
  %5279 = vmatpush1.bf16.msra.mxu0 %v5039
  %5280 = vmatprep.subr.bf16.mxu0 0
  %5281 = vmatpush1.bf16.msra.mxu0 %v5040
  %5282 = vmatprep.mubr.bf16.mxu0 %v5156
  %5283 = vmatmul.mubr.bf16.gmra.mrb[0].mxu0 %v5155
  %v5284 = vpop.f32.mrb[0].mxu0
  %v5285 = vadd.f32 %v5220, %v5284
  %v5286 = vpop.f32.mrb[0].mxu0
  %v5287 = vpop.f32.mrb[0].mxu0
  %v5288 = vadd.f32 %v5223, %v5287
  %v5289 = vpop.f32.mrb[0].mxu0
  %5290 = vmatprep.mubr.bf16.mxu0 %v5160
  %5291 = vmatmul.mubr.bf16.gmra.mrb[0].mxu0 %v5159
  %v5292 = vpop.f32.mrb[0].mxu0
  %v5293 = vadd.f32 %v5228, %v5292
  %v5294 = vpop.f32.mrb[0].mxu0
  %v5295 = vpop.f32.mrb[0].mxu0
  %v5296 = vadd.f32 %v5231, %v5295
  %v5297 = vpop.f32.mrb[0].mxu0
  %5298 = vmatprep.mubr.bf16.mxu0 %v5164
  %5299 = vmatmul.mubr.bf16.gmra.mrb[0].mxu0 %v5163
  %v5300 = vpop.f32.mrb[0].mxu0
  %v5301 = vadd.f32 %v5236, %v5300
  %v5302 = vpop.f32.mrb[0].mxu0
  %v5303 = vpop.f32.mrb[0].mxu0
  %v5304 = vadd.f32 %v5239, %v5303
  %v5305 = vpop.f32.mrb[0].mxu0
  %5306 = vmatprep.mubr.bf16.mxu0 %v5168
  %5307 = vmatmul.mubr.bf16.gmra.mrb[0].mxu0 %v5167
  %v5308 = vpop.f32.mrb[0].mxu0
  %v5309 = vadd.f32 %v5244, %v5308
  %v5310 = vpop.f32.mrb[0].mxu0
  %v5311 = vpop.f32.mrb[0].mxu0
  %v5312 = vadd.f32 %v5247, %v5311
  %v5313 = vpop.f32.mrb[0].mxu0
  %5314 = vdwg.mxu0
  %v5315 = vmax.f32 %v5285, 0.0
  %v5316 = vmax.f32 %v5288, 0.0
  %v5317 = vmax.f32 %v5293, 0.0
  %v5318 = vmax.f32 %v5296, 0.0
  %v5319 = vmax.f32 %v5301, 0.0
  %v5320 = vmax.f32 %v5304, 0.0
  %v5321 = vmax.f32 %v5309, 0.0
  %v5322 = vmax.f32 %v5312, 0.0
  %v5323 = vld [vmem:[%s7] sm:$0xf]
  %v5324 = vld [vmem:[%s7 + $0x4] sm:$0x1]
  %v5325 = vpack.c.bf16 %v5316, %v5315
  %v5326 = vpack.c.bf16 %v5318, %v5317
  %v5327 = vpack.c.bf16 %v5320, %v5319
  %v5328 = vpack.c.bf16 %v5322, %v5321
  %v5329 = vld [vmem:[%s8] sm:$0xff]
  %v5330 = vld [vmem:[%s8 + $0x8] sm:$0x3]
  %5332 = vset.pattern.permute.xlu0 0
  %5333 = vperm.xlu0 %5332, %v5329
  %v5334 = vpop.permute.xlu0 %5333
  %5337 = vset.pattern.permute.xlu0 0
  %5338 = vperm.xlu0 %5337, %v5330
  %v5339 = vpop.permute.xlu0 %5338
  %v5343 = vunpack.c.l.b16 %v5323
  %v5344 = vunpack.c.l.b16 %v5324
  %v5345 = vpack.c.b16 %v5344, %v5343
  %v5347 = vsel %vm687, %v5345, 0
  %5349 = vmatprep.subr.bf16.mxu0 0
  %5350 = vmatpush1.bf16.msra.mxu0 %v5325
  %5351 = vmatprep.subr.bf16.mxu0 0
  %5352 = vmatpush1.bf16.msra.mxu0 %v5326
  %5353 = vmatprep.subr.bf16.mxu0 0
  %5354 = vmatpush1.bf16.msra.mxu0 %v5327
  %5355 = vmatprep.subr.bf16.mxu0 0
  %5356 = vmatpush1.bf16.msra.mxu0 %v5328
  %5357 = vmatprep.subr.bf16.mxu0 0
  %5358 = vmatpush1.bf16.msra.mxu0 0
  %5359 = vmatprep.subr.bf16.mxu0 0
  %5360 = vmatpush1.bf16.msra.mxu0 0
  %5361 = vmatprep.subr.bf16.mxu0 0
  %5362 = vmatpush1.bf16.msra.mxu0 0
  %5363 = vmatprep.subr.bf16.mxu0 0
  %5364 = vmatpush1.bf16.msra.mxu0 0
  %5365 = vmatprep.subr.bf16.mxu0 0
  %5366 = vmatpush1.bf16.msra.mxu0 0
  %5367 = vmatprep.subr.bf16.mxu0 0
  %5368 = vmatpush1.bf16.msra.mxu0 0
  %5369 = vmatprep.subr.bf16.mxu0 0
  %5370 = vmatpush1.bf16.msra.mxu0 0
  %5371 = vmatprep.subr.bf16.mxu0 0
  %5372 = vmatpush1.bf16.msra.mxu0 0
  %5373 = vmatprep.subr.bf16.mxu0 0
  %5374 = vmatpush1.bf16.msra.mxu0 0
  %5375 = vmatprep.subr.bf16.mxu0 0
  %5376 = vmatpush1.bf16.msra.mxu0 0
  %5377 = vmatprep.subr.bf16.mxu0 0
  %5378 = vmatpush1.bf16.msra.mxu0 0
  %5379 = vmatprep.subr.bf16.mxu0 0
  %5380 = vmatpush1.bf16.msra.mxu0 0
  %5381 = vmatprep.mubr.bf16.mxu0 0
  %5382 = vmatmul.mubr.bf16.gmra.mrb[0].mxu0 %v5347
  %v5383 = vpop.f32.mrb[0].mxu0
  %v5384 = vadd.f32 %v5334, %v5383
  %v5385 = vpop.f32.mrb[0].mxu0
  %v5386 = vpop.f32.mrb[0].mxu0
  %v5387 = vadd.f32 %v5339, %v5386
  %v5388 = vpop.f32.mrb[0].mxu0
  %5389 = vdwg.mxu0
  %5390 = vst.msk [vmem:[%s9] sm:$0xff] %vm673, %v5384
  %vm5391 = vcmask 58368
  %5392 = vst.msk [vmem:[%s9 + $0x8] sm:$0x3] %vm5391, %v5387
  // Predicated region
  $region38: #{tpu_custom_call.1} parent=0 // pred_check
    _
  $region39: #{tpu_custom_call.1} parent=0 // pred_check_branch
    %5394 = sbr.rel (0) target = $region41
  $region40: #{tpu_custom_call.1} parent=0 // pred_region
    _
  $region41: #{tpu_custom_call.1} parent=0 // pred_fallthru
    _
  // Predicated region
  $region42: #{tpu_custom_call.1} parent=0 // pred_check
    _
  $region43: #{tpu_custom_call.1} parent=0 // pred_check_branch
    %5396 = sbr.rel (0) target = $region45
  $region44: #{tpu_custom_call.1} parent=0 // pred_region
    _
  $region45: #{tpu_custom_call.1} parent=0 // pred_fallthru
    _

</llo_original>
